<compile_context>
chip_gen: v6e
topology: v6e:2x2x1
jax: 0.10.0
libtpu: 0.0.40
codegen_flags: <defaults>
</compile_context>

<pallas_src>
import functools

import jax
import jax.numpy as jnp
import numpy as np
from jax import lax
from jax.experimental import pallas as pl
from jax.experimental.pallas import tpu as pltpu

LANES = 128        # feature lanes after padding (lane-dense vregs / stores)
EDGE_TILE = 128    # edges per inner-loop step (bounds VMEM of in-kernel one-hots)


def _round_up(x, m):
    return (x + m - 1) // m * m


def _pad2(x, rows, cols):
    return jnp.pad(x, ((0, rows - x.shape[0]), (0, cols - x.shape[1])))


def _vmem_limit_bytes():
    # ~3/4 of physical VMEM, capped: ~96 MiB on v5e/v6e (128 MiB), ~48 MiB on
    # v7x (64 MiB).  Leaves headroom for compiler scratch / semaphores.
    try:
        cap = int(getattr(pltpu.get_tpu_info(), "vmem_capacity_bytes",
                          128 * 1024 * 1024))
    except Exception:
        cap = 128 * 1024 * 1024
    return int(min(cap * 3 // 4, 100 * 1024 * 1024))


# ----------------------------------------------------------------------------
# Pallas kernel (closed over the static edge count / tile count)
# ----------------------------------------------------------------------------
def _make_kernel(n_edges, num_tiles):
    unroll = True if num_tiles <= 8 else False

    def kernel(
        # inputs
        h_ref, e_ref, src_ref, dst_ref,
        wabcd_ref, babcd_ref, we_ref, be_ref,
        wfh1_ref, bfh1_ref, wfh2_ref, bfh2_ref,
        wfe1_ref, bfe1_ref, wfe2_ref, bfe2_ref,
        bng_ref, bnb_ref,
        # outputs
        h_out_ref, e_out_ref,
    ):
        f32 = jnp.float32
        bf16 = jnp.bfloat16
        eps_bn = 1e-5

        N = h_ref.shape[0]
        EP = e_ref.shape[0]
        D = h_ref.shape[1]            # lane-padded feature width (mult of 128)
        TE = src_ref.shape[1]
        inv_cnt = 1.0 / float(n_edges)

        def mm(x, w):                 # bf16 MXU operands, f32 accumulation
            return jnp.dot(x.astype(bf16), w.astype(bf16),
                           preferred_element_type=f32)

        def bn_affine(x, mu, inv_std, idx):
            # BatchNorm1d (training mode): batch stats + affine.
            return (x - mu) * inv_std * bng_ref[idx:idx + 1, :] + bnb_ref[idx:idx + 1, :]

        # ---------------- node-side pre-pass (nodes stay resident) -----------
        h_in = h_ref[...]
        mu_h = jnp.mean(h_in, axis=0, keepdims=True)
        var_h = jnp.mean((h_in - mu_h) ** 2, axis=0, keepdims=True)
        h_n = bn_affine(h_in, mu_h, lax.rsqrt(var_h + eps_bn), 0)        # norm1_h

        # Fused A|B|C|D projection: one 4*D-wide bf16 MXU matmul.
        proj = mm(h_n, wabcd_ref[...]) + babcd_ref[...]                  # [N, 4D]
        Ah = proj[:, 0 * D:1 * D]
        Bh = proj[:, 1 * D:2 * D]
        Ch = proj[:, 2 * D:3 * D]
        Dh = proj[:, 3 * D:4 * D]

        cb_gather = jnp.concatenate([Ch, Bh], axis=1).astype(bf16)       # [N, 2D]
        dh_gather = Dh.astype(bf16)                                      # [N, D]

        # ------------- norm1_e statistics: single masked pass ----------------
        e_all = e_ref[...]
        rv = (lax.broadcasted_iota(jnp.int32, (EP, 1), 0) < n_edges).astype(f32)
        mu_e = jnp.sum(e_all * rv, axis=0, keepdims=True) * inv_cnt
        ex2 = jnp.sum((e_all * e_all) * rv, axis=0, keepdims=True) * inv_cnt
        inv_std_e = lax.rsqrt(jnp.maximum(ex2 - mu_e * mu_e, 0.0) + eps_bn)

        # hoisted loop invariants (JAX does not CSE broadcasts inside loops)
        g1e = bng_ref[1:2, :]
        b1e = bnb_ref[1:2, :]
        w_e_bf = we_ref[...].astype(bf16)
        b_e = be_ref[...]
        node_iota = lax.broadcasted_iota(jnp.int32, (N, TE), 0)          # [N, TE]
        edge_iota = lax.broadcasted_iota(jnp.int32, (TE, 1), 0)          # [TE, 1]
        gather_dn = (((0,), (0,)), ((), ()))   # contract node axis of [N,*] lhs

        # ---------------- edge tiles: message + gate + scatter ---------------
        def edge_tile(t, carry):
            acc, es1, es2 = carry
            off = pl.multiple_of(t * TE, TE)
            rows = pl.ds(off, TE)

            src_row = src_ref[pl.ds(t, 1), :]                            # (1, TE) i32
            dst_row = dst_ref[pl.ds(t, 1), :]                            # (1, TE) i32

            # norm1_e + E projection for this tile (bf16 MXU operands)
            e_n = (e_ref[rows, :] - mu_e) * inv_std_e * g1e + b1e
            Ee = jnp.dot(e_n.astype(bf16), w_e_bf,
                         preferred_element_type=f32) + b_e               # [TE, D]

            # bf16 one-hots built in-kernel (transposed, [N, TE]); padded edges
            # carry index N, so their columns are all-zero -> no mask needed.
            oh_src = jnp.where(node_iota == src_row, 1.0, 0.0).astype(bf16)
            oh_dst = jnp.where(node_iota == dst_row, 1.0, 0.0).astype(bf16)

            gath = lax.dot_general(oh_src, cb_gather, dimension_numbers=gather_dn,
                                   preferred_element_type=f32)           # [TE, 2D]
            Dh_v = lax.dot_general(oh_dst, dh_gather, dimension_numbers=gather_dn,
                                   preferred_element_type=f32)           # [TE, D]

            e_msg = gath[:, :D] + Dh_v + Ee
            # sigmoid with the divide on the EUP (exp + approx reciprocal)
            sigma = pl.reciprocal(1.0 + jnp.exp(-e_msg), approx=True)

            # residual-1 for edges; re-read e_raw here instead of holding it
            # live across both gather matmuls.
            e1 = e_ref[rows, :] + e_msg
            e_out_ref[rows, :] = e1

            # masked partial sums for norm2_e (folded into this pass)
            m_col = (edge_iota + off < n_edges).astype(f32)              # (TE, 1)
            es1 = es1 + jnp.sum(e1 * m_col, axis=0, keepdims=True)
            es2 = es2 + jnp.sum((e1 * e1) * m_col, axis=0, keepdims=True)

            # scatter-add to destination nodes: plain [N,TE] @ [TE,2D] matmul
            contrib = jnp.concatenate([gath[:, D:] * sigma, sigma],
                                      axis=1).astype(bf16)               # [TE, 2D]
            acc = acc + jnp.dot(oh_dst, contrib, preferred_element_type=f32)
            return acc, es1, es2

        acc0 = jnp.zeros((N, 2 * D), f32)
        zrow = jnp.zeros((1, D), f32)
        acc, es1, es2 = lax.fori_loop(0, num_tiles, edge_tile,
                                      (acc0, zrow, zrow), unroll=unroll)

        # ---------------- node update, norm2_h + FFN, residual-2 -------------
        sum_sigma_h = acc[:, :D]
        sum_sigma = acc[:, D:]
        h_new = Ah + sum_sigma_h * pl.reciprocal(sum_sigma + 1e-10, approx=True)

        h1 = h_in + h_new                                                # residual 1
        mu = jnp.mean(h1, axis=0, keepdims=True)
        var = jnp.mean((h1 - mu) ** 2, axis=0, keepdims=True)
        h2 = bn_affine(h1, mu, lax.rsqrt(var + eps_bn), 2)               # norm2_h
        h2 = mm(jnp.maximum(mm(h2, wfh1_ref[...]) + bfh1_ref[...], 0.0),
                wfh2_ref[...]) + bfh2_ref[...]
        h_out_ref[...] = h1 + h2                                         # residual 2

        # ---------------- edge norm2_e + FFN, tiled, residual-2 --------------
        mu2_e = es1 * inv_cnt
        inv_std2_e = lax.rsqrt(jnp.maximum(es2 * inv_cnt - mu2_e * mu2_e, 0.0)
                               + eps_bn)
        g2e = bng_ref[3:4, :]
        b2e = bnb_ref[3:4, :]
        wfe1_bf = wfe1_ref[...].astype(bf16)
        wfe2_bf = wfe2_ref[...].astype(bf16)
        bfe1 = bfe1_ref[...]
        bfe2 = bfe2_ref[...]

        def ffn_tile(t, carry):
            off = pl.multiple_of(t * TE, TE)
            rows = pl.ds(off, TE)
            e1 = e_out_ref[rows, :]
            e2 = (e1 - mu2_e) * inv_std2_e * g2e + b2e                   # norm2_e
            e2 = jnp.maximum(jnp.dot(e2.astype(bf16), wfe1_bf,
                                     preferred_element_type=f32) + bfe1, 0.0)
            e2 = jnp.dot(e2.astype(bf16), wfe2_bf,
                         preferred_element_type=f32) + bfe2
            e_out_ref[rows, :] = e1 + e2                                 # residual 2
            return carry

        lax.fori_loop(0, num_tiles, ffn_tile, 0, unroll=unroll)

    return kernel


# ----------------------------------------------------------------------------
# Wrapper: lane-padding, parameter fusion, pallas_call
# ----------------------------------------------------------------------------
def gated_gcn_layer(h, e, src, dst, params):
    # residual=True path (input_dim == output_dim), matching the demo config.
    (aw, ab, bw, bb, cw, cb_, dw, db, ew, eb,
     fh1w, fh1b, fh2w, fh2b, fe1w, fe1b, fe2w, fe2b,
     bng, bnb) = params

    N, D = h.shape
    E = e.shape[0]
    H = fh1w.shape[1]
    DP = _round_up(D, LANES)
    HP = _round_up(H, LANES)
    EP = _round_up(E, EDGE_TILE)
    num_tiles = EP // EDGE_TILE

    # Zero-pad features / params to 128 lanes. Padded lanes stay exactly zero
    # through BN (gamma/beta pad = 0), the linears (zero rows/cols/bias) and
    # the gating, so they are inert and sliced off at the end.
    h_p = _pad2(h, N, DP)
    e_p = _pad2(e, EP, DP)
    # Indices laid out (num_tiles, EDGE_TILE): one lane-dense row per tile.
    # Padded edges get index N (out of range) => all-zero one-hot column =>
    # no gather / scatter contribution; BN stats are masked in-kernel.
    src_p = jnp.pad(src.astype(jnp.int32), (0, EP - E),
                    constant_values=N).reshape(num_tiles, EDGE_TILE)
    dst_p = jnp.pad(dst.astype(jnp.int32), (0, EP - E),
                    constant_values=N).reshape(num_tiles, EDGE_TILE)

    w_abcd = jnp.concatenate([_pad2(w, DP, DP) for w in (aw, bw, cw, dw)], axis=1)
    b_abcd = jnp.concatenate([_pad2(b, 1, DP) for b in (ab, bb, cb_, db)], axis=1)

    inputs = (
        h_p, e_p, src_p, dst_p,
        w_abcd, b_abcd, _pad2(ew, DP, DP), _pad2(eb, 1, DP),
        _pad2(fh1w, DP, HP), _pad2(fh1b, 1, HP), _pad2(fh2w, HP, DP), _pad2(fh2b, 1, DP),
        _pad2(fe1w, DP, HP), _pad2(fe1b, 1, HP), _pad2(fe2w, HP, DP), _pad2(fe2b, 1, DP),
        _pad2(bng, 4, DP), _pad2(bnb, 4, DP),
    )

    vmem = lambda: pl.BlockSpec(memory_space=pltpu.MemorySpace.VMEM)
    h_out, e_out = pl.pallas_call(
        _make_kernel(E, num_tiles),
        out_shape=(jax.ShapeDtypeStruct((N, DP), jnp.float32),
                   jax.ShapeDtypeStruct((EP, DP), jnp.float32)),
        in_specs=[vmem() for _ in inputs],
        out_specs=(vmem(), vmem()),
        compiler_params=pltpu.CompilerParams(vmem_limit_bytes=_vmem_limit_bytes()),
    )(*inputs)
    return h_out[:, :D], e_out[:E, :D]


# ----------------------------------------------------------------------------
# Parameter init (matches torch defaults used by the module)
# ----------------------------------------------------------------------------
def init_params(key, input_dim, output_dim, hidden_dim):
    def linear(k, fan_in, fan_out):
        kw, kb = jax.random.split(k)
        bound = 1.0 / np.sqrt(fan_in)
        w = jax.random.uniform(kw, (fan_in, fan_out), jnp.float32, -bound, bound)
        b = jax.random.uniform(kb, (1, fan_out), jnp.float32, -bound, bound)
        return w, b

    keys = jax.random.split(key, 9)
    aw, ab = linear(keys[0], input_dim, output_dim)
    bw, bb = linear(keys[1], input_dim, output_dim)
    cw, cb = linear(keys[2], input_dim, output_dim)
    dw, db = linear(keys[3], input_dim, output_dim)
    ew, eb = linear(keys[4], input_dim, output_dim)
    fh1w, fh1b = linear(keys[5], output_dim, hidden_dim)
    fh2w, fh2b = linear(keys[6], hidden_dim, output_dim)
    fe1w, fe1b = linear(keys[7], output_dim, hidden_dim)
    fe2w, fe2b = linear(keys[8], hidden_dim, output_dim)

    # BatchNorm1d default affine init: weight=1, bias=0
    # rows: [norm1_h, norm1_e, norm2_h, norm2_e]
    bn_gamma = jnp.ones((4, output_dim), jnp.float32)
    bn_beta = jnp.zeros((4, output_dim), jnp.float32)

    return (aw, ab, bw, bb, cw, cb, dw, db, ew, eb,
            fh1w, fh1b, fh2w, fh2b, fe1w, fe1b, fe2w, fe2b,
            bn_gamma, bn_beta)


# ----------------------------------------------------------------------------
# Pure-JAX reference (index-based segment_sum path, mirrors the PyTorch/DGL
# forward). mxu_bf16=True additionally applies the same bf16 rounding the
# kernel uses on every MXU operand, isolating that deliberate precision
# choice from any plumbing bug.
# ----------------------------------------------------------------------------
def reference(h, e, src, dst, params, *, mxu_bf16=False):
    (aw, ab, bw, bb, cw, cb_, dw, db, ew, eb,
     fh1w, fh1b, fh2w, fh2b, fe1w, fe1b, fe2w, fe2b, bng, bnb) = params
    N = h.shape[0]

    def bn(x, i):
        mu = x.mean(0, keepdims=True)
        var = ((x - mu) ** 2).mean(0, keepdims=True)
        return (x - mu) / jnp.sqrt(var + 1e-5) * bng[i:i + 1] + bnb[i:i + 1]

    def rnd(x):
        return x.astype(jnp.bfloat16).astype(jnp.float32) if mxu_bf16 else x

    def mm(x, w):
        return rnd(x) @ rnd(w)

    h_in, e_in = h, e
    hn, en = bn(h, 0), bn(e, 1)
    Ah = mm(hn, aw) + ab
    Bh = mm(hn, bw) + bb
    Ch = mm(hn, cw) + cb_
    Dh = mm(hn, dw) + db
    Ee = mm(en, ew) + eb
    Ch_u = rnd(Ch)[src]
    Dh_v = rnd(Dh)[dst]
    Bh_u = rnd(Bh)[src]
    e_msg = Ch_u + Dh_v + Ee
    sigma = jax.nn.sigmoid(e_msg)
    sum_sigma_h = jax.ops.segment_sum(rnd(Bh_u * sigma), dst, num_segments=N)
    sum_sigma = jax.ops.segment_sum(rnd(sigma), dst, num_segments=N)
    h_new = Ah + sum_sigma_h / (sum_sigma + 1e-10)
    h1 = h_in + h_new
    e1 = e_in + e_msg
    h2 = mm(jnp.maximum(mm(bn(h1, 2), fh1w) + fh1b, 0.0), fh2w) + fh2b
    e2 = mm(jnp.maximum(mm(bn(e1, 3), fe1w) + fe1b, 0.0), fe2w) + fe2b
    return h1 + h2, e1 + e2


if __name__ == "__main__":
    N, E = 48, 200                 # nodes, edges (E not a tile multiple -> exercises masking)
    input_dim = output_dim = 32    # equal -> residual=True
    hidden_dim = 64

    key = jax.random.PRNGKey(0)
    k_h, k_e, k_src, k_dst, k_p = jax.random.split(key, 5)

    h = jax.random.normal(k_h, (N, input_dim), jnp.float32)
    e = jax.random.normal(k_e, (E, input_dim), jnp.float32)
    src = jax.random.randint(k_src, (E,), 0, N)
    dst = jax.random.randint(k_dst, (E,), 0, N)
    params = init_params(k_p, input_dim, output_dim, hidden_dim)

    h_out, e_out = jax.block_until_ready(gated_gcn_layer(h, e, src, dst, params))

    # Tight check vs a reference that mirrors the kernel's deliberate bf16
    # rounding of every MXU operand (remaining slack covers the EUP approximate
    # reciprocals, rsqrt and accumulation-order differences).
    h_m, e_m = reference(h, e, src, dst, params, mxu_bf16=True)
    np.testing.assert_allclose(np.asarray(h_out), np.asarray(h_m), rtol=3e-2, atol=3e-2)
    np.testing.assert_allclose(np.asarray(e_out), np.asarray(e_m), rtol=3e-2, atol=3e-2)

    # Sanity check vs the pure-f32 reference (slack for the bf16 MXU operands).
    h_f, e_f = reference(h, e, src, dst, params, mxu_bf16=False)
    np.testing.assert_allclose(np.asarray(h_out), np.asarray(h_f), rtol=1e-1, atol=1e-1)
    np.testing.assert_allclose(np.asarray(e_out), np.asarray(e_f), rtol=1e-1, atol=1e-1)

    print("KERNEL_OK")
</pallas_src>

<mosaic_0001>
module attributes {stable_mosaic.version = 11 : i64} {
  func.func @kernel(%arg0: memref<48x128xf32, #tpu.memory_space<vmem>>, %arg1: memref<256x128xf32, #tpu.memory_space<vmem>>, %arg2: memref<2x128xi32, #tpu.memory_space<vmem>>, %arg3: memref<2x128xi32, #tpu.memory_space<vmem>>, %arg4: memref<128x512xf32, #tpu.memory_space<vmem>>, %arg5: memref<1x512xf32, #tpu.memory_space<vmem>>, %arg6: memref<128x128xf32, #tpu.memory_space<vmem>>, %arg7: memref<1x128xf32, #tpu.memory_space<vmem>>, %arg8: memref<128x128xf32, #tpu.memory_space<vmem>>, %arg9: memref<1x128xf32, #tpu.memory_space<vmem>>, %arg10: memref<128x128xf32, #tpu.memory_space<vmem>>, %arg11: memref<1x128xf32, #tpu.memory_space<vmem>>, %arg12: memref<128x128xf32, #tpu.memory_space<vmem>>, %arg13: memref<1x128xf32, #tpu.memory_space<vmem>>, %arg14: memref<128x128xf32, #tpu.memory_space<vmem>>, %arg15: memref<1x128xf32, #tpu.memory_space<vmem>>, %arg16: memref<4x128xf32, #tpu.memory_space<vmem>>, %arg17: memref<4x128xf32, #tpu.memory_space<vmem>>, %arg18: memref<48x128xf32, #tpu.memory_space<vmem>>, %arg19: memref<256x128xf32, #tpu.memory_space<vmem>>) attributes {dimension_semantics = [], scalar_prefetch = 0 : i64, scratch_operands = 0 : i64, tpu.core_type = #tpu.core_type<tc>} {
    %c0 = arith.constant 0 : index
    %c0_0 = arith.constant 0 : index
    %0 = vector.load %arg0[%c0, %c0_0] : memref<48x128xf32, #tpu.memory_space<vmem>>, vector<48x128xf32>
    %cst = arith.constant dense<0.000000e+00> : vector<128xf32>
    %1 = vector.multi_reduction <add>, %0, %cst [0] : vector<48x128xf32> to vector<128xf32>
    %2 = vector.shape_cast %1 : vector<128xf32> to vector<1x128xf32>
    %cst_1 = arith.constant 4.800000e+01 : f32
    %3 = vector.broadcast %cst_1 : f32 to vector<1x128xf32>
    %4 = arith.divf %2, %3 : vector<1x128xf32>
    %5 = vector.broadcast %4 : vector<1x128xf32> to vector<48x128xf32>
    %6 = arith.subf %0, %5 : vector<48x128xf32>
    %7 = arith.mulf %6, %6 : vector<48x128xf32>
    %cst_2 = arith.constant dense<0.000000e+00> : vector<128xf32>
    %8 = vector.multi_reduction <add>, %7, %cst_2 [0] : vector<48x128xf32> to vector<128xf32>
    %9 = vector.shape_cast %8 : vector<128xf32> to vector<1x128xf32>
    %cst_3 = arith.constant 4.800000e+01 : f32
    %10 = vector.broadcast %cst_3 : f32 to vector<1x128xf32>
    %11 = arith.divf %9, %10 : vector<1x128xf32>
    %cst_4 = arith.constant 9.99999974E-6 : f32
    %12 = vector.broadcast %cst_4 : f32 to vector<1x128xf32>
    %13 = arith.addf %11, %12 : vector<1x128xf32>
    %14 = math.rsqrt %13 : vector<1x128xf32>
    %15 = vector.broadcast %4 : vector<1x128xf32> to vector<48x128xf32>
    %16 = arith.subf %0, %15 : vector<48x128xf32>
    %17 = vector.broadcast %14 : vector<1x128xf32> to vector<48x128xf32>
    %18 = arith.mulf %16, %17 : vector<48x128xf32>
    %c0_5 = arith.constant 0 : index
    %c0_6 = arith.constant 0 : index
    %19 = vector.load %arg16[%c0_5, %c0_6] : memref<4x128xf32, #tpu.memory_space<vmem>>, vector<1x128xf32>
    %20 = vector.broadcast %19 : vector<1x128xf32> to vector<48x128xf32>
    %21 = arith.mulf %18, %20 : vector<48x128xf32>
    %c0_7 = arith.constant 0 : index
    %c0_8 = arith.constant 0 : index
    %22 = vector.load %arg17[%c0_7, %c0_8] : memref<4x128xf32, #tpu.memory_space<vmem>>, vector<1x128xf32>
    %23 = vector.broadcast %22 : vector<1x128xf32> to vector<48x128xf32>
    %24 = arith.addf %21, %23 : vector<48x128xf32>
    %c0_9 = arith.constant 0 : index
    %c0_10 = arith.constant 0 : index
    %25 = vector.load %arg4[%c0_9, %c0_10] : memref<128x512xf32, #tpu.memory_space<vmem>>, vector<128x512xf32>
    %26 = arith.truncf %24 : vector<48x128xf32> to vector<48x128xbf16>
    %27 = arith.truncf %25 : vector<128x512xf32> to vector<128x512xbf16>
    %cst_11 = arith.constant dense<0.000000e+00> : vector<48x512xf32>
    %28 = tpu.matmul %26, %27, %cst_11 {dimension_numbers = #tpu.dot_dimension_numbers<[1], [0], [0], [1], [0, 0, 1, 1], [], []>} : vector<48x128xbf16>, vector<128x512xbf16>, vector<48x512xf32> -> vector<48x512xf32>
    %c0_12 = arith.constant 0 : index
    %c0_13 = arith.constant 0 : index
    %29 = vector.load %arg5[%c0_12, %c0_13] : memref<1x512xf32, #tpu.memory_space<vmem>>, vector<1x512xf32>
    %30 = vector.broadcast %29 : vector<1x512xf32> to vector<48x512xf32>
    %31 = arith.addf %28, %30 : vector<48x512xf32>
    %32 = vector.extract_strided_slice %31 {offsets = [0, 0], sizes = [48, 128], strides = [1, 1]} : vector<48x512xf32> to vector<48x128xf32>
    %33 = vector.extract_strided_slice %31 {offsets = [0, 128], sizes = [48, 128], strides = [1, 1]} : vector<48x512xf32> to vector<48x128xf32>
    %34 = vector.extract_strided_slice %31 {offsets = [0, 256], sizes = [48, 128], strides = [1, 1]} : vector<48x512xf32> to vector<48x128xf32>
    %35 = vector.extract_strided_slice %31 {offsets = [0, 384], sizes = [48, 128], strides = [1, 1]} : vector<48x512xf32> to vector<48x128xf32>
    %36 = tpu.concatenate %34, %33 in 1 : vector<48x128xf32>, vector<48x128xf32> -> vector<48x256xf32>
    %37 = arith.truncf %36 : vector<48x256xf32> to vector<48x256xbf16>
    %38 = arith.truncf %35 : vector<48x128xf32> to vector<48x128xbf16>
    %c0_14 = arith.constant 0 : index
    %c0_15 = arith.constant 0 : index
    %39 = vector.load %arg1[%c0_14, %c0_15] : memref<256x128xf32, #tpu.memory_space<vmem>>, vector<256x128xf32>
    %40 = tpu.iota {dimensions = array<i32: 0>} : vector<256x1xi32>
    %c200_i32 = arith.constant 200 : i32
    %41 = vector.broadcast %c200_i32 : i32 to vector<256x1xi32>
    %42 = arith.cmpi slt, %40, %41 : vector<256x1xi32>
    %43 = arith.extui %42 : vector<256x1xi1> to vector<256x1xi32>
    %44 = arith.sitofp %43 : vector<256x1xi32> to vector<256x1xf32>
    %45 = vector.broadcast %44 : vector<256x1xf32> to vector<256x128xf32>
    %46 = arith.mulf %39, %45 : vector<256x128xf32>
    %cst_16 = arith.constant dense<0.000000e+00> : vector<128xf32>
    %47 = vector.multi_reduction <add>, %46, %cst_16 [0] : vector<256x128xf32> to vector<128xf32>
    %48 = vector.shape_cast %47 : vector<128xf32> to vector<1x128xf32>
    %cst_17 = arith.constant 5.000000e-03 : f32
    %49 = vector.broadcast %cst_17 : f32 to vector<1x128xf32>
    %50 = arith.mulf %48, %49 : vector<1x128xf32>
    %51 = arith.mulf %39, %39 : vector<256x128xf32>
    %52 = vector.broadcast %44 : vector<256x1xf32> to vector<256x128xf32>
    %53 = arith.mulf %51, %52 : vector<256x128xf32>
    %cst_18 = arith.constant dense<0.000000e+00> : vector<128xf32>
    %54 = vector.multi_reduction <add>, %53, %cst_18 [0] : vector<256x128xf32> to vector<128xf32>
    %55 = vector.shape_cast %54 : vector<128xf32> to vector<1x128xf32>
    %cst_19 = arith.constant 5.000000e-03 : f32
    %56 = vector.broadcast %cst_19 : f32 to vector<1x128xf32>
    %57 = arith.mulf %55, %56 : vector<1x128xf32>
    %58 = arith.mulf %50, %50 : vector<1x128xf32>
    %59 = arith.subf %57, %58 : vector<1x128xf32>
    %cst_20 = arith.constant 0.000000e+00 : f32
    %60 = vector.broadcast %cst_20 : f32 to vector<1x128xf32>
    %61 = arith.maximumf %59, %60 : vector<1x128xf32>
    %cst_21 = arith.constant 9.99999974E-6 : f32
    %62 = vector.broadcast %cst_21 : f32 to vector<1x128xf32>
    %63 = arith.addf %61, %62 : vector<1x128xf32>
    %64 = math.rsqrt %63 : vector<1x128xf32>
    %c1 = arith.constant 1 : index
    %c0_22 = arith.constant 0 : index
    %65 = vector.load %arg16[%c1, %c0_22] : memref<4x128xf32, #tpu.memory_space<vmem>>, vector<1x128xf32>
    %c1_23 = arith.constant 1 : index
    %c0_24 = arith.constant 0 : index
    %66 = vector.load %arg17[%c1_23, %c0_24] : memref<4x128xf32, #tpu.memory_space<vmem>>, vector<1x128xf32>
    %c0_25 = arith.constant 0 : index
    %c0_26 = arith.constant 0 : index
    %67 = vector.load %arg6[%c0_25, %c0_26] : memref<128x128xf32, #tpu.memory_space<vmem>>, vector<128x128xf32>
    %68 = arith.truncf %67 : vector<128x128xf32> to vector<128x128xbf16>
    %c0_27 = arith.constant 0 : index
    %c0_28 = arith.constant 0 : index
    %69 = vector.load %arg7[%c0_27, %c0_28] : memref<1x128xf32, #tpu.memory_space<vmem>>, vector<1x128xf32>
    %70 = tpu.iota {dimensions = array<i32: 0>} : vector<48x128xi32>
    %71 = tpu.iota {dimensions = array<i32: 0>} : vector<128x1xi32>
    %cst_29 = arith.constant 0.000000e+00 : f32
    %72 = vector.broadcast %cst_29 : f32 to vector<48x256xf32>
    %cst_30 = arith.constant 0.000000e+00 : f32
    %73 = vector.broadcast %cst_30 : f32 to vector<1x128xf32>
    %c0_i32 = arith.constant 0 : i32
    %c128_i32 = arith.constant 128 : i32
    %74 = arith.muli %c0_i32, %c128_i32 : i32
    %75 = tpu.assume_multiple %74, 128 : i32
    %76 = arith.index_cast %c0_i32 : i32 to index
    %c0_31 = arith.constant 0 : index
    %77 = vector.load %arg2[%76, %c0_31] : memref<2x128xi32, #tpu.memory_space<vmem>>, vector<1x128xi32>
    %78 = arith.index_cast %c0_i32 : i32 to index
    %c0_32 = arith.constant 0 : index
    %79 = vector.load %arg3[%78, %c0_32] : memref<2x128xi32, #tpu.memory_space<vmem>>, vector<1x128xi32>
    %80 = arith.index_cast %75 : i32 to index
    %c0_33 = arith.constant 0 : index
    %81 = vector.load %arg1[%80, %c0_33] : memref<256x128xf32, #tpu.memory_space<vmem>>, vector<128x128xf32>
    %82 = vector.broadcast %50 : vector<1x128xf32> to vector<128x128xf32>
    %83 = arith.subf %81, %82 : vector<128x128xf32>
    %84 = vector.broadcast %64 : vector<1x128xf32> to vector<128x128xf32>
    %85 = arith.mulf %83, %84 : vector<128x128xf32>
    %86 = vector.broadcast %65 : vector<1x128xf32> to vector<128x128xf32>
    %87 = arith.mulf %85, %86 : vector<128x128xf32>
    %88 = vector.broadcast %66 : vector<1x128xf32> to vector<128x128xf32>
    %89 = arith.addf %87, %88 : vector<128x128xf32>
    %90 = arith.truncf %89 : vector<128x128xf32> to vector<128x128xbf16>
    %cst_34 = arith.constant dense<0.000000e+00> : vector<128x128xf32>
    %91 = tpu.matmul %90, %68, %cst_34 {dimension_numbers = #tpu.dot_dimension_numbers<[1], [0], [0], [1], [0, 0, 1, 1], [], []>} : vector<128x128xbf16>, vector<128x128xbf16>, vector<128x128xf32> -> vector<128x128xf32>
    %92 = vector.broadcast %69 : vector<1x128xf32> to vector<128x128xf32>
    %93 = arith.addf %91, %92 : vector<128x128xf32>
    %94 = vector.broadcast %77 : vector<1x128xi32> to vector<48x128xi32>
    %95 = arith.cmpi eq, %70, %94 : vector<48x128xi32>
    %cst_35 = arith.constant 1.000000e+00 : f32
    %cst_36 = arith.constant 0.000000e+00 : f32
    %96 = vector.broadcast %cst_35 : f32 to vector<48x128xf32>
    %97 = vector.broadcast %cst_36 : f32 to vector<48x128xf32>
    %98 = arith.select %95, %96, %97 : vector<48x128xi1>, vector<48x128xf32>
    %99 = arith.truncf %98 : vector<48x128xf32> to vector<48x128xbf16>
    %100 = vector.broadcast %79 : vector<1x128xi32> to vector<48x128xi32>
    %101 = arith.cmpi eq, %70, %100 : vector<48x128xi32>
    %cst_37 = arith.constant 1.000000e+00 : f32
    %cst_38 = arith.constant 0.000000e+00 : f32
    %102 = vector.broadcast %cst_37 : f32 to vector<48x128xf32>
    %103 = vector.broadcast %cst_38 : f32 to vector<48x128xf32>
    %104 = arith.select %101, %102, %103 : vector<48x128xi1>, vector<48x128xf32>
    %105 = arith.truncf %104 : vector<48x128xf32> to vector<48x128xbf16>
    %cst_39 = arith.constant dense<0.000000e+00> : vector<128x256xf32>
    %106 = tpu.matmul %99, %37, %cst_39 {dimension_numbers = #tpu.dot_dimension_numbers<[0], [0], [1], [1], [0, 1, 1, 1], [], []>} : vector<48x128xbf16>, vector<48x256xbf16>, vector<128x256xf32> -> vector<128x256xf32>
    %cst_40 = arith.constant dense<0.000000e+00> : vector<128x128xf32>
    %107 = tpu.matmul %105, %38, %cst_40 {dimension_numbers = #tpu.dot_dimension_numbers<[0], [0], [1], [1], [0, 1, 1, 1], [], []>} : vector<48x128xbf16>, vector<48x128xbf16>, vector<128x128xf32> -> vector<128x128xf32>
    %108 = vector.extract_strided_slice %106 {offsets = [0, 0], sizes = [128, 128], strides = [1, 1]} : vector<128x256xf32> to vector<128x128xf32>
    %109 = arith.addf %108, %107 : vector<128x128xf32>
    %110 = arith.addf %109, %93 : vector<128x128xf32>
    %cst_41 = arith.constant 0.000000e+00 : f32
    %111 = vector.broadcast %cst_41 : f32 to vector<128x128xf32>
    %112 = arith.subf %111, %110 : vector<128x128xf32>
    %113 = math.exp %112 : vector<128x128xf32>
    %cst_42 = arith.constant 1.000000e+00 : f32
    %114 = vector.broadcast %cst_42 : f32 to vector<128x128xf32>
    %115 = arith.addf %114, %113 : vector<128x128xf32>
    %116 = tpu.reciprocal %115 {approx = true} : vector<128x128xf32> -> vector<128x128xf32>
    %117 = arith.index_cast %75 : i32 to index
    %c0_43 = arith.constant 0 : index
    %118 = vector.load %arg1[%117, %c0_43] : memref<256x128xf32, #tpu.memory_space<vmem>>, vector<128x128xf32>
    %119 = arith.addf %118, %110 : vector<128x128xf32>
    %120 = arith.index_cast %75 : i32 to index
    %c0_44 = arith.constant 0 : index
    %121 = vector.load %arg19[%120, %c0_44] : memref<256x128xf32, #tpu.memory_space<vmem>>, vector<128x128xf32>
    tpu.vector_store %arg19[%120, %c0_44], %119 {strides = array<i32>} : memref<256x128xf32, #tpu.memory_space<vmem>>, vector<128x128xf32>,
    %122 = vector.broadcast %75 : i32 to vector<128x1xi32>
    %123 = arith.addi %71, %122 : vector<128x1xi32>
    %c200_i32_45 = arith.constant 200 : i32
    %124 = vector.broadcast %c200_i32_45 : i32 to vector<128x1xi32>
    %125 = arith.cmpi slt, %123, %124 : vector<128x1xi32>
    %126 = arith.extui %125 : vector<128x1xi1> to vector<128x1xi32>
    %127 = arith.sitofp %126 : vector<128x1xi32> to vector<128x1xf32>
    %128 = vector.broadcast %127 : vector<128x1xf32> to vector<128x128xf32>
    %129 = arith.mulf %119, %128 : vector<128x128xf32>
    %cst_46 = arith.constant dense<0.000000e+00> : vector<128xf32>
    %130 = vector.multi_reduction <add>, %129, %cst_46 [0] : vector<128x128xf32> to vector<128xf32>
    %131 = vector.shape_cast %130 : vector<128xf32> to vector<1x128xf32>
    %132 = arith.addf %73, %131 : vector<1x128xf32>
    %133 = arith.mulf %119, %119 : vector<128x128xf32>
    %134 = vector.broadcast %127 : vector<128x1xf32> to vector<128x128xf32>
    %135 = arith.mulf %133, %134 : vector<128x128xf32>
    %cst_47 = arith.constant dense<0.000000e+00> : vector<128xf32>
    %136 = vector.multi_reduction <add>, %135, %cst_47 [0] : vector<128x128xf32> to vector<128xf32>
    %137 = vector.shape_cast %136 : vector<128xf32> to vector<1x128xf32>
    %138 = arith.addf %73, %137 : vector<1x128xf32>
    %139 = vector.extract_strided_slice %106 {offsets = [0, 128], sizes = [128, 128], strides = [1, 1]} : vector<128x256xf32> to vector<128x128xf32>
    %140 = arith.mulf %139, %116 : vector<128x128xf32>
    %141 = tpu.concatenate %140, %116 in 1 : vector<128x128xf32>, vector<128x128xf32> -> vector<128x256xf32>
    %142 = arith.truncf %141 : vector<128x256xf32> to vector<128x256xbf16>
    %cst_48 = arith.constant dense<0.000000e+00> : vector<48x256xf32>
    %143 = tpu.matmul %105, %142, %cst_48 {dimension_numbers = #tpu.dot_dimension_numbers<[1], [0], [0], [1], [0, 0, 1, 1], [], []>} : vector<48x128xbf16>, vector<128x256xbf16>, vector<48x256xf32> -> vector<48x256xf32>
    %144 = arith.addf %72, %143 : vector<48x256xf32>
    %c1_i32 = arith.constant 1 : i32
    %c128_i32_49 = arith.constant 128 : i32
    %145 = arith.muli %c1_i32, %c128_i32_49 : i32
    %146 = tpu.assume_multiple %145, 128 : i32
    %147 = arith.index_cast %c1_i32 : i32 to index
    %c0_50 = arith.constant 0 : index
    %148 = vector.load %arg2[%147, %c0_50] : memref<2x128xi32, #tpu.memory_space<vmem>>, vector<1x128xi32>
    %149 = arith.index_cast %c1_i32 : i32 to index
    %c0_51 = arith.constant 0 : index
    %150 = vector.load %arg3[%149, %c0_51] : memref<2x128xi32, #tpu.memory_space<vmem>>, vector<1x128xi32>
    %151 = arith.index_cast %146 : i32 to index
    %c0_52 = arith.constant 0 : index
    %152 = vector.load %arg1[%151, %c0_52] : memref<256x128xf32, #tpu.memory_space<vmem>>, vector<128x128xf32>
    %153 = vector.broadcast %50 : vector<1x128xf32> to vector<128x128xf32>
    %154 = arith.subf %152, %153 : vector<128x128xf32>
    %155 = vector.broadcast %64 : vector<1x128xf32> to vector<128x128xf32>
    %156 = arith.mulf %154, %155 : vector<128x128xf32>
    %157 = vector.broadcast %65 : vector<1x128xf32> to vector<128x128xf32>
    %158 = arith.mulf %156, %157 : vector<128x128xf32>
    %159 = vector.broadcast %66 : vector<1x128xf32> to vector<128x128xf32>
    %160 = arith.addf %158, %159 : vector<128x128xf32>
    %161 = arith.truncf %160 : vector<128x128xf32> to vector<128x128xbf16>
    %cst_53 = arith.constant dense<0.000000e+00> : vector<128x128xf32>
    %162 = tpu.matmul %161, %68, %cst_53 {dimension_numbers = #tpu.dot_dimension_numbers<[1], [0], [0], [1], [0, 0, 1, 1], [], []>} : vector<128x128xbf16>, vector<128x128xbf16>, vector<128x128xf32> -> vector<128x128xf32>
    %163 = vector.broadcast %69 : vector<1x128xf32> to vector<128x128xf32>
    %164 = arith.addf %162, %163 : vector<128x128xf32>
    %165 = vector.broadcast %148 : vector<1x128xi32> to vector<48x128xi32>
    %166 = arith.cmpi eq, %70, %165 : vector<48x128xi32>
    %cst_54 = arith.constant 1.000000e+00 : f32
    %cst_55 = arith.constant 0.000000e+00 : f32
    %167 = vector.broadcast %cst_54 : f32 to vector<48x128xf32>
    %168 = vector.broadcast %cst_55 : f32 to vector<48x128xf32>
    %169 = arith.select %166, %167, %168 : vector<48x128xi1>, vector<48x128xf32>
    %170 = arith.truncf %169 : vector<48x128xf32> to vector<48x128xbf16>
    %171 = vector.broadcast %150 : vector<1x128xi32> to vector<48x128xi32>
    %172 = arith.cmpi eq, %70, %171 : vector<48x128xi32>
    %cst_56 = arith.constant 1.000000e+00 : f32
    %cst_57 = arith.constant 0.000000e+00 : f32
    %173 = vector.broadcast %cst_56 : f32 to vector<48x128xf32>
    %174 = vector.broadcast %cst_57 : f32 to vector<48x128xf32>
    %175 = arith.select %172, %173, %174 : vector<48x128xi1>, vector<48x128xf32>
    %176 = arith.truncf %175 : vector<48x128xf32> to vector<48x128xbf16>
    %cst_58 = arith.constant dense<0.000000e+00> : vector<128x256xf32>
    %177 = tpu.matmul %170, %37, %cst_58 {dimension_numbers = #tpu.dot_dimension_numbers<[0], [0], [1], [1], [0, 1, 1, 1], [], []>} : vector<48x128xbf16>, vector<48x256xbf16>, vector<128x256xf32> -> vector<128x256xf32>
    %cst_59 = arith.constant dense<0.000000e+00> : vector<128x128xf32>
    %178 = tpu.matmul %176, %38, %cst_59 {dimension_numbers = #tpu.dot_dimension_numbers<[0], [0], [1], [1], [0, 1, 1, 1], [], []>} : vector<48x128xbf16>, vector<48x128xbf16>, vector<128x128xf32> -> vector<128x128xf32>
    %179 = vector.extract_strided_slice %177 {offsets = [0, 0], sizes = [128, 128], strides = [1, 1]} : vector<128x256xf32> to vector<128x128xf32>
    %180 = arith.addf %179, %178 : vector<128x128xf32>
    %181 = arith.addf %180, %164 : vector<128x128xf32>
    %cst_60 = arith.constant 0.000000e+00 : f32
    %182 = vector.broadcast %cst_60 : f32 to vector<128x128xf32>
    %183 = arith.subf %182, %181 : vector<128x128xf32>
    %184 = math.exp %183 : vector<128x128xf32>
    %cst_61 = arith.constant 1.000000e+00 : f32
    %185 = vector.broadcast %cst_61 : f32 to vector<128x128xf32>
    %186 = arith.addf %185, %184 : vector<128x128xf32>
    %187 = tpu.reciprocal %186 {approx = true} : vector<128x128xf32> -> vector<128x128xf32>
    %188 = arith.index_cast %146 : i32 to index
    %c0_62 = arith.constant 0 : index
    %189 = vector.load %arg1[%188, %c0_62] : memref<256x128xf32, #tpu.memory_space<vmem>>, vector<128x128xf32>
    %190 = arith.addf %189, %181 : vector<128x128xf32>
    %191 = arith.index_cast %146 : i32 to index
    %c0_63 = arith.constant 0 : index
    %192 = vector.load %arg19[%191, %c0_63] : memref<256x128xf32, #tpu.memory_space<vmem>>, vector<128x128xf32>
    tpu.vector_store %arg19[%191, %c0_63], %190 {strides = array<i32>} : memref<256x128xf32, #tpu.memory_space<vmem>>, vector<128x128xf32>,
    %193 = vector.broadcast %146 : i32 to vector<128x1xi32>
    %194 = arith.addi %71, %193 : vector<128x1xi32>
    %c200_i32_64 = arith.constant 200 : i32
    %195 = vector.broadcast %c200_i32_64 : i32 to vector<128x1xi32>
    %196 = arith.cmpi slt, %194, %195 : vector<128x1xi32>
    %197 = arith.extui %196 : vector<128x1xi1> to vector<128x1xi32>
    %198 = arith.sitofp %197 : vector<128x1xi32> to vector<128x1xf32>
    %199 = vector.broadcast %198 : vector<128x1xf32> to vector<128x128xf32>
    %200 = arith.mulf %190, %199 : vector<128x128xf32>
    %cst_65 = arith.constant dense<0.000000e+00> : vector<128xf32>
    %201 = vector.multi_reduction <add>, %200, %cst_65 [0] : vector<128x128xf32> to vector<128xf32>
    %202 = vector.shape_cast %201 : vector<128xf32> to vector<1x128xf32>
    %203 = arith.addf %132, %202 : vector<1x128xf32>
    %204 = arith.mulf %190, %190 : vector<128x128xf32>
    %205 = vector.broadcast %198 : vector<128x1xf32> to vector<128x128xf32>
    %206 = arith.mulf %204, %205 : vector<128x128xf32>
    %cst_66 = arith.constant dense<0.000000e+00> : vector<128xf32>
    %207 = vector.multi_reduction <add>, %206, %cst_66 [0] : vector<128x128xf32> to vector<128xf32>
    %208 = vector.shape_cast %207 : vector<128xf32> to vector<1x128xf32>
    %209 = arith.addf %138, %208 : vector<1x128xf32>
    %210 = vector.extract_strided_slice %177 {offsets = [0, 128], sizes = [128, 128], strides = [1, 1]} : vector<128x256xf32> to vector<128x128xf32>
    %211 = arith.mulf %210, %187 : vector<128x128xf32>
    %212 = tpu.concatenate %211, %187 in 1 : vector<128x128xf32>, vector<128x128xf32> -> vector<128x256xf32>
    %213 = arith.truncf %212 : vector<128x256xf32> to vector<128x256xbf16>
    %cst_67 = arith.constant dense<0.000000e+00> : vector<48x256xf32>
    %214 = tpu.matmul %176, %213, %cst_67 {dimension_numbers = #tpu.dot_dimension_numbers<[1], [0], [0], [1], [0, 0, 1, 1], [], []>} : vector<48x128xbf16>, vector<128x256xbf16>, vector<48x256xf32> -> vector<48x256xf32>
    %215 = arith.addf %144, %214 : vector<48x256xf32>
    %c2_i32 = arith.constant 2 : i32
    %216 = vector.extract_strided_slice %215 {offsets = [0, 0], sizes = [48, 128], strides = [1, 1]} : vector<48x256xf32> to vector<48x128xf32>
    %217 = vector.extract_strided_slice %215 {offsets = [0, 128], sizes = [48, 128], strides = [1, 1]} : vector<48x256xf32> to vector<48x128xf32>
    %cst_68 = arith.constant 1.000000e-10 : f32
    %218 = vector.broadcast %cst_68 : f32 to vector<48x128xf32>
    %219 = arith.addf %217, %218 : vector<48x128xf32>
    %220 = tpu.reciprocal %219 {approx = true} : vector<48x128xf32> -> vector<48x128xf32>
    %221 = arith.mulf %216, %220 : vector<48x128xf32>
    %222 = arith.addf %32, %221 : vector<48x128xf32>
    %223 = arith.addf %0, %222 : vector<48x128xf32>
    %cst_69 = arith.constant dense<0.000000e+00> : vector<128xf32>
    %224 = vector.multi_reduction <add>, %223, %cst_69 [0] : vector<48x128xf32> to vector<128xf32>
    %225 = vector.shape_cast %224 : vector<128xf32> to vector<1x128xf32>
    %cst_70 = arith.constant 4.800000e+01 : f32
    %226 = vector.broadcast %cst_70 : f32 to vector<1x128xf32>
    %227 = arith.divf %225, %226 : vector<1x128xf32>
    %228 = vector.broadcast %227 : vector<1x128xf32> to vector<48x128xf32>
    %229 = arith.subf %223, %228 : vector<48x128xf32>
    %230 = arith.mulf %229, %229 : vector<48x128xf32>
    %cst_71 = arith.constant dense<0.000000e+00> : vector<128xf32>
    %231 = vector.multi_reduction <add>, %230, %cst_71 [0] : vector<48x128xf32> to vector<128xf32>
    %232 = vector.shape_cast %231 : vector<128xf32> to vector<1x128xf32>
    %cst_72 = arith.constant 4.800000e+01 : f32
    %233 = vector.broadcast %cst_72 : f32 to vector<1x128xf32>
    %234 = arith.divf %232, %233 : vector<1x128xf32>
    %cst_73 = arith.constant 9.99999974E-6 : f32
    %235 = vector.broadcast %cst_73 : f32 to vector<1x128xf32>
    %236 = arith.addf %234, %235 : vector<1x128xf32>
    %237 = math.rsqrt %236 : vector<1x128xf32>
    %238 = vector.broadcast %227 : vector<1x128xf32> to vector<48x128xf32>
    %239 = arith.subf %223, %238 : vector<48x128xf32>
    %240 = vector.broadcast %237 : vector<1x128xf32> to vector<48x128xf32>
    %241 = arith.mulf %239, %240 : vector<48x128xf32>
    %c2 = arith.constant 2 : index
    %c0_74 = arith.constant 0 : index
    %242 = vector.load %arg16[%c2, %c0_74] : memref<4x128xf32, #tpu.memory_space<vmem>>, vector<1x128xf32>
    %243 = vector.broadcast %242 : vector<1x128xf32> to vector<48x128xf32>
    %244 = arith.mulf %241, %243 : vector<48x128xf32>
    %c2_75 = arith.constant 2 : index
    %c0_76 = arith.constant 0 : index
    %245 = vector.load %arg17[%c2_75, %c0_76] : memref<4x128xf32, #tpu.memory_space<vmem>>, vector<1x128xf32>
    %246 = vector.broadcast %245 : vector<1x128xf32> to vector<48x128xf32>
    %247 = arith.addf %244, %246 : vector<48x128xf32>
    %c0_77 = arith.constant 0 : index
    %c0_78 = arith.constant 0 : index
    %248 = vector.load %arg8[%c0_77, %c0_78] : memref<128x128xf32, #tpu.memory_space<vmem>>, vector<128x128xf32>
    %249 = arith.truncf %247 : vector<48x128xf32> to vector<48x128xbf16>
    %250 = arith.truncf %248 : vector<128x128xf32> to vector<128x128xbf16>
    %cst_79 = arith.constant dense<0.000000e+00> : vector<48x128xf32>
    %251 = tpu.matmul %249, %250, %cst_79 {dimension_numbers = #tpu.dot_dimension_numbers<[1], [0], [0], [1], [0, 0, 1, 1], [], []>} : vector<48x128xbf16>, vector<128x128xbf16>, vector<48x128xf32> -> vector<48x128xf32>
    %c0_80 = arith.constant 0 : index
    %c0_81 = arith.constant 0 : index
    %252 = vector.load %arg9[%c0_80, %c0_81] : memref<1x128xf32, #tpu.memory_space<vmem>>, vector<1x128xf32>
    %253 = vector.broadcast %252 : vector<1x128xf32> to vector<48x128xf32>
    %254 = arith.addf %251, %253 : vector<48x128xf32>
    %cst_82 = arith.constant 0.000000e+00 : f32
    %255 = vector.broadcast %cst_82 : f32 to vector<48x128xf32>
    %256 = arith.maximumf %254, %255 : vector<48x128xf32>
    %c0_83 = arith.constant 0 : index
    %c0_84 = arith.constant 0 : index
    %257 = vector.load %arg10[%c0_83, %c0_84] : memref<128x128xf32, #tpu.memory_space<vmem>>, vector<128x128xf32>
    %258 = arith.truncf %256 : vector<48x128xf32> to vector<48x128xbf16>
    %259 = arith.truncf %257 : vector<128x128xf32> to vector<128x128xbf16>
    %cst_85 = arith.constant dense<0.000000e+00> : vector<48x128xf32>
    %260 = tpu.matmul %258, %259, %cst_85 {dimension_numbers = #tpu.dot_dimension_numbers<[1], [0], [0], [1], [0, 0, 1, 1], [], []>} : vector<48x128xbf16>, vector<128x128xbf16>, vector<48x128xf32> -> vector<48x128xf32>
    %c0_86 = arith.constant 0 : index
    %c0_87 = arith.constant 0 : index
    %261 = vector.load %arg11[%c0_86, %c0_87] : memref<1x128xf32, #tpu.memory_space<vmem>>, vector<1x128xf32>
    %262 = vector.broadcast %261 : vector<1x128xf32> to vector<48x128xf32>
    %263 = arith.addf %260, %262 : vector<48x128xf32>
    %264 = arith.addf %223, %263 : vector<48x128xf32>
    %c0_88 = arith.constant 0 : index
    %c0_89 = arith.constant 0 : index
    %265 = vector.load %arg18[%c0_88, %c0_89] : memref<48x128xf32, #tpu.memory_space<vmem>>, vector<48x128xf32>
    tpu.vector_store %arg18[%c0_88, %c0_89], %264 {strides = array<i32>} : memref<48x128xf32, #tpu.memory_space<vmem>>, vector<48x128xf32>,
    %cst_90 = arith.constant 5.000000e-03 : f32
    %266 = vector.broadcast %cst_90 : f32 to vector<1x128xf32>
    %267 = arith.mulf %203, %266 : vector<1x128xf32>
    %cst_91 = arith.constant 5.000000e-03 : f32
    %268 = vector.broadcast %cst_91 : f32 to vector<1x128xf32>
    %269 = arith.mulf %209, %268 : vector<1x128xf32>
    %270 = arith.mulf %267, %267 : vector<1x128xf32>
    %271 = arith.subf %269, %270 : vector<1x128xf32>
    %cst_92 = arith.constant 0.000000e+00 : f32
    %272 = vector.broadcast %cst_92 : f32 to vector<1x128xf32>
    %273 = arith.maximumf %271, %272 : vector<1x128xf32>
    %cst_93 = arith.constant 9.99999974E-6 : f32
    %274 = vector.broadcast %cst_93 : f32 to vector<1x128xf32>
    %275 = arith.addf %273, %274 : vector<1x128xf32>
    %276 = math.rsqrt %275 : vector<1x128xf32>
    %c3 = arith.constant 3 : index
    %c0_94 = arith.constant 0 : index
    %277 = vector.load %arg16[%c3, %c0_94] : memref<4x128xf32, #tpu.memory_space<vmem>>, vector<1x128xf32>
    %c3_95 = arith.constant 3 : index
    %c0_96 = arith.constant 0 : index
    %278 = vector.load %arg17[%c3_95, %c0_96] : memref<4x128xf32, #tpu.memory_space<vmem>>, vector<1x128xf32>
    %c0_97 = arith.constant 0 : index
    %c0_98 = arith.constant 0 : index
    %279 = vector.load %arg12[%c0_97, %c0_98] : memref<128x128xf32, #tpu.memory_space<vmem>>, vector<128x128xf32>
    %280 = arith.truncf %279 : vector<128x128xf32> to vector<128x128xbf16>
    %c0_99 = arith.constant 0 : index
    %c0_100 = arith.constant 0 : index
    %281 = vector.load %arg14[%c0_99, %c0_100] : memref<128x128xf32, #tpu.memory_space<vmem>>, vector<128x128xf32>
    %282 = arith.truncf %281 : vector<128x128xf32> to vector<128x128xbf16>
    %c0_101 = arith.constant 0 : index
    %c0_102 = arith.constant 0 : index
    %283 = vector.load %arg13[%c0_101, %c0_102] : memref<1x128xf32, #tpu.memory_space<vmem>>, vector<1x128xf32>
    %c0_103 = arith.constant 0 : index
    %c0_104 = arith.constant 0 : index
    %284 = vector.load %arg15[%c0_103, %c0_104] : memref<1x128xf32, #tpu.memory_space<vmem>>, vector<1x128xf32>
    %c0_i32_105 = arith.constant 0 : i32
    %c128_i32_106 = arith.constant 128 : i32
    %285 = arith.muli %c0_i32_105, %c128_i32_106 : i32
    %286 = tpu.assume_multiple %285, 128 : i32
    %287 = arith.index_cast %286 : i32 to index
    %c0_107 = arith.constant 0 : index
    %288 = vector.load %arg19[%287, %c0_107] : memref<256x128xf32, #tpu.memory_space<vmem>>, vector<128x128xf32>
    %289 = vector.broadcast %267 : vector<1x128xf32> to vector<128x128xf32>
    %290 = arith.subf %288, %289 : vector<128x128xf32>
    %291 = vector.broadcast %276 : vector<1x128xf32> to vector<128x128xf32>
    %292 = arith.mulf %290, %291 : vector<128x128xf32>
    %293 = vector.broadcast %277 : vector<1x128xf32> to vector<128x128xf32>
    %294 = arith.mulf %292, %293 : vector<128x128xf32>
    %295 = vector.broadcast %278 : vector<1x128xf32> to vector<128x128xf32>
    %296 = arith.addf %294, %295 : vector<128x128xf32>
    %297 = arith.truncf %296 : vector<128x128xf32> to vector<128x128xbf16>
    %cst_108 = arith.constant dense<0.000000e+00> : vector<128x128xf32>
    %298 = tpu.matmul %297, %280, %cst_108 {dimension_numbers = #tpu.dot_dimension_numbers<[1], [0], [0], [1], [0, 0, 1, 1], [], []>} : vector<128x128xbf16>, vector<128x128xbf16>, vector<128x128xf32> -> vector<128x128xf32>
    %299 = vector.broadcast %283 : vector<1x128xf32> to vector<128x128xf32>
    %300 = arith.addf %298, %299 : vector<128x128xf32>
    %cst_109 = arith.constant 0.000000e+00 : f32
    %301 = vector.broadcast %cst_109 : f32 to vector<128x128xf32>
    %302 = arith.maximumf %300, %301 : vector<128x128xf32>
    %303 = arith.truncf %302 : vector<128x128xf32> to vector<128x128xbf16>
    %cst_110 = arith.constant dense<0.000000e+00> : vector<128x128xf32>
    %304 = tpu.matmul %303, %282, %cst_110 {dimension_numbers = #tpu.dot_dimension_numbers<[1], [0], [0], [1], [0, 0, 1, 1], [], []>} : vector<128x128xbf16>, vector<128x128xbf16>, vector<128x128xf32> -> vector<128x128xf32>
    %305 = vector.broadcast %284 : vector<1x128xf32> to vector<128x128xf32>
    %306 = arith.addf %304, %305 : vector<128x128xf32>
    %307 = arith.addf %288, %306 : vector<128x128xf32>
    %308 = arith.index_cast %286 : i32 to index
    %c0_111 = arith.constant 0 : index
    %309 = vector.load %arg19[%308, %c0_111] : memref<256x128xf32, #tpu.memory_space<vmem>>, vector<128x128xf32>
    tpu.vector_store %arg19[%308, %c0_111], %307 {strides = array<i32>} : memref<256x128xf32, #tpu.memory_space<vmem>>, vector<128x128xf32>,
    %c1_i32_112 = arith.constant 1 : i32
    %c128_i32_113 = arith.constant 128 : i32
    %310 = arith.muli %c1_i32_112, %c128_i32_113 : i32
    %311 = tpu.assume_multiple %310, 128 : i32
    %312 = arith.index_cast %311 : i32 to index
    %c0_114 = arith.constant 0 : index
    %313 = vector.load %arg19[%312, %c0_114] : memref<256x128xf32, #tpu.memory_space<vmem>>, vector<128x128xf32>
    %314 = vector.broadcast %267 : vector<1x128xf32> to vector<128x128xf32>
    %315 = arith.subf %313, %314 : vector<128x128xf32>
    %316 = vector.broadcast %276 : vector<1x128xf32> to vector<128x128xf32>
    %317 = arith.mulf %315, %316 : vector<128x128xf32>
    %318 = vector.broadcast %277 : vector<1x128xf32> to vector<128x128xf32>
    %319 = arith.mulf %317, %318 : vector<128x128xf32>
    %320 = vector.broadcast %278 : vector<1x128xf32> to vector<128x128xf32>
    %321 = arith.addf %319, %320 : vector<128x128xf32>
    %322 = arith.truncf %321 : vector<128x128xf32> to vector<128x128xbf16>
    %cst_115 = arith.constant dense<0.000000e+00> : vector<128x128xf32>
    %323 = tpu.matmul %322, %280, %cst_115 {dimension_numbers = #tpu.dot_dimension_numbers<[1], [0], [0], [1], [0, 0, 1, 1], [], []>} : vector<128x128xbf16>, vector<128x128xbf16>, vector<128x128xf32> -> vector<128x128xf32>
    %324 = vector.broadcast %283 : vector<1x128xf32> to vector<128x128xf32>
    %325 = arith.addf %323, %324 : vector<128x128xf32>
    %cst_116 = arith.constant 0.000000e+00 : f32
    %326 = vector.broadcast %cst_116 : f32 to vector<128x128xf32>
    %327 = arith.maximumf %325, %326 : vector<128x128xf32>
    %328 = arith.truncf %327 : vector<128x128xf32> to vector<128x128xbf16>
    %cst_117 = arith.constant dense<0.000000e+00> : vector<128x128xf32>
    %329 = tpu.matmul %328, %282, %cst_117 {dimension_numbers = #tpu.dot_dimension_numbers<[1], [0], [0], [1], [0, 0, 1, 1], [], []>} : vector<128x128xbf16>, vector<128x128xbf16>, vector<128x128xf32> -> vector<128x128xf32>
    %330 = vector.broadcast %284 : vector<1x128xf32> to vector<128x128xf32>
    %331 = arith.addf %329, %330 : vector<128x128xf32>
    %332 = arith.addf %313, %331 : vector<128x128xf32>
    %333 = arith.index_cast %311 : i32 to index
    %c0_118 = arith.constant 0 : index
    %334 = vector.load %arg19[%333, %c0_118] : memref<256x128xf32, #tpu.memory_space<vmem>>, vector<128x128xf32>
    tpu.vector_store %arg19[%333, %c0_118], %332 {strides = array<i32>} : memref<256x128xf32, #tpu.memory_space<vmem>>, vector<128x128xf32>,
    %c2_i32_119 = arith.constant 2 : i32
    return
  }
}

</mosaic_0001>

<llo_original>
// kernel: tpu_custom_call.1
$region0: #{tpu_custom_call.1}
  #allocation0 [shape = 'u32[]', space=smem, size = 0x4, offset = 0x4, fixed_abs, tag = 'smem constant byte address 0x4 - core index']
  #allocation1 [shape = 'u32[144,128]{1,0:T(1,128)}', space=vmem, size = 0x12000, scoped, tag = 'internal scratch']
  %s0 = inlined_call_operand.hbm [shape: f32[48,128], index: 0, kind: input, shape index: {}]
  %s1 = inlined_call_operand.hbm [shape: f32[256,128], index: 1, kind: input, shape index: {}]
  %s2 = inlined_call_operand.hbm [shape: s32[2,128], index: 2, kind: input, shape index: {}]
  %s3 = inlined_call_operand.hbm [shape: s32[2,128], index: 3, kind: input, shape index: {}]
  %s4 = inlined_call_operand.hbm [shape: f32[128,512], index: 4, kind: input, shape index: {}]
  %s5 = inlined_call_operand.vmem [shape: f32[1,512], index: 5, kind: input, shape index: {}]
  %s6 = inlined_call_operand.hbm [shape: f32[128,128], index: 6, kind: input, shape index: {}]
  %s7 = inlined_call_operand.hbm [shape: f32[1,128], index: 7, kind: input, shape index: {}]
  %s8 = inlined_call_operand.hbm [shape: f32[128,128], index: 8, kind: input, shape index: {}]
  %s9 = inlined_call_operand.vmem [shape: f32[1,128], index: 9, kind: input, shape index: {}]
  %s10 = inlined_call_operand.hbm [shape: f32[128,128], index: 10, kind: input, shape index: {}]
  %s11 = inlined_call_operand.vmem [shape: f32[1,128], index: 11, kind: input, shape index: {}]
  %s12 = inlined_call_operand.hbm [shape: f32[128,128], index: 12, kind: input, shape index: {}]
  %s13 = inlined_call_operand.vmem [shape: f32[1,128], index: 13, kind: input, shape index: {}]
  %s14 = inlined_call_operand.hbm [shape: f32[128,128], index: 14, kind: input, shape index: {}]
  %s15 = inlined_call_operand.vmem [shape: f32[1,128], index: 15, kind: input, shape index: {}]
  %s16 = inlined_call_operand.vmem [shape: f32[4,128], index: 16, kind: input, shape index: {}]
  %s17 = inlined_call_operand.vmem [shape: f32[4,128], index: 17, kind: input, shape index: {}]
  %s18 = inlined_call_operand.hbm [shape: f32[48,128], index: 18, kind: output, shape index: {0}]
  %s19 = inlined_call_operand.hbm [shape: f32[256,128], index: 19, kind: output, shape index: {1}]
  %20 = xla_tuple %s18, %s19
  %s21 = sld [smem:[#allocation0]]
  $region134: #{tpu_custom_call.1} parent=0
    _
  %s23 = ssub.s32 1, %s21
  %s24 = scalar_select 0, %s23, %s21
  $region1: #{tpu_custom_call.1} parent=0
    #allocation2 [shape = 'u8[24576]{0}', space=vmem, size = 0x6000, scoped, tag = 'input window, operand 0, single buffered']
    #allocation3 [shape = 's32[1]{0}', space=sflag, size = 0x4, scoped, tag = 'scoped memory for tpu_custom_call.1']
    #allocation4 [shape = 's32[1]{0}', space=sflag, size = 0x4, scoped, tag = 'scoped memory for tpu_custom_call.1']
    #allocation5 [shape = 'u8[131072]{0}', space=vmem, size = 0x20000, scoped, tag = 'input window, operand 1, single buffered']
    #allocation6 [shape = 's32[1]{0}', space=sflag, size = 0x4, scoped, tag = 'scoped memory for tpu_custom_call.1']
    #allocation7 [shape = 'u8[1024]{0}', space=vmem, size = 0x400, scoped, tag = 'input window, operand 2, single buffered']
    #allocation8 [shape = 'u8[1024]{0}', space=vmem, size = 0x400, scoped, tag = 'input window, operand 3, single buffered']
    #allocation9 [shape = 's32[1]{0}', space=sflag, size = 0x4, scoped, tag = 'scoped memory for tpu_custom_call.1']
    #allocation10 [shape = 'u8[262144]{0}', space=vmem, size = 0x40000, scoped, tag = 'input window, operand 4, single buffered']
    #allocation11 [shape = 'u8[65536]{0}', space=vmem, size = 0x10000, scoped, tag = 'input window, operand 6, single buffered']
    #allocation12 [shape = 's32[1]{0}', space=sflag, size = 0x4, scoped, tag = 'scoped memory for tpu_custom_call.1']
    #allocation13 [shape = 'u8[512]{0}', space=vmem, size = 0x400, scoped, tag = 'input window, operand 7, single buffered']
    #allocation14 [shape = 'u8[65536]{0}', space=vmem, size = 0x10000, scoped, tag = 'input window, operand 8, single buffered']
    #allocation15 [shape = 's32[1]{0}', space=sflag, size = 0x4, scoped, tag = 'scoped memory for tpu_custom_call.1']
    #allocation16 [shape = 'u8[65536]{0}', space=vmem, size = 0x10000, scoped, tag = 'input window, operand 10, single buffered']
    #allocation17 [shape = 'u8[65536]{0}', space=vmem, size = 0x10000, scoped, tag = 'input window, operand 12, single buffered']
    #allocation18 [shape = 's32[1]{0}', space=sflag, size = 0x4, scoped, tag = 'scoped memory for tpu_custom_call.1']
    #allocation19 [shape = 'u8[65536]{0}', space=vmem, size = 0x10000, scoped, tag = 'input window, operand 14, single buffered']
    #allocation20 [shape = 'u8[24576]{0}', space=vmem, size = 0x6000, scoped, tag = 'output window, operand 0, single buffered']
    #allocation21 [shape = 'u8[131072]{0}', space=vmem, size = 0x20000, scoped, tag = 'output window, operand 1, single buffered']
    #allocation22 [shape = 's32[1]{0}', space=sflag, size = 0x4, scoped, tag = 'scoped memory for tpu_custom_call.1']
    %25 = vsyncpa [#allocation3], 0
    %26 = vsyncpa [#allocation6], 0
    %27 = vsyncpa [#allocation9], 0
    %28 = vsyncpa [#allocation12], 0
    %29 = vsyncpa [#allocation15], 0
    %30 = vsyncpa [#allocation18], 0
    %31 = vsyncpa [#allocation4], 0
    %32 = vsyncpa [#allocation22], 0
    // Predicated region
    $region2: #{tpu_custom_call.1} parent=1 // pred_check
      _
    $region3: #{tpu_custom_call.1} parent=1 // pred_check_branch
      %34 = sbr.rel (0) target = $region5
    $region4: #{tpu_custom_call.1} parent=1 // pred_region
      %s36 = ssub.s32 768, 768
      %37 = vsyncadd [#allocation3], %s36
      %s38 = sshll.u32 [#allocation2], 4
      %s39 = int_to_ptr.vmem [resolvable:$true] %s38
      %44 = dma.hbm_to_vmem [thread:$0]  %s0, 768, %s39, [#allocation3], 128, 128, 8
    $region5: #{tpu_custom_call.1} parent=1 // pred_fallthru
      _
    // Predicated region
    $region6: #{tpu_custom_call.1} parent=1 // pred_check
      _
    $region7: #{tpu_custom_call.1} parent=1 // pred_check_branch
      %46 = sbr.rel (0) target = $region9
    $region8: #{tpu_custom_call.1} parent=1 // pred_region
      %s48 = ssub.s32 4096, 4096
      %49 = vsyncadd [#allocation6], %s48
      %s50 = sshll.u32 [#allocation5], 4
      %s51 = int_to_ptr.vmem [resolvable:$true] %s50
      %56 = dma.hbm_to_vmem [thread:$0]  %s1, 4096, %s51, [#allocation6], 128, 128, 8
    $region9: #{tpu_custom_call.1} parent=1 // pred_fallthru
      _
    // Predicated region
    $region10: #{tpu_custom_call.1} parent=1 // pred_check
      _
    $region11: #{tpu_custom_call.1} parent=1 // pred_check_branch
      %58 = sbr.rel (0) target = $region13
    $region12: #{tpu_custom_call.1} parent=1 // pred_region
      %s60 = ssub.s32 32, 32
      %61 = vsyncadd [#allocation6], %s60
      %s63 = sshll.u32 [#allocation7], 4
      %s64 = int_to_ptr.vmem [resolvable:$true] %s63
      %66 = dma.hbm_to_vmem [thread:$0]  %s2, 32, %s64, [#allocation6]
    $region13: #{tpu_custom_call.1} parent=1 // pred_fallthru
      _
    // Predicated region
    $region14: #{tpu_custom_call.1} parent=1 // pred_check
      _
    $region15: #{tpu_custom_call.1} parent=1 // pred_check_branch
      %68 = sbr.rel (0) target = $region17
    $region16: #{tpu_custom_call.1} parent=1 // pred_region
      %s70 = ssub.s32 32, 32
      %71 = vsyncadd [#allocation9], %s70
      %s73 = sshll.u32 [#allocation8], 4
      %s74 = int_to_ptr.vmem [resolvable:$true] %s73
      %76 = dma.hbm_to_vmem [thread:$0]  %s3, 32, %s74, [#allocation9]
    $region17: #{tpu_custom_call.1} parent=1 // pred_fallthru
      _
    // Predicated region
    $region18: #{tpu_custom_call.1} parent=1 // pred_check
      _
    $region19: #{tpu_custom_call.1} parent=1 // pred_check_branch
      %78 = sbr.rel (0) target = $region21
    $region20: #{tpu_custom_call.1} parent=1 // pred_region
      %s80 = ssub.s32 8192, 8192
      %81 = vsyncadd [#allocation9], %s80
      %s82 = sshll.u32 [#allocation10], 4
      %s83 = int_to_ptr.vmem [resolvable:$true] %s82
      %88 = dma.hbm_to_vmem [thread:$0]  %s4, 8192, %s83, [#allocation9], 512, 512, 32
    $region21: #{tpu_custom_call.1} parent=1 // pred_fallthru
      _
    // Predicated region
    $region22: #{tpu_custom_call.1} parent=1 // pred_check
      _
    $region23: #{tpu_custom_call.1} parent=1 // pred_check_branch
      %90 = sbr.rel (0) target = $region25
    $region24: #{tpu_custom_call.1} parent=1 // pred_region
      _
    $region25: #{tpu_custom_call.1} parent=1 // pred_fallthru
      _
    // Predicated region
    $region26: #{tpu_custom_call.1} parent=1 // pred_check
      _
    $region27: #{tpu_custom_call.1} parent=1 // pred_check_branch
      %92 = sbr.rel (0) target = $region29
    $region28: #{tpu_custom_call.1} parent=1 // pred_region
      %s94 = ssub.s32 2048, 2048
      %95 = vsyncadd [#allocation12], %s94
      %s96 = sshll.u32 [#allocation11], 4
      %s97 = int_to_ptr.vmem [resolvable:$true] %s96
      %102 = dma.hbm_to_vmem [thread:$0]  %s6, 2048, %s97, [#allocation12], 128, 128, 8
    $region29: #{tpu_custom_call.1} parent=1 // pred_fallthru
      _
    // Predicated region
    $region30: #{tpu_custom_call.1} parent=1 // pred_check
      _
    $region31: #{tpu_custom_call.1} parent=1 // pred_check_branch
      %104 = sbr.rel (0) target = $region33
    $region32: #{tpu_custom_call.1} parent=1 // pred_region
      %s106 = ssub.s32 16, 16
      %107 = vsyncadd [#allocation12], %s106
      %s109 = sshll.u32 [#allocation13], 4
      %s110 = int_to_ptr.vmem [resolvable:$true] %s109
      %112 = dma.hbm_to_vmem [thread:$0]  %s7, 16, %s110, [#allocation12]
    $region33: #{tpu_custom_call.1} parent=1 // pred_fallthru
      _
    // Predicated region
    $region34: #{tpu_custom_call.1} parent=1 // pred_check
      _
    $region35: #{tpu_custom_call.1} parent=1 // pred_check_branch
      %114 = sbr.rel (0) target = $region37
    $region36: #{tpu_custom_call.1} parent=1 // pred_region
      %s116 = ssub.s32 2048, 2048
      %117 = vsyncadd [#allocation15], %s116
      %s118 = sshll.u32 [#allocation14], 4
      %s119 = int_to_ptr.vmem [resolvable:$true] %s118
      %124 = dma.hbm_to_vmem [thread:$0]  %s8, 2048, %s119, [#allocation15], 128, 128, 8
    $region37: #{tpu_custom_call.1} parent=1 // pred_fallthru
      _
    // Predicated region
    $region38: #{tpu_custom_call.1} parent=1 // pred_check
      _
    $region39: #{tpu_custom_call.1} parent=1 // pred_check_branch
      %126 = sbr.rel (0) target = $region41
    $region40: #{tpu_custom_call.1} parent=1 // pred_region
      _
    $region41: #{tpu_custom_call.1} parent=1 // pred_fallthru
      _
    // Predicated region
    $region42: #{tpu_custom_call.1} parent=1 // pred_check
      _
    $region43: #{tpu_custom_call.1} parent=1 // pred_check_branch
      %128 = sbr.rel (0) target = $region45
    $region44: #{tpu_custom_call.1} parent=1 // pred_region
      %s130 = ssub.s32 2048, 2048
      %131 = vsyncadd [#allocation15], %s130
      %s132 = sshll.u32 [#allocation16], 4
      %s133 = int_to_ptr.vmem [resolvable:$true] %s132
      %138 = dma.hbm_to_vmem [thread:$0]  %s10, 2048, %s133, [#allocation15], 128, 128, 8
    $region45: #{tpu_custom_call.1} parent=1 // pred_fallthru
      _
    // Predicated region
    $region46: #{tpu_custom_call.1} parent=1 // pred_check
      _
    $region47: #{tpu_custom_call.1} parent=1 // pred_check_branch
      %140 = sbr.rel (0) target = $region49
    $region48: #{tpu_custom_call.1} parent=1 // pred_region
      _
    $region49: #{tpu_custom_call.1} parent=1 // pred_fallthru
      _
    // Predicated region
    $region50: #{tpu_custom_call.1} parent=1 // pred_check
      _
    $region51: #{tpu_custom_call.1} parent=1 // pred_check_branch
      %142 = sbr.rel (0) target = $region53
    $region52: #{tpu_custom_call.1} parent=1 // pred_region
      %s144 = ssub.s32 2048, 2048
      %145 = vsyncadd [#allocation18], %s144
      %s146 = sshll.u32 [#allocation17], 4
      %s147 = int_to_ptr.vmem [resolvable:$true] %s146
      %152 = dma.hbm_to_vmem [thread:$0]  %s12, 2048, %s147, [#allocation18], 128, 128, 8
    $region53: #{tpu_custom_call.1} parent=1 // pred_fallthru
      _
    // Predicated region
    $region54: #{tpu_custom_call.1} parent=1 // pred_check
      _
    $region55: #{tpu_custom_call.1} parent=1 // pred_check_branch
      %154 = sbr.rel (0) target = $region57
    $region56: #{tpu_custom_call.1} parent=1 // pred_region
      _
    $region57: #{tpu_custom_call.1} parent=1 // pred_fallthru
      _
    // Predicated region
    $region58: #{tpu_custom_call.1} parent=1 // pred_check
      _
    $region59: #{tpu_custom_call.1} parent=1 // pred_check_branch
      %156 = sbr.rel (0) target = $region61
    $region60: #{tpu_custom_call.1} parent=1 // pred_region
      %s158 = ssub.s32 2048, 2048
      %159 = vsyncadd [#allocation18], %s158
      %s160 = sshll.u32 [#allocation19], 4
      %s161 = int_to_ptr.vmem [resolvable:$true] %s160
      %166 = dma.hbm_to_vmem [thread:$0]  %s14, 2048, %s161, [#allocation18], 128, 128, 8
    $region61: #{tpu_custom_call.1} parent=1 // pred_fallthru
      _
    // Predicated region
    $region62: #{tpu_custom_call.1} parent=1 // pred_check
      _
    $region63: #{tpu_custom_call.1} parent=1 // pred_check_branch
      %168 = sbr.rel (0) target = $region65
    $region64: #{tpu_custom_call.1} parent=1 // pred_region
      _
    $region65: #{tpu_custom_call.1} parent=1 // pred_fallthru
      _
    // Predicated region
    $region66: #{tpu_custom_call.1} parent=1 // pred_check
      _
    $region67: #{tpu_custom_call.1} parent=1 // pred_check_branch
      %170 = sbr.rel (0) target = $region69
    $region68: #{tpu_custom_call.1} parent=1 // pred_region
      _
    $region69: #{tpu_custom_call.1} parent=1 // pred_fallthru
      _
    // Predicated region
    $region70: #{tpu_custom_call.1} parent=1 // pred_check
      _
    $region71: #{tpu_custom_call.1} parent=1 // pred_check_branch
      %172 = sbr.rel (0) target = $region73
    $region72: #{tpu_custom_call.1} parent=1 // pred_region
      _
    $region73: #{tpu_custom_call.1} parent=1 // pred_fallthru
      _
    // Predicated region
    $region74: #{tpu_custom_call.1} parent=1 // pred_check
      _
    $region75: #{tpu_custom_call.1} parent=1 // pred_check_branch
      %174 = sbr.rel (0) target = $region77
    $region76: #{tpu_custom_call.1} parent=1 // pred_region
      %175 = dma.done [#allocation3], 768
    $region77: #{tpu_custom_call.1} parent=1 // pred_fallthru
      _
    // Predicated region
    $region78: #{tpu_custom_call.1} parent=1 // pred_check
      _
    $region79: #{tpu_custom_call.1} parent=1 // pred_check_branch
      %177 = sbr.rel (0) target = $region81
    $region80: #{tpu_custom_call.1} parent=1 // pred_region
      %178 = dma.done [#allocation6], 4096
    $region81: #{tpu_custom_call.1} parent=1 // pred_fallthru
      _
    // Predicated region
    $region82: #{tpu_custom_call.1} parent=1 // pred_check
      _
    $region83: #{tpu_custom_call.1} parent=1 // pred_check_branch
      %180 = sbr.rel (0) target = $region85
    $region84: #{tpu_custom_call.1} parent=1 // pred_region
      %181 = dma.done [#allocation6], 32
    $region85: #{tpu_custom_call.1} parent=1 // pred_fallthru
      _
    // Predicated region
    $region86: #{tpu_custom_call.1} parent=1 // pred_check
      _
    $region87: #{tpu_custom_call.1} parent=1 // pred_check_branch
      %183 = sbr.rel (0) target = $region89
    $region88: #{tpu_custom_call.1} parent=1 // pred_region
      %184 = dma.done [#allocation9], 32
    $region89: #{tpu_custom_call.1} parent=1 // pred_fallthru
      _
    // Predicated region
    $region90: #{tpu_custom_call.1} parent=1 // pred_check
      _
    $region91: #{tpu_custom_call.1} parent=1 // pred_check_branch
      %186 = sbr.rel (0) target = $region93
    $region92: #{tpu_custom_call.1} parent=1 // pred_region
      %187 = dma.done [#allocation9], 8192
    $region93: #{tpu_custom_call.1} parent=1 // pred_fallthru
      _
    // Predicated region
    $region94: #{tpu_custom_call.1} parent=1 // pred_check
      _
    $region95: #{tpu_custom_call.1} parent=1 // pred_check_branch
      %189 = sbr.rel (0) target = $region97
    $region96: #{tpu_custom_call.1} parent=1 // pred_region
      %190 = dma.done [#allocation12], 2048
    $region97: #{tpu_custom_call.1} parent=1 // pred_fallthru
      _
    // Predicated region
    $region98: #{tpu_custom_call.1} parent=1 // pred_check
      _
    $region99: #{tpu_custom_call.1} parent=1 // pred_check_branch
      %192 = sbr.rel (0) target = $region101
    $region100: #{tpu_custom_call.1} parent=1 // pred_region
      %193 = dma.done [#allocation12], 16
    $region101: #{tpu_custom_call.1} parent=1 // pred_fallthru
      _
    // Predicated region
    $region102: #{tpu_custom_call.1} parent=1 // pred_check
      _
    $region103: #{tpu_custom_call.1} parent=1 // pred_check_branch
      %195 = sbr.rel (0) target = $region105
    $region104: #{tpu_custom_call.1} parent=1 // pred_region
      %196 = dma.done [#allocation15], 2048
    $region105: #{tpu_custom_call.1} parent=1 // pred_fallthru
      _
    // Predicated region
    $region106: #{tpu_custom_call.1} parent=1 // pred_check
      _
    $region107: #{tpu_custom_call.1} parent=1 // pred_check_branch
      %198 = sbr.rel (0) target = $region109
    $region108: #{tpu_custom_call.1} parent=1 // pred_region
      %199 = dma.done [#allocation15], 2048
    $region109: #{tpu_custom_call.1} parent=1 // pred_fallthru
      _
    // Predicated region
    $region110: #{tpu_custom_call.1} parent=1 // pred_check
      _
    $region111: #{tpu_custom_call.1} parent=1 // pred_check_branch
      %201 = sbr.rel (0) target = $region113
    $region112: #{tpu_custom_call.1} parent=1 // pred_region
      %202 = dma.done [#allocation18], 2048
    $region113: #{tpu_custom_call.1} parent=1 // pred_fallthru
      _
    // Predicated region
    $region114: #{tpu_custom_call.1} parent=1 // pred_check
      _
    $region115: #{tpu_custom_call.1} parent=1 // pred_check_branch
      %204 = sbr.rel (0) target = $region117
    $region116: #{tpu_custom_call.1} parent=1 // pred_region
      %205 = dma.done [#allocation18], 2048
    $region117: #{tpu_custom_call.1} parent=1 // pred_fallthru
      _
    %v207 = vld [vmem:[#allocation2] sm:$0xff]
    %v208 = vld [vmem:[#allocation2 + $0x8] sm:$0xff]
    %v209 = vld [vmem:[#allocation2 + $0x10] sm:$0xff]
    %v210 = vld [vmem:[#allocation2 + $0x18] sm:$0xff]
    %v211 = vld [vmem:[#allocation2 + $0x20] sm:$0xff]
    %v212 = vld [vmem:[#allocation2 + $0x28] sm:$0xff]
    %v213 = vadd.f32 %v207, %v208
    %v214 = vadd.f32 %v213, %v209
    %v215 = vadd.f32 %v214, %v210
    %v216 = vadd.f32 %v215, %v211
    %v217 = vadd.f32 %v216, %v212
    %v218 = vrot.slane %v217, 4
    %v219 = vadd.f32 %v217, %v218
    %v220 = vrot.slane %v219, 2
    %v221 = vadd.f32 %v219, %v220
    %v222 = vrot.slane %v221, 1
    %v223 = vadd.f32 %v221, %v222
    %v224 = vrcp.pop 48.0
    %v225 = vmul.f32 %v223, %v224
    %v226 = vsub.f32 %v207, %v225
    %v227 = vsub.f32 %v208, %v225
    %v228 = vsub.f32 %v209, %v225
    %v229 = vsub.f32 %v210, %v225
    %v230 = vsub.f32 %v211, %v225
    %v231 = vsub.f32 %v212, %v225
    %v232 = vmul.f32 %v226, %v226
    %v233 = vmul.f32 %v227, %v227
    %v234 = vmul.f32 %v228, %v228
    %v235 = vmul.f32 %v229, %v229
    %v236 = vmul.f32 %v230, %v230
    %v237 = vmul.f32 %v231, %v231
    %v238 = vadd.f32 %v232, %v233
    %v239 = vadd.f32 %v238, %v234
    %v240 = vadd.f32 %v239, %v235
    %v241 = vadd.f32 %v240, %v236
    %v242 = vadd.f32 %v241, %v237
    %v243 = vrot.slane %v242, 4
    %v244 = vadd.f32 %v242, %v243
    %v245 = vrot.slane %v244, 2
    %v246 = vadd.f32 %v244, %v245
    %v247 = vrot.slane %v246, 1
    %v248 = vadd.f32 %v246, %v247
    %v249 = vmul.f32 %v248, %v224
    %v250 = vadd.f32 %v249, 1e-05
    %v251 = vrsqrt.pop %v250
    %v252 = vmul.f32 %v226, %v251
    %v253 = vmul.f32 %v227, %v251
    %v254 = vmul.f32 %v228, %v251
    %v255 = vmul.f32 %v229, %v251
    %v256 = vmul.f32 %v230, %v251
    %v257 = vmul.f32 %v231, %v251
    %v258 = vld [vmem:[%s16] sm:$0x1]
    %v259 = vlaneseq
    %v260 = vshrl.u32 %v259, 7
    %v261 = vsub.s32 0, %v260
    %v262 = vrot.slane %v258, %v261
    %v263 = vmul.f32 %v252, %v262
    %v264 = vmul.f32 %v253, %v262
    %v265 = vmul.f32 %v254, %v262
    %v266 = vmul.f32 %v255, %v262
    %v267 = vmul.f32 %v256, %v262
    %v268 = vmul.f32 %v257, %v262
    %v269 = vld [vmem:[%s17] sm:$0x1]
    %v270 = vlaneseq
    %v271 = vshrl.u32 %v270, 7
    %v272 = vsub.s32 0, %v271
    %v273 = vrot.slane %v269, %v272
    %v274 = vadd.f32 %v263, %v273
    %v275 = vadd.f32 %v264, %v273
    %v276 = vadd.f32 %v265, %v273
    %v277 = vadd.f32 %v266, %v273
    %v278 = vadd.f32 %v267, %v273
    %v279 = vadd.f32 %v268, %v273
    %v280 = vld [vmem:[#allocation10] sm:$0xff]
    %v281 = vld [vmem:[#allocation10 + $0x8] sm:$0xff]
    %v282 = vld [vmem:[#allocation10 + $0x10] sm:$0xff]
    %v283 = vld [vmem:[#allocation10 + $0x18] sm:$0xff]
    %v284 = vld [vmem:[#allocation10 + $0x20] sm:$0xff]
    %v285 = vld [vmem:[#allocation10 + $0x28] sm:$0xff]
    %v286 = vld [vmem:[#allocation10 + $0x30] sm:$0xff]
    %v287 = vld [vmem:[#allocation10 + $0x38] sm:$0xff]
    %v288 = vld [vmem:[#allocation10 + $0x40] sm:$0xff]
    %v289 = vld [vmem:[#allocation10 + $0x48] sm:$0xff]
    %v290 = vld [vmem:[#allocation10 + $0x50] sm:$0xff]
    %v291 = vld [vmem:[#allocation10 + $0x58] sm:$0xff]
    %v292 = vld [vmem:[#allocation10 + $0x60] sm:$0xff]
    %v293 = vld [vmem:[#allocation10 + $0x68] sm:$0xff]
    %v294 = vld [vmem:[#allocation10 + $0x70] sm:$0xff]
    %v295 = vld [vmem:[#allocation10 + $0x78] sm:$0xff]
    %v296 = vld [vmem:[#allocation10 + $0x80] sm:$0xff]
    %v297 = vld [vmem:[#allocation10 + $0x88] sm:$0xff]
    %v298 = vld [vmem:[#allocation10 + $0x90] sm:$0xff]
    %v299 = vld [vmem:[#allocation10 + $0x98] sm:$0xff]
    %v300 = vld [vmem:[#allocation10 + $0xa0] sm:$0xff]
    %v301 = vld [vmem:[#allocation10 + $0xa8] sm:$0xff]
    %v302 = vld [vmem:[#allocation10 + $0xb0] sm:$0xff]
    %v303 = vld [vmem:[#allocation10 + $0xb8] sm:$0xff]
    %v304 = vld [vmem:[#allocation10 + $0xc0] sm:$0xff]
    %v305 = vld [vmem:[#allocation10 + $0xc8] sm:$0xff]
    %v306 = vld [vmem:[#allocation10 + $0xd0] sm:$0xff]
    %v307 = vld [vmem:[#allocation10 + $0xd8] sm:$0xff]
    %v308 = vld [vmem:[#allocation10 + $0xe0] sm:$0xff]
    %v309 = vld [vmem:[#allocation10 + $0xe8] sm:$0xff]
    %v310 = vld [vmem:[#allocation10 + $0xf0] sm:$0xff]
    %v311 = vld [vmem:[#allocation10 + $0xf8] sm:$0xff]
    %v312 = vld [vmem:[#allocation10 + $0x100] sm:$0xff]
    %v313 = vld [vmem:[#allocation10 + $0x108] sm:$0xff]
    %v314 = vld [vmem:[#allocation10 + $0x110] sm:$0xff]
    %v315 = vld [vmem:[#allocation10 + $0x118] sm:$0xff]
    %v316 = vld [vmem:[#allocation10 + $0x120] sm:$0xff]
    %v317 = vld [vmem:[#allocation10 + $0x128] sm:$0xff]
    %v318 = vld [vmem:[#allocation10 + $0x130] sm:$0xff]
    %v319 = vld [vmem:[#allocation10 + $0x138] sm:$0xff]
    %v320 = vld [vmem:[#allocation10 + $0x140] sm:$0xff]
    %v321 = vld [vmem:[#allocation10 + $0x148] sm:$0xff]
    %v322 = vld [vmem:[#allocation10 + $0x150] sm:$0xff]
    %v323 = vld [vmem:[#allocation10 + $0x158] sm:$0xff]
    %v324 = vld [vmem:[#allocation10 + $0x160] sm:$0xff]
    %v325 = vld [vmem:[#allocation10 + $0x168] sm:$0xff]
    %v326 = vld [vmem:[#allocation10 + $0x170] sm:$0xff]
    %v327 = vld [vmem:[#allocation10 + $0x178] sm:$0xff]
    %v328 = vld [vmem:[#allocation10 + $0x180] sm:$0xff]
    %v329 = vld [vmem:[#allocation10 + $0x188] sm:$0xff]
    %v330 = vld [vmem:[#allocation10 + $0x190] sm:$0xff]
    %v331 = vld [vmem:[#allocation10 + $0x198] sm:$0xff]
    %v332 = vld [vmem:[#allocation10 + $0x1a0] sm:$0xff]
    %v333 = vld [vmem:[#allocation10 + $0x1a8] sm:$0xff]
    %v334 = vld [vmem:[#allocation10 + $0x1b0] sm:$0xff]
    %v335 = vld [vmem:[#allocation10 + $0x1b8] sm:$0xff]
    %v336 = vld [vmem:[#allocation10 + $0x1c0] sm:$0xff]
    %v337 = vld [vmem:[#allocation10 + $0x1c8] sm:$0xff]
    %v338 = vld [vmem:[#allocation10 + $0x1d0] sm:$0xff]
    %v339 = vld [vmem:[#allocation10 + $0x1d8] sm:$0xff]
    %v340 = vld [vmem:[#allocation10 + $0x1e0] sm:$0xff]
    %v341 = vld [vmem:[#allocation10 + $0x1e8] sm:$0xff]
    %v342 = vld [vmem:[#allocation10 + $0x1f0] sm:$0xff]
    %v343 = vld [vmem:[#allocation10 + $0x1f8] sm:$0xff]
    %v344 = vpack.c.bf16 %v275, %v274
    %v345 = vpack.c.bf16 %v277, %v276
    %v346 = vpack.c.bf16 %v279, %v278
    %v347 = vpack.c.bf16 %v284, %v280
    %v348 = vpack.c.bf16 %v285, %v281
    %v349 = vpack.c.bf16 %v286, %v282
    %v350 = vpack.c.bf16 %v287, %v283
    %v351 = vpack.c.bf16 %v292, %v288
    %v352 = vpack.c.bf16 %v293, %v289
    %v353 = vpack.c.bf16 %v294, %v290
    %v354 = vpack.c.bf16 %v295, %v291
    %v355 = vpack.c.bf16 %v300, %v296
    %v356 = vpack.c.bf16 %v301, %v297
    %v357 = vpack.c.bf16 %v302, %v298
    %v358 = vpack.c.bf16 %v303, %v299
    %v359 = vpack.c.bf16 %v308, %v304
    %v360 = vpack.c.bf16 %v309, %v305
    %v361 = vpack.c.bf16 %v310, %v306
    %v362 = vpack.c.bf16 %v311, %v307
    %v363 = vpack.c.bf16 %v316, %v312
    %v364 = vpack.c.bf16 %v317, %v313
    %v365 = vpack.c.bf16 %v318, %v314
    %v366 = vpack.c.bf16 %v319, %v315
    %v367 = vpack.c.bf16 %v324, %v320
    %v368 = vpack.c.bf16 %v325, %v321
    %v369 = vpack.c.bf16 %v326, %v322
    %v370 = vpack.c.bf16 %v327, %v323
    %v371 = vpack.c.bf16 %v332, %v328
    %v372 = vpack.c.bf16 %v333, %v329
    %v373 = vpack.c.bf16 %v334, %v330
    %v374 = vpack.c.bf16 %v335, %v331
    %v375 = vpack.c.bf16 %v340, %v336
    %v376 = vpack.c.bf16 %v341, %v337
    %v377 = vpack.c.bf16 %v342, %v338
    %v378 = vpack.c.bf16 %v343, %v339
    %v379 = vld [vmem:[%s5] sm:$0xf]
    %v381 = vlaneseq
    %v382 = vshrl.u32 %v381, 7
    %v383 = vsub.s32 0, %v382
    %v384 = vrot.slane %v379, %v383
    %v385 = vlaneseq
    %v386 = vshrl.u32 %v385, 7
    %v387 = vsub.s32 1, %v386
    %v388 = vrot.slane %v379, %v387
    %v389 = vlaneseq
    %v390 = vshrl.u32 %v389, 7
    %v391 = vsub.s32 2, %v390
    %v392 = vrot.slane %v379, %v391
    %v393 = vlaneseq
    %v394 = vshrl.u32 %v393, 7
    %v395 = vsub.s32 3, %v394
    %v396 = vrot.slane %v379, %v395
    %401 = vmatprep.subr.bf16.mxu0 %v376
    %402 = vmatpush1.bf16.msra.mxu0 %v375
    %403 = vmatprep.subr.bf16.mxu0 %v372
    %404 = vmatpush1.bf16.msra.mxu0 %v371
    %405 = vmatprep.subr.bf16.mxu0 %v368
    %406 = vmatpush1.bf16.msra.mxu0 %v367
    %407 = vmatprep.subr.bf16.mxu0 %v364
    %408 = vmatpush1.bf16.msra.mxu0 %v363
    %409 = vmatprep.subr.bf16.mxu0 %v360
    %410 = vmatpush1.bf16.msra.mxu0 %v359
    %411 = vmatprep.subr.bf16.mxu0 %v356
    %412 = vmatpush1.bf16.msra.mxu0 %v355
    %413 = vmatprep.subr.bf16.mxu0 %v352
    %414 = vmatpush1.bf16.msra.mxu0 %v351
    %415 = vmatprep.subr.bf16.mxu0 %v348
    %416 = vmatpush1.bf16.msra.mxu0 %v347
    %417 = vmatprep.subr.bf16.mxu0 0
    %418 = vmatpush2.bf16.msra.mxu0 0
    %419 = vmatprep.subr.bf16.mxu0 0
    %420 = vmatpush2.bf16.msra.mxu0 0
    %421 = vmatprep.subr.bf16.mxu0 0
    %422 = vmatpush2.bf16.msra.mxu0 0
    %423 = vmatprep.subr.bf16.mxu0 0
    %424 = vmatpush2.bf16.msra.mxu0 0
    %425 = vmatprep.subr.bf16.mxu0 0
    %426 = vmatpush2.bf16.msra.mxu0 0
    %427 = vmatprep.subr.bf16.mxu0 0
    %428 = vmatpush2.bf16.msra.mxu0 0
    %429 = vmatprep.subr.bf16.mxu0 0
    %430 = vmatpush2.bf16.msra.mxu0 0
    %431 = vmatprep.subr.bf16.mxu0 0
    %432 = vmatpush2.bf16.msra.mxu0 0
    %433 = vmatprep.mubr.bf16.mxu0 0
    %434 = vmatmul.mubr.bf16.gmra.mxu0 %v344
    %v435 = vpop.f32.mrf.mxu0
    %v436 = vadd.f32 %v384, %v435
    %v437 = vpop.f32.mrf.mxu0
    %v438 = vadd.f32 %v388, %v437
    %v439 = vpop.f32.mrf.mxu0
    %v440 = vadd.f32 %v384, %v439
    %v441 = vpop.f32.mrf.mxu0
    %v442 = vadd.f32 %v388, %v441
    %443 = vmatprep.mubr.bf16.mxu0 0
    %444 = vmatmul.mubr.bf16.gmra.mxu0 %v345
    %v445 = vpop.f32.mrf.mxu0
    %v446 = vadd.f32 %v384, %v445
    %v447 = vpop.f32.mrf.mxu0
    %v448 = vadd.f32 %v388, %v447
    %v449 = vpop.f32.mrf.mxu0
    %v450 = vadd.f32 %v384, %v449
    %v451 = vpop.f32.mrf.mxu0
    %v452 = vadd.f32 %v388, %v451
    %453 = vmatprep.mubr.bf16.mxu0 0
    %454 = vmatmul.mubr.bf16.gmra.mxu0 %v346
    %v455 = vpop.f32.mrf.mxu0
    %v456 = vadd.f32 %v384, %v455
    %v457 = vpop.f32.mrf.mxu0
    %v458 = vadd.f32 %v388, %v457
    %v459 = vpop.f32.mrf.mxu0
    %v460 = vadd.f32 %v384, %v459
    %v461 = vpop.f32.mrf.mxu0
    %v462 = vadd.f32 %v388, %v461
    %463 = vdwg.mxu0
    %464 = vmatprep.subr.bf16.mxu0 %v378
    %465 = vmatpush1.bf16.msra.mxu0 %v377
    %466 = vmatprep.subr.bf16.mxu0 %v374
    %467 = vmatpush1.bf16.msra.mxu0 %v373
    %468 = vmatprep.subr.bf16.mxu0 %v370
    %469 = vmatpush1.bf16.msra.mxu0 %v369
    %470 = vmatprep.subr.bf16.mxu0 %v366
    %471 = vmatpush1.bf16.msra.mxu0 %v365
    %472 = vmatprep.subr.bf16.mxu0 %v362
    %473 = vmatpush1.bf16.msra.mxu0 %v361
    %474 = vmatprep.subr.bf16.mxu0 %v358
    %475 = vmatpush1.bf16.msra.mxu0 %v357
    %476 = vmatprep.subr.bf16.mxu0 %v354
    %477 = vmatpush1.bf16.msra.mxu0 %v353
    %478 = vmatprep.subr.bf16.mxu0 %v350
    %479 = vmatpush1.bf16.msra.mxu0 %v349
    %480 = vmatprep.subr.bf16.mxu0 0
    %481 = vmatpush2.bf16.msra.mxu0 0
    %482 = vmatprep.subr.bf16.mxu0 0
    %483 = vmatpush2.bf16.msra.mxu0 0
    %484 = vmatprep.subr.bf16.mxu0 0
    %485 = vmatpush2.bf16.msra.mxu0 0
    %486 = vmatprep.subr.bf16.mxu0 0
    %487 = vmatpush2.bf16.msra.mxu0 0
    %488 = vmatprep.subr.bf16.mxu0 0
    %489 = vmatpush2.bf16.msra.mxu0 0
    %490 = vmatprep.subr.bf16.mxu0 0
    %491 = vmatpush2.bf16.msra.mxu0 0
    %492 = vmatprep.subr.bf16.mxu0 0
    %493 = vmatpush2.bf16.msra.mxu0 0
    %494 = vmatprep.subr.bf16.mxu0 0
    %495 = vmatpush2.bf16.msra.mxu0 0
    %496 = vmatprep.mubr.bf16.mxu0 0
    %497 = vmatmul.mubr.bf16.gmra.mxu0 %v344
    %v498 = vpop.f32.mrf.mxu0
    %v499 = vadd.f32 %v392, %v498
    %v500 = vpop.f32.mrf.mxu0
    %v501 = vadd.f32 %v396, %v500
    %v502 = vpop.f32.mrf.mxu0
    %v503 = vadd.f32 %v392, %v502
    %v504 = vpop.f32.mrf.mxu0
    %v505 = vadd.f32 %v396, %v504
    %506 = vmatprep.mubr.bf16.mxu0 0
    %507 = vmatmul.mubr.bf16.gmra.mxu0 %v345
    %v508 = vpop.f32.mrf.mxu0
    %v509 = vadd.f32 %v392, %v508
    %v510 = vpop.f32.mrf.mxu0
    %v511 = vadd.f32 %v396, %v510
    %v512 = vpop.f32.mrf.mxu0
    %v513 = vadd.f32 %v392, %v512
    %v514 = vpop.f32.mrf.mxu0
    %v515 = vadd.f32 %v396, %v514
    %516 = vmatprep.mubr.bf16.mxu0 0
    %517 = vmatmul.mubr.bf16.gmra.mxu0 %v346
    %v518 = vpop.f32.mrf.mxu0
    %v519 = vadd.f32 %v392, %v518
    %v520 = vpop.f32.mrf.mxu0
    %v521 = vadd.f32 %v396, %v520
    %v522 = vpop.f32.mrf.mxu0
    %v523 = vadd.f32 %v392, %v522
    %v524 = vpop.f32.mrf.mxu0
    %v525 = vadd.f32 %v396, %v524
    %526 = vdwg.mxu0
    %v527 = vpack.c.bf16 %v503, %v499
    %v528 = vpack.c.bf16 %v442, %v438
    %v529 = vpack.c.bf16 %v513, %v509
    %v530 = vpack.c.bf16 %v452, %v448
    %v531 = vpack.c.bf16 %v523, %v519
    %v532 = vpack.c.bf16 %v462, %v458
    %v533 = vpack.c.bf16 %v505, %v501
    %v534 = vpack.c.bf16 %v515, %v511
    %v535 = vpack.c.bf16 %v525, %v521
    %v536 = vld [vmem:[#allocation5] sm:$0xff]
    %v537 = vld [vmem:[#allocation5 + $0x8] sm:$0xff]
    %v538 = vld [vmem:[#allocation5 + $0x10] sm:$0xff]
    %v539 = vld [vmem:[#allocation5 + $0x18] sm:$0xff]
    %v540 = vld [vmem:[#allocation5 + $0x20] sm:$0xff]
    %v541 = vld [vmem:[#allocation5 + $0x28] sm:$0xff]
    %v542 = vld [vmem:[#allocation5 + $0x30] sm:$0xff]
    %v543 = vld [vmem:[#allocation5 + $0x38] sm:$0xff]
    %v544 = vld [vmem:[#allocation5 + $0x40] sm:$0xff]
    %v545 = vld [vmem:[#allocation5 + $0x48] sm:$0xff]
    %v546 = vld [vmem:[#allocation5 + $0x50] sm:$0xff]
    %v547 = vld [vmem:[#allocation5 + $0x58] sm:$0xff]
    %v548 = vld [vmem:[#allocation5 + $0x60] sm:$0xff]
    %v549 = vld [vmem:[#allocation5 + $0x68] sm:$0xff]
    %v550 = vld [vmem:[#allocation5 + $0x70] sm:$0xff]
    %v551 = vld [vmem:[#allocation5 + $0x78] sm:$0xff]
    %v552 = vld [vmem:[#allocation5 + $0x80] sm:$0xff]
    %v553 = vld [vmem:[#allocation5 + $0x88] sm:$0xff]
    %v554 = vld [vmem:[#allocation5 + $0x90] sm:$0xff]
    %v555 = vld [vmem:[#allocation5 + $0x98] sm:$0xff]
    %v556 = vld [vmem:[#allocation5 + $0xa0] sm:$0xff]
    %v557 = vld [vmem:[#allocation5 + $0xa8] sm:$0xff]
    %v558 = vld [vmem:[#allocation5 + $0xb0] sm:$0xff]
    %v559 = vld [vmem:[#allocation5 + $0xb8] sm:$0xff]
    %v560 = vld [vmem:[#allocation5 + $0xc0] sm:$0xff]
    %v561 = vld [vmem:[#allocation5 + $0xc8] sm:$0xff]
    %v562 = vld [vmem:[#allocation5 + $0xd0] sm:$0xff]
    %v563 = vld [vmem:[#allocation5 + $0xd8] sm:$0xff]
    %v564 = vld [vmem:[#allocation5 + $0xe0] sm:$0xff]
    %v565 = vld [vmem:[#allocation5 + $0xe8] sm:$0xff]
    %v566 = vld [vmem:[#allocation5 + $0xf0] sm:$0xff]
    %v567 = vld [vmem:[#allocation5 + $0xf8] sm:$0xff]
    %v568 = vlaneseq
    %v569 = vshrl.u32 %v568, 7
    %v570 = vadd.s32 %v569, 8
    %v571 = vadd.s32 %v569, 16
    %v572 = vadd.s32 %v569, 24
    %v573 = vadd.s32 %v569, 32
    %v574 = vadd.s32 %v569, 40
    %v575 = vadd.s32 %v569, 48
    %v576 = vadd.s32 %v569, 56
    %v577 = vadd.s32 %v569, 64
    %v578 = vadd.s32 %v569, 72
    %v579 = vadd.s32 %v569, 80
    %v580 = vadd.s32 %v569, 88
    %v581 = vadd.s32 %v569, 96
    %v582 = vadd.s32 %v569, 104
    %v583 = vadd.s32 %v569, 112
    %v584 = vadd.s32 %v569, 120
    %v585 = vadd.s32 %v569, 128
    %v586 = vadd.s32 %v569, 136
    %v587 = vadd.s32 %v569, 144
    %v588 = vadd.s32 %v569, 152
    %v589 = vadd.s32 %v569, 160
    %v590 = vadd.s32 %v569, 168
    %v591 = vadd.s32 %v569, 176
    %v592 = vadd.s32 %v569, 184
    %v593 = vadd.s32 %v569, 192
    %v594 = vadd.s32 %v569, 200
    %v595 = vadd.s32 %v569, 208
    %v596 = vadd.s32 %v569, 216
    %v597 = vadd.s32 %v569, 224
    %v598 = vadd.s32 %v569, 232
    %v599 = vadd.s32 %v569, 240
    %v600 = vadd.s32 %v569, 248
    %vm601 = vcmp.lt.s32.totalorder %v569, 200
    %vm602 = vcmp.lt.s32.totalorder %v570, 200
    %vm603 = vcmp.lt.s32.totalorder %v571, 200
    %vm604 = vcmp.lt.s32.totalorder %v572, 200
    %vm605 = vcmp.lt.s32.totalorder %v573, 200
    %vm606 = vcmp.lt.s32.totalorder %v574, 200
    %vm607 = vcmp.lt.s32.totalorder %v575, 200
    %vm608 = vcmp.lt.s32.totalorder %v576, 200
    %vm609 = vcmp.lt.s32.totalorder %v577, 200
    %vm610 = vcmp.lt.s32.totalorder %v578, 200
    %vm611 = vcmp.lt.s32.totalorder %v579, 200
    %vm612 = vcmp.lt.s32.totalorder %v580, 200
    %vm613 = vcmp.lt.s32.totalorder %v581, 200
    %vm614 = vcmp.lt.s32.totalorder %v582, 200
    %vm615 = vcmp.lt.s32.totalorder %v583, 200
    %vm616 = vcmp.lt.s32.totalorder %v584, 200
    %vm617 = vcmp.lt.s32.totalorder %v585, 200
    %vm618 = vcmp.lt.s32.totalorder %v586, 200
    %vm619 = vcmp.lt.s32.totalorder %v587, 200
    %vm620 = vcmp.lt.s32.totalorder %v588, 200
    %vm621 = vcmp.lt.s32.totalorder %v589, 200
    %vm622 = vcmp.lt.s32.totalorder %v590, 200
    %vm623 = vcmp.lt.s32.totalorder %v591, 200
    %vm624 = vcmp.lt.s32.totalorder %v592, 200
    %vm625 = vcmp.lt.s32.totalorder %v593, 200
    %vm626 = vcmp.lt.s32.totalorder %v594, 200
    %vm627 = vcmp.lt.s32.totalorder %v595, 200
    %vm628 = vcmp.lt.s32.totalorder %v596, 200
    %vm629 = vcmp.lt.s32.totalorder %v597, 200
    %vm630 = vcmp.lt.s32.totalorder %v598, 200
    %vm631 = vcmp.lt.s32.totalorder %v599, 200
    %vm632 = vcmp.lt.s32.totalorder %v600, 200
    %v633 = vsel %vm601, 1, 0
    %v634 = vsel %vm602, 1, 0
    %v635 = vsel %vm603, 1, 0
    %v636 = vsel %vm604, 1, 0
    %v637 = vsel %vm605, 1, 0
    %v638 = vsel %vm606, 1, 0
    %v639 = vsel %vm607, 1, 0
    %v640 = vsel %vm608, 1, 0
    %v641 = vsel %vm609, 1, 0
    %v642 = vsel %vm610, 1, 0
    %v643 = vsel %vm611, 1, 0
    %v644 = vsel %vm612, 1, 0
    %v645 = vsel %vm613, 1, 0
    %v646 = vsel %vm614, 1, 0
    %v647 = vsel %vm615, 1, 0
    %v648 = vsel %vm616, 1, 0
    %v649 = vsel %vm617, 1, 0
    %v650 = vsel %vm618, 1, 0
    %v651 = vsel %vm619, 1, 0
    %v652 = vsel %vm620, 1, 0
    %v653 = vsel %vm621, 1, 0
    %v654 = vsel %vm622, 1, 0
    %v655 = vsel %vm623, 1, 0
    %v656 = vsel %vm624, 1, 0
    %v657 = vsel %vm625, 1, 0
    %v658 = vsel %vm626, 1, 0
    %v659 = vsel %vm627, 1, 0
    %v660 = vsel %vm628, 1, 0
    %v661 = vsel %vm629, 1, 0
    %v662 = vsel %vm630, 1, 0
    %v663 = vsel %vm631, 1, 0
    %v664 = vsel %vm632, 1, 0
    %v665 = vcvt.s32.f32 %v633
    %v666 = vcvt.s32.f32 %v634
    %v667 = vcvt.s32.f32 %v635
    %v668 = vcvt.s32.f32 %v636
    %v669 = vcvt.s32.f32 %v637
    %v670 = vcvt.s32.f32 %v638
    %v671 = vcvt.s32.f32 %v639
    %v672 = vcvt.s32.f32 %v640
    %v673 = vcvt.s32.f32 %v641
    %v674 = vcvt.s32.f32 %v642
    %v675 = vcvt.s32.f32 %v643
    %v676 = vcvt.s32.f32 %v644
    %v677 = vcvt.s32.f32 %v645
    %v678 = vcvt.s32.f32 %v646
    %v679 = vcvt.s32.f32 %v647
    %v680 = vcvt.s32.f32 %v648
    %v681 = vcvt.s32.f32 %v649
    %v682 = vcvt.s32.f32 %v650
    %v683 = vcvt.s32.f32 %v651
    %v684 = vcvt.s32.f32 %v652
    %v685 = vcvt.s32.f32 %v653
    %v686 = vcvt.s32.f32 %v654
    %v687 = vcvt.s32.f32 %v655
    %v688 = vcvt.s32.f32 %v656
    %v689 = vcvt.s32.f32 %v657
    %v690 = vcvt.s32.f32 %v658
    %v691 = vcvt.s32.f32 %v659
    %v692 = vcvt.s32.f32 %v660
    %v693 = vcvt.s32.f32 %v661
    %v694 = vcvt.s32.f32 %v662
    %v695 = vcvt.s32.f32 %v663
    %v696 = vcvt.s32.f32 %v664
    %v697 = vmul.f32 %v536, %v665
    %v698 = vmul.f32 %v537, %v666
    %v699 = vmul.f32 %v538, %v667
    %v700 = vmul.f32 %v539, %v668
    %v701 = vmul.f32 %v540, %v669
    %v702 = vmul.f32 %v541, %v670
    %v703 = vmul.f32 %v542, %v671
    %v704 = vmul.f32 %v543, %v672
    %v705 = vmul.f32 %v544, %v673
    %v706 = vmul.f32 %v545, %v674
    %v707 = vmul.f32 %v546, %v675
    %v708 = vmul.f32 %v547, %v676
    %v709 = vmul.f32 %v548, %v677
    %v710 = vmul.f32 %v549, %v678
    %v711 = vmul.f32 %v550, %v679
    %v712 = vmul.f32 %v551, %v680
    %v713 = vmul.f32 %v552, %v681
    %v714 = vmul.f32 %v553, %v682
    %v715 = vmul.f32 %v554, %v683
    %v716 = vmul.f32 %v555, %v684
    %v717 = vmul.f32 %v556, %v685
    %v718 = vmul.f32 %v557, %v686
    %v719 = vmul.f32 %v558, %v687
    %v720 = vmul.f32 %v559, %v688
    %v721 = vmul.f32 %v560, %v689
    %v722 = vmul.f32 %v561, %v690
    %v723 = vmul.f32 %v562, %v691
    %v724 = vmul.f32 %v563, %v692
    %v725 = vmul.f32 %v564, %v693
    %v726 = vmul.f32 %v565, %v694
    %v727 = vmul.f32 %v566, %v695
    %v728 = vmul.f32 %v567, %v696
    %v729 = vadd.f32 %v697, %v698
    %v730 = vadd.f32 %v729, %v699
    %v731 = vadd.f32 %v730, %v700
    %v732 = vadd.f32 %v731, %v701
    %v733 = vadd.f32 %v732, %v702
    %v734 = vadd.f32 %v733, %v703
    %v735 = vadd.f32 %v734, %v704
    %v736 = vadd.f32 %v735, %v705
    %v737 = vadd.f32 %v736, %v706
    %v738 = vadd.f32 %v737, %v707
    %v739 = vadd.f32 %v738, %v708
    %v740 = vadd.f32 %v739, %v709
    %v741 = vadd.f32 %v740, %v710
    %v742 = vadd.f32 %v741, %v711
    %v743 = vadd.f32 %v742, %v712
    %v744 = vadd.f32 %v743, %v713
    %v745 = vadd.f32 %v744, %v714
    %v746 = vadd.f32 %v745, %v715
    %v747 = vadd.f32 %v746, %v716
    %v748 = vadd.f32 %v747, %v717
    %v749 = vadd.f32 %v748, %v718
    %v750 = vadd.f32 %v749, %v719
    %v751 = vadd.f32 %v750, %v720
    %v752 = vadd.f32 %v751, %v721
    %v753 = vadd.f32 %v752, %v722
    %v754 = vadd.f32 %v753, %v723
    %v755 = vadd.f32 %v754, %v724
    %v756 = vadd.f32 %v755, %v725
    %v757 = vadd.f32 %v756, %v726
    %v758 = vadd.f32 %v757, %v727
    %v759 = vadd.f32 %v758, %v728
    %v760 = vrot.slane %v759, 4
    %v761 = vadd.f32 %v759, %v760
    %v762 = vrot.slane %v761, 2
    %v763 = vadd.f32 %v761, %v762
    %v764 = vrot.slane %v763, 1
    %v765 = vadd.f32 %v763, %v764
    %v766 = vmul.f32 %v765, 0.005
    %v767 = vmul.f32 %v536, %v536
    %v768 = vmul.f32 %v537, %v537
    %v769 = vmul.f32 %v538, %v538
    %v770 = vmul.f32 %v539, %v539
    %v771 = vmul.f32 %v540, %v540
    %v772 = vmul.f32 %v541, %v541
    %v773 = vmul.f32 %v542, %v542
    %v774 = vmul.f32 %v543, %v543
    %v775 = vmul.f32 %v544, %v544
    %v776 = vmul.f32 %v545, %v545
    %v777 = vmul.f32 %v546, %v546
    %v778 = vmul.f32 %v547, %v547
    %v779 = vmul.f32 %v548, %v548
    %v780 = vmul.f32 %v549, %v549
    %v781 = vmul.f32 %v550, %v550
    %v782 = vmul.f32 %v551, %v551
    %v783 = vmul.f32 %v552, %v552
    %v784 = vmul.f32 %v553, %v553
    %v785 = vmul.f32 %v554, %v554
    %v786 = vmul.f32 %v555, %v555
    %v787 = vmul.f32 %v556, %v556
    %v788 = vmul.f32 %v557, %v557
    %v789 = vmul.f32 %v558, %v558
    %v790 = vmul.f32 %v559, %v559
    %v791 = vmul.f32 %v560, %v560
    %v792 = vmul.f32 %v561, %v561
    %v793 = vmul.f32 %v562, %v562
    %v794 = vmul.f32 %v563, %v563
    %v795 = vmul.f32 %v564, %v564
    %v796 = vmul.f32 %v565, %v565
    %v797 = vmul.f32 %v566, %v566
    %v798 = vmul.f32 %v567, %v567
    %v799 = vmul.f32 %v767, %v665
    %v800 = vmul.f32 %v768, %v666
    %v801 = vmul.f32 %v769, %v667
    %v802 = vmul.f32 %v770, %v668
    %v803 = vmul.f32 %v771, %v669
    %v804 = vmul.f32 %v772, %v670
    %v805 = vmul.f32 %v773, %v671
    %v806 = vmul.f32 %v774, %v672
    %v807 = vmul.f32 %v775, %v673
    %v808 = vmul.f32 %v776, %v674
    %v809 = vmul.f32 %v777, %v675
    %v810 = vmul.f32 %v778, %v676
    %v811 = vmul.f32 %v779, %v677
    %v812 = vmul.f32 %v780, %v678
    %v813 = vmul.f32 %v781, %v679
    %v814 = vmul.f32 %v782, %v680
    %v815 = vmul.f32 %v783, %v681
    %v816 = vmul.f32 %v784, %v682
    %v817 = vmul.f32 %v785, %v683
    %v818 = vmul.f32 %v786, %v684
    %v819 = vmul.f32 %v787, %v685
    %v820 = vmul.f32 %v788, %v686
    %v821 = vmul.f32 %v789, %v687
    %v822 = vmul.f32 %v790, %v688
    %v823 = vmul.f32 %v791, %v689
    %v824 = vmul.f32 %v792, %v690
    %v825 = vmul.f32 %v793, %v691
    %v826 = vmul.f32 %v794, %v692
    %v827 = vmul.f32 %v795, %v693
    %v828 = vmul.f32 %v796, %v694
    %v829 = vmul.f32 %v797, %v695
    %v830 = vmul.f32 %v798, %v696
    %v831 = vadd.f32 %v799, %v800
    %v832 = vadd.f32 %v831, %v801
    %v833 = vadd.f32 %v832, %v802
    %v834 = vadd.f32 %v833, %v803
    %v835 = vadd.f32 %v834, %v804
    %v836 = vadd.f32 %v835, %v805
    %v837 = vadd.f32 %v836, %v806
    %v838 = vadd.f32 %v837, %v807
    %v839 = vadd.f32 %v838, %v808
    %v840 = vadd.f32 %v839, %v809
    %v841 = vadd.f32 %v840, %v810
    %v842 = vadd.f32 %v841, %v811
    %v843 = vadd.f32 %v842, %v812
    %v844 = vadd.f32 %v843, %v813
    %v845 = vadd.f32 %v844, %v814
    %v846 = vadd.f32 %v845, %v815
    %v847 = vadd.f32 %v846, %v816
    %v848 = vadd.f32 %v847, %v817
    %v849 = vadd.f32 %v848, %v818
    %v850 = vadd.f32 %v849, %v819
    %v851 = vadd.f32 %v850, %v820
    %v852 = vadd.f32 %v851, %v821
    %v853 = vadd.f32 %v852, %v822
    %v854 = vadd.f32 %v853, %v823
    %v855 = vadd.f32 %v854, %v824
    %v856 = vadd.f32 %v855, %v825
    %v857 = vadd.f32 %v856, %v826
    %v858 = vadd.f32 %v857, %v827
    %v859 = vadd.f32 %v858, %v828
    %v860 = vadd.f32 %v859, %v829
    %v861 = vadd.f32 %v860, %v830
    %v862 = vrot.slane %v861, 4
    %v863 = vadd.f32 %v861, %v862
    %v864 = vrot.slane %v863, 2
    %v865 = vadd.f32 %v863, %v864
    %v866 = vrot.slane %v865, 1
    %v867 = vadd.f32 %v865, %v866
    %v868 = vmul.f32 %v867, 0.005
    %v869 = vmul.f32 %v766, %v766
    %v870 = vsub.f32 %v868, %v869
    %v871 = vmax.f32 %v870, 0.0
    %v872 = vadd.f32 %v871, 1e-05
    %v873 = vrsqrt.pop %v872
    %v874 = vld [vmem:[%s16 + $0x1] sm:$0x1]
    %v875 = vld [vmem:[%s17 + $0x1] sm:$0x1]
    %v876 = vld [vmem:[#allocation11] sm:$0xff]
    %v877 = vld [vmem:[#allocation11 + $0x8] sm:$0xff]
    %v878 = vld [vmem:[#allocation11 + $0x10] sm:$0xff]
    %v879 = vld [vmem:[#allocation11 + $0x18] sm:$0xff]
    %v880 = vld [vmem:[#allocation11 + $0x20] sm:$0xff]
    %v881 = vld [vmem:[#allocation11 + $0x28] sm:$0xff]
    %v882 = vld [vmem:[#allocation11 + $0x30] sm:$0xff]
    %v883 = vld [vmem:[#allocation11 + $0x38] sm:$0xff]
    %v884 = vld [vmem:[#allocation11 + $0x40] sm:$0xff]
    %v885 = vld [vmem:[#allocation11 + $0x48] sm:$0xff]
    %v886 = vld [vmem:[#allocation11 + $0x50] sm:$0xff]
    %v887 = vld [vmem:[#allocation11 + $0x58] sm:$0xff]
    %v888 = vld [vmem:[#allocation11 + $0x60] sm:$0xff]
    %v889 = vld [vmem:[#allocation11 + $0x68] sm:$0xff]
    %v890 = vld [vmem:[#allocation11 + $0x70] sm:$0xff]
    %v891 = vld [vmem:[#allocation11 + $0x78] sm:$0xff]
    %v892 = vpack.c.bf16 %v877, %v876
    %v893 = vpack.c.bf16 %v879, %v878
    %v894 = vpack.c.bf16 %v881, %v880
    %v895 = vpack.c.bf16 %v883, %v882
    %v896 = vpack.c.bf16 %v885, %v884
    %v897 = vpack.c.bf16 %v887, %v886
    %v898 = vpack.c.bf16 %v889, %v888
    %v899 = vpack.c.bf16 %v891, %v890
    %v900 = vld [vmem:[#allocation13] sm:$0x1]
    %v901 = vld [vmem:[#allocation7] sm:$0x1]
    %v902 = vld [vmem:[#allocation8] sm:$0x1]
    %v903 = vld [vmem:[#allocation5] sm:$0xff]
    %v904 = vld [vmem:[#allocation5 + $0x8] sm:$0xff]
    %v905 = vld [vmem:[#allocation5 + $0x10] sm:$0xff]
    %v906 = vld [vmem:[#allocation5 + $0x18] sm:$0xff]
    %v907 = vld [vmem:[#allocation5 + $0x20] sm:$0xff]
    %v908 = vld [vmem:[#allocation5 + $0x28] sm:$0xff]
    %v909 = vld [vmem:[#allocation5 + $0x30] sm:$0xff]
    %v910 = vld [vmem:[#allocation5 + $0x38] sm:$0xff]
    %v911 = vld [vmem:[#allocation5 + $0x40] sm:$0xff]
    %v912 = vld [vmem:[#allocation5 + $0x48] sm:$0xff]
    %v913 = vld [vmem:[#allocation5 + $0x50] sm:$0xff]
    %v914 = vld [vmem:[#allocation5 + $0x58] sm:$0xff]
    %v915 = vld [vmem:[#allocation5 + $0x60] sm:$0xff]
    %v916 = vld [vmem:[#allocation5 + $0x68] sm:$0xff]
    %v917 = vld [vmem:[#allocation5 + $0x70] sm:$0xff]
    %v918 = vld [vmem:[#allocation5 + $0x78] sm:$0xff]
    %v919 = vsub.f32 %v903, %v766
    %v920 = vsub.f32 %v904, %v766
    %v921 = vsub.f32 %v905, %v766
    %v922 = vsub.f32 %v906, %v766
    %v923 = vsub.f32 %v907, %v766
    %v924 = vsub.f32 %v908, %v766
    %v925 = vsub.f32 %v909, %v766
    %v926 = vsub.f32 %v910, %v766
    %v927 = vsub.f32 %v911, %v766
    %v928 = vsub.f32 %v912, %v766
    %v929 = vsub.f32 %v913, %v766
    %v930 = vsub.f32 %v914, %v766
    %v931 = vsub.f32 %v915, %v766
    %v932 = vsub.f32 %v916, %v766
    %v933 = vsub.f32 %v917, %v766
    %v934 = vsub.f32 %v918, %v766
    %v935 = vmul.f32 %v919, %v873
    %v936 = vmul.f32 %v920, %v873
    %v937 = vmul.f32 %v921, %v873
    %v938 = vmul.f32 %v922, %v873
    %v939 = vmul.f32 %v923, %v873
    %v940 = vmul.f32 %v924, %v873
    %v941 = vmul.f32 %v925, %v873
    %v942 = vmul.f32 %v926, %v873
    %v943 = vmul.f32 %v927, %v873
    %v944 = vmul.f32 %v928, %v873
    %v945 = vmul.f32 %v929, %v873
    %v946 = vmul.f32 %v930, %v873
    %v947 = vmul.f32 %v931, %v873
    %v948 = vmul.f32 %v932, %v873
    %v949 = vmul.f32 %v933, %v873
    %v950 = vmul.f32 %v934, %v873
    %v951 = vlaneseq
    %v952 = vshrl.u32 %v951, 7
    %v953 = vsub.s32 0, %v952
    %v954 = vrot.slane %v874, %v953
    %v955 = vmul.f32 %v935, %v954
    %v956 = vmul.f32 %v936, %v954
    %v957 = vmul.f32 %v937, %v954
    %v958 = vmul.f32 %v938, %v954
    %v959 = vmul.f32 %v939, %v954
    %v960 = vmul.f32 %v940, %v954
    %v961 = vmul.f32 %v941, %v954
    %v962 = vmul.f32 %v942, %v954
    %v963 = vmul.f32 %v943, %v954
    %v964 = vmul.f32 %v944, %v954
    %v965 = vmul.f32 %v945, %v954
    %v966 = vmul.f32 %v946, %v954
    %v967 = vmul.f32 %v947, %v954
    %v968 = vmul.f32 %v948, %v954
    %v969 = vmul.f32 %v949, %v954
    %v970 = vmul.f32 %v950, %v954
    %v971 = vlaneseq
    %v972 = vshrl.u32 %v971, 7
    %v973 = vsub.s32 0, %v972
    %v974 = vrot.slane %v875, %v973
    %v975 = vadd.f32 %v955, %v974
    %v976 = vadd.f32 %v956, %v974
    %v977 = vadd.f32 %v957, %v974
    %v978 = vadd.f32 %v958, %v974
    %v979 = vadd.f32 %v959, %v974
    %v980 = vadd.f32 %v960, %v974
    %v981 = vadd.f32 %v961, %v974
    %v982 = vadd.f32 %v962, %v974
    %v983 = vadd.f32 %v963, %v974
    %v984 = vadd.f32 %v964, %v974
    %v985 = vadd.f32 %v965, %v974
    %v986 = vadd.f32 %v966, %v974
    %v987 = vadd.f32 %v967, %v974
    %v988 = vadd.f32 %v968, %v974
    %v989 = vadd.f32 %v969, %v974
    %v990 = vadd.f32 %v970, %v974
    %v991 = vpack.c.bf16 %v976, %v975
    %v992 = vpack.c.bf16 %v978, %v977
    %v993 = vpack.c.bf16 %v980, %v979
    %v994 = vpack.c.bf16 %v982, %v981
    %v995 = vpack.c.bf16 %v984, %v983
    %v996 = vpack.c.bf16 %v986, %v985
    %v997 = vpack.c.bf16 %v988, %v987
    %v998 = vpack.c.bf16 %v990, %v989
    %v1000 = vlaneseq
    %v1001 = vshrl.u32 %v1000, 7
    %v1002 = vsub.s32 0, %v1001
    %v1003 = vrot.slane %v900, %v1002
    %1005 = vmatprep.subr.bf16.mxu0 0
    %1006 = vmatpush1.bf16.msra.mxu0 %v899
    %1007 = vmatprep.subr.bf16.mxu0 0
    %1008 = vmatpush1.bf16.msra.mxu0 %v898
    %1009 = vmatprep.subr.bf16.mxu0 0
    %1010 = vmatpush1.bf16.msra.mxu0 %v897
    %1011 = vmatprep.subr.bf16.mxu0 0
    %1012 = vmatpush1.bf16.msra.mxu0 %v896
    %1013 = vmatprep.subr.bf16.mxu0 0
    %1014 = vmatpush1.bf16.msra.mxu0 %v895
    %1015 = vmatprep.subr.bf16.mxu0 0
    %1016 = vmatpush1.bf16.msra.mxu0 %v894
    %1017 = vmatprep.subr.bf16.mxu0 0
    %1018 = vmatpush1.bf16.msra.mxu0 %v893
    %1019 = vmatprep.subr.bf16.mxu0 0
    %1020 = vmatpush1.bf16.msra.mxu0 %v892
    %1021 = vmatprep.subr.bf16.mxu0 0
    %1022 = vmatpush2.bf16.msra.mxu0 0
    %1023 = vmatprep.subr.bf16.mxu0 0
    %1024 = vmatpush2.bf16.msra.mxu0 0
    %1025 = vmatprep.subr.bf16.mxu0 0
    %1026 = vmatpush2.bf16.msra.mxu0 0
    %1027 = vmatprep.subr.bf16.mxu0 0
    %1028 = vmatpush2.bf16.msra.mxu0 0
    %1029 = vmatprep.subr.bf16.mxu0 0
    %1030 = vmatpush2.bf16.msra.mxu0 0
    %1031 = vmatprep.subr.bf16.mxu0 0
    %1032 = vmatpush2.bf16.msra.mxu0 0
    %1033 = vmatprep.subr.bf16.mxu0 0
    %1034 = vmatpush2.bf16.msra.mxu0 0
    %1035 = vmatprep.subr.bf16.mxu0 0
    %1036 = vmatpush2.bf16.msra.mxu0 0
    %1037 = vmatprep.mubr.bf16.mxu0 0
    %1038 = vmatmul.mubr.bf16.gmra.mxu0 %v991
    %v1039 = vpop.f32.mrf.mxu0
    %v1040 = vadd.f32 %v1003, %v1039
    %v1041 = vpop.f32.mrf.mxu0
    %v1042 = vpop.f32.mrf.mxu0
    %v1043 = vadd.f32 %v1003, %v1042
    %v1044 = vpop.f32.mrf.mxu0
    %1045 = vmatprep.mubr.bf16.mxu0 0
    %1046 = vmatmul.mubr.bf16.gmra.mxu0 %v992
    %v1047 = vpop.f32.mrf.mxu0
    %v1048 = vadd.f32 %v1003, %v1047
    %v1049 = vpop.f32.mrf.mxu0
    %v1050 = vpop.f32.mrf.mxu0
    %v1051 = vadd.f32 %v1003, %v1050
    %v1052 = vpop.f32.mrf.mxu0
    %1053 = vmatprep.mubr.bf16.mxu0 0
    %1054 = vmatmul.mubr.bf16.gmra.mxu0 %v993
    %v1055 = vpop.f32.mrf.mxu0
    %v1056 = vadd.f32 %v1003, %v1055
    %v1057 = vpop.f32.mrf.mxu0
    %v1058 = vpop.f32.mrf.mxu0
    %v1059 = vadd.f32 %v1003, %v1058
    %v1060 = vpop.f32.mrf.mxu0
    %1061 = vmatprep.mubr.bf16.mxu0 0
    %1062 = vmatmul.mubr.bf16.gmra.mxu0 %v994
    %v1063 = vpop.f32.mrf.mxu0
    %v1064 = vadd.f32 %v1003, %v1063
    %v1065 = vpop.f32.mrf.mxu0
    %v1066 = vpop.f32.mrf.mxu0
    %v1067 = vadd.f32 %v1003, %v1066
    %v1068 = vpop.f32.mrf.mxu0
    %1069 = vmatprep.mubr.bf16.mxu0 0
    %1070 = vmatmul.mubr.bf16.gmra.mxu0 %v995
    %v1071 = vpop.f32.mrf.mxu0
    %v1072 = vadd.f32 %v1003, %v1071
    %v1073 = vpop.f32.mrf.mxu0
    %v1074 = vpop.f32.mrf.mxu0
    %v1075 = vadd.f32 %v1003, %v1074
    %v1076 = vpop.f32.mrf.mxu0
    %1077 = vmatprep.mubr.bf16.mxu0 0
    %1078 = vmatmul.mubr.bf16.gmra.mxu0 %v996
    %v1079 = vpop.f32.mrf.mxu0
    %v1080 = vadd.f32 %v1003, %v1079
    %v1081 = vpop.f32.mrf.mxu0
    %v1082 = vpop.f32.mrf.mxu0
    %v1083 = vadd.f32 %v1003, %v1082
    %v1084 = vpop.f32.mrf.mxu0
    %1085 = vmatprep.mubr.bf16.mxu0 0
    %1086 = vmatmul.mubr.bf16.gmra.mxu0 %v997
    %v1087 = vpop.f32.mrf.mxu0
    %v1088 = vadd.f32 %v1003, %v1087
    %v1089 = vpop.f32.mrf.mxu0
    %v1090 = vpop.f32.mrf.mxu0
    %v1091 = vadd.f32 %v1003, %v1090
    %v1092 = vpop.f32.mrf.mxu0
    %1093 = vmatprep.mubr.bf16.mxu0 0
    %1094 = vmatmul.mubr.bf16.gmra.mxu0 %v998
    %v1095 = vpop.f32.mrf.mxu0
    %v1096 = vadd.f32 %v1003, %v1095
    %v1097 = vpop.f32.mrf.mxu0
    %v1098 = vpop.f32.mrf.mxu0
    %v1099 = vadd.f32 %v1003, %v1098
    %v1100 = vpop.f32.mrf.mxu0
    %1101 = vdwg.mxu0
    %v1102 = vlaneseq
    %v1103 = vshrl.u32 %v1102, 7
    %v1104 = vsub.s32 0, %v1103
    %v1105 = vrot.slane %v901, %v1104
    %vm1106 = vcmp.eq.s32.totalorder %v569, %v1105
    %vm1107 = vcmp.eq.s32.totalorder %v570, %v1105
    %vm1108 = vcmp.eq.s32.totalorder %v571, %v1105
    %vm1109 = vcmp.eq.s32.totalorder %v572, %v1105
    %vm1110 = vcmp.eq.s32.totalorder %v573, %v1105
    %vm1111 = vcmp.eq.s32.totalorder %v574, %v1105
    %v1112 = vsel %vm1106, 1.0, 0.0
    %v1113 = vsel %vm1107, 1.0, 0.0
    %v1114 = vsel %vm1108, 1.0, 0.0
    %v1115 = vsel %vm1109, 1.0, 0.0
    %v1116 = vsel %vm1110, 1.0, 0.0
    %v1117 = vsel %vm1111, 1.0, 0.0
    %v1118 = vpack.c.bf16 %v1113, %v1112
    %v1119 = vpack.c.bf16 %v1115, %v1114
    %v1120 = vpack.c.bf16 %v1117, %v1116
    %v1121 = vlaneseq
    %v1122 = vshrl.u32 %v1121, 7
    %v1123 = vsub.s32 0, %v1122
    %v1124 = vrot.slane %v902, %v1123
    %vm1125 = vcmp.eq.s32.totalorder %v569, %v1124
    %vm1126 = vcmp.eq.s32.totalorder %v570, %v1124
    %vm1127 = vcmp.eq.s32.totalorder %v571, %v1124
    %vm1128 = vcmp.eq.s32.totalorder %v572, %v1124
    %vm1129 = vcmp.eq.s32.totalorder %v573, %v1124
    %vm1130 = vcmp.eq.s32.totalorder %v574, %v1124
    %v1131 = vsel %vm1125, 1.0, 0.0
    %v1132 = vsel %vm1126, 1.0, 0.0
    %v1133 = vsel %vm1127, 1.0, 0.0
    %v1134 = vsel %vm1128, 1.0, 0.0
    %v1135 = vsel %vm1129, 1.0, 0.0
    %v1136 = vsel %vm1130, 1.0, 0.0
    %v1137 = vpack.c.bf16 %v1132, %v1131
    %v1138 = vpack.c.bf16 %v1134, %v1133
    %v1139 = vpack.c.bf16 %v1136, %v1135
    %1140 = vxpose.xlu0.c.b16.start [1/8] %v1118, 128
    %1141 = vxpose.xlu0.c.b16.cont [2/8] %v1119, 128
    %1142 = vxpose.xlu0.c.b16.cont [3/8] %v1120, 128
    %1143 = vxpose.xlu0.c.b16.cont [4/8] 0, 128
    %1144 = vxpose.xlu0.c.b16.cont [5/8] 0, 128
    %1145 = vxpose.xlu0.c.b16.cont [6/8] 0, 128
    %1146 = vxpose.xlu0.c.b16.cont [7/8] 0, 128
    %1147 = vxpose.xlu0.c.b16.end [8/8] 0, 128
    %v1148 = vpop.trf.xlu0
    %v1149 = vpop.trf.xlu0
    %v1150 = vpop.trf.xlu0
    %v1151 = vpop.trf.xlu0
    %v1152 = vpop.trf.xlu0
    %v1153 = vpop.trf.xlu0
    %v1154 = vpop.trf.xlu0
    %v1155 = vpop.trf.xlu0
    %vm1156 = vcmask 392192
    %v1158 = vsel %vm1156, %v1148, 0
    %v1161 = vsel %vm1156, %v1149, 0
    %v1164 = vsel %vm1156, %v1150, 0
    %v1167 = vsel %vm1156, %v1151, 0
    %v1170 = vsel %vm1156, %v1152, 0
    %v1173 = vsel %vm1156, %v1153, 0
    %v1176 = vsel %vm1156, %v1154, 0
    %v1179 = vsel %vm1156, %v1155, 0
    %1181 = vmatprep.subr.bf16.mxu0 0
    %1182 = vmatpush1.bf16.msra.mxu0 0
    %1183 = vmatprep.subr.bf16.mxu0 0
    %1184 = vmatpush1.bf16.msra.mxu0 0
    %1185 = vmatprep.subr.bf16.mxu0 0
    %1186 = vmatpush1.bf16.msra.mxu0 0
    %1187 = vmatprep.subr.bf16.mxu0 0
    %1188 = vmatpush1.bf16.msra.mxu0 0
    %1189 = vmatprep.subr.bf16.mxu0 0
    %1190 = vmatpush1.bf16.msra.mxu0 0
    %1191 = vmatprep.subr.bf16.mxu0 %v532
    %1192 = vmatpush1.bf16.msra.mxu0 %v531
    %1193 = vmatprep.subr.bf16.mxu0 %v530
    %1194 = vmatpush1.bf16.msra.mxu0 %v529
    %1195 = vmatprep.subr.bf16.mxu0 %v528
    %1196 = vmatpush1.bf16.msra.mxu0 %v527
    %1197 = vmatprep.subr.bf16.mxu0 0
    %1198 = vmatpush2.bf16.msra.mxu0 0
    %1199 = vmatprep.subr.bf16.mxu0 0
    %1200 = vmatpush2.bf16.msra.mxu0 0
    %1201 = vmatprep.subr.bf16.mxu0 0
    %1202 = vmatpush2.bf16.msra.mxu0 0
    %1203 = vmatprep.subr.bf16.mxu0 0
    %1204 = vmatpush2.bf16.msra.mxu0 0
    %1205 = vmatprep.subr.bf16.mxu0 0
    %1206 = vmatpush2.bf16.msra.mxu0 0
    %1207 = vmatprep.subr.bf16.mxu0 0
    %1208 = vmatpush2.bf16.msra.mxu0 0
    %1209 = vmatprep.subr.bf16.mxu0 0
    %1210 = vmatpush2.bf16.msra.mxu0 0
    %1211 = vmatprep.subr.bf16.mxu0 0
    %1212 = vmatpush2.bf16.msra.mxu0 0
    %1213 = vmatprep.mubr.bf16.mxu0 0
    %1214 = vmatmul.mubr.bf16.gmra.mxu0 %v1158
    %v1215 = vpop.f32.mrf.mxu0
    %v1216 = vadd.f32 0.0, %v1215
    %v1217 = vpop.f32.mrf.mxu0
    %v1218 = vadd.f32 0.0, %v1217
    %v1219 = vpop.f32.mrf.mxu0
    %v1220 = vadd.f32 0.0, %v1219
    %v1221 = vpop.f32.mrf.mxu0
    %v1222 = vadd.f32 0.0, %v1221
    %1223 = vmatprep.mubr.bf16.mxu0 0
    %1224 = vmatmul.mubr.bf16.gmra.mxu0 %v1161
    %v1225 = vpop.f32.mrf.mxu0
    %v1226 = vadd.f32 0.0, %v1225
    %v1227 = vpop.f32.mrf.mxu0
    %v1228 = vadd.f32 0.0, %v1227
    %v1229 = vpop.f32.mrf.mxu0
    %v1230 = vadd.f32 0.0, %v1229
    %v1231 = vpop.f32.mrf.mxu0
    %v1232 = vadd.f32 0.0, %v1231
    %1233 = vmatprep.mubr.bf16.mxu0 0
    %1234 = vmatmul.mubr.bf16.gmra.mxu0 %v1164
    %v1235 = vpop.f32.mrf.mxu0
    %v1236 = vadd.f32 0.0, %v1235
    %v1237 = vpop.f32.mrf.mxu0
    %v1238 = vadd.f32 0.0, %v1237
    %v1239 = vpop.f32.mrf.mxu0
    %v1240 = vadd.f32 0.0, %v1239
    %v1241 = vpop.f32.mrf.mxu0
    %v1242 = vadd.f32 0.0, %v1241
    %1243 = vmatprep.mubr.bf16.mxu0 0
    %1244 = vmatmul.mubr.bf16.gmra.mxu0 %v1167
    %v1245 = vpop.f32.mrf.mxu0
    %v1246 = vadd.f32 0.0, %v1245
    %v1247 = vpop.f32.mrf.mxu0
    %v1248 = vadd.f32 0.0, %v1247
    %v1249 = vpop.f32.mrf.mxu0
    %v1250 = vadd.f32 0.0, %v1249
    %v1251 = vpop.f32.mrf.mxu0
    %v1252 = vadd.f32 0.0, %v1251
    %1253 = vmatprep.mubr.bf16.mxu0 0
    %1254 = vmatmul.mubr.bf16.gmra.mxu0 %v1170
    %v1255 = vpop.f32.mrf.mxu0
    %v1256 = vadd.f32 0.0, %v1255
    %v1257 = vpop.f32.mrf.mxu0
    %v1258 = vadd.f32 0.0, %v1257
    %v1259 = vpop.f32.mrf.mxu0
    %v1260 = vadd.f32 0.0, %v1259
    %v1261 = vpop.f32.mrf.mxu0
    %v1262 = vadd.f32 0.0, %v1261
    %1263 = vmatprep.mubr.bf16.mxu0 0
    %1264 = vmatmul.mubr.bf16.gmra.mxu0 %v1173
    %v1265 = vpop.f32.mrf.mxu0
    %v1266 = vadd.f32 0.0, %v1265
    %v1267 = vpop.f32.mrf.mxu0
    %v1268 = vadd.f32 0.0, %v1267
    %v1269 = vpop.f32.mrf.mxu0
    %v1270 = vadd.f32 0.0, %v1269
    %v1271 = vpop.f32.mrf.mxu0
    %v1272 = vadd.f32 0.0, %v1271
    %1273 = vmatprep.mubr.bf16.mxu0 0
    %1274 = vmatmul.mubr.bf16.gmra.mxu0 %v1176
    %v1275 = vpop.f32.mrf.mxu0
    %v1276 = vadd.f32 0.0, %v1275
    %v1277 = vpop.f32.mrf.mxu0
    %v1278 = vadd.f32 0.0, %v1277
    %v1279 = vpop.f32.mrf.mxu0
    %v1280 = vadd.f32 0.0, %v1279
    %v1281 = vpop.f32.mrf.mxu0
    %v1282 = vadd.f32 0.0, %v1281
    %1283 = vmatprep.mubr.bf16.mxu0 0
    %1284 = vmatmul.mubr.bf16.gmra.mxu0 %v1179
    %v1285 = vpop.f32.mrf.mxu0
    %v1286 = vadd.f32 0.0, %v1285
    %v1287 = vpop.f32.mrf.mxu0
    %v1288 = vadd.f32 0.0, %v1287
    %v1289 = vpop.f32.mrf.mxu0
    %v1290 = vadd.f32 0.0, %v1289
    %v1291 = vpop.f32.mrf.mxu0
    %v1292 = vadd.f32 0.0, %v1291
    %1293 = vdwg.mxu0
    %1294 = vxpose.xlu0.c.b16.start [1/8] %v1137, 128
    %1295 = vxpose.xlu0.c.b16.cont [2/8] %v1138, 128
    %1296 = vxpose.xlu0.c.b16.cont [3/8] %v1139, 128
    %1297 = vxpose.xlu0.c.b16.cont [4/8] 0, 128
    %1298 = vxpose.xlu0.c.b16.cont [5/8] 0, 128
    %1299 = vxpose.xlu0.c.b16.cont [6/8] 0, 128
    %1300 = vxpose.xlu0.c.b16.cont [7/8] 0, 128
    %1301 = vxpose.xlu0.c.b16.end [8/8] 0, 128
    %v1302 = vpop.trf.xlu0
    %v1303 = vpop.trf.xlu0
    %v1304 = vpop.trf.xlu0
    %v1305 = vpop.trf.xlu0
    %v1306 = vpop.trf.xlu0
    %v1307 = vpop.trf.xlu0
    %v1308 = vpop.trf.xlu0
    %v1309 = vpop.trf.xlu0
    %v1311 = vsel %vm1156, %v1302, 0
    %v1314 = vsel %vm1156, %v1303, 0
    %v1317 = vsel %vm1156, %v1304, 0
    %v1320 = vsel %vm1156, %v1305, 0
    %v1323 = vsel %vm1156, %v1306, 0
    %v1326 = vsel %vm1156, %v1307, 0
    %v1329 = vsel %vm1156, %v1308, 0
    %v1332 = vsel %vm1156, %v1309, 0
    %1334 = vmatprep.subr.bf16.mxu0 0
    %1335 = vmatpush1.bf16.msra.mxu0 0
    %1336 = vmatprep.subr.bf16.mxu0 0
    %1337 = vmatpush1.bf16.msra.mxu0 0
    %1338 = vmatprep.subr.bf16.mxu0 0
    %1339 = vmatpush1.bf16.msra.mxu0 0
    %1340 = vmatprep.subr.bf16.mxu0 0
    %1341 = vmatpush1.bf16.msra.mxu0 0
    %1342 = vmatprep.subr.bf16.mxu0 0
    %1343 = vmatpush1.bf16.msra.mxu0 0
    %1344 = vmatprep.subr.bf16.mxu0 0
    %1345 = vmatpush1.bf16.msra.mxu0 %v535
    %1346 = vmatprep.subr.bf16.mxu0 0
    %1347 = vmatpush1.bf16.msra.mxu0 %v534
    %1348 = vmatprep.subr.bf16.mxu0 0
    %1349 = vmatpush1.bf16.msra.mxu0 %v533
    %1350 = vmatprep.subr.bf16.mxu0 0
    %1351 = vmatpush2.bf16.msra.mxu0 0
    %1352 = vmatprep.subr.bf16.mxu0 0
    %1353 = vmatpush2.bf16.msra.mxu0 0
    %1354 = vmatprep.subr.bf16.mxu0 0
    %1355 = vmatpush2.bf16.msra.mxu0 0
    %1356 = vmatprep.subr.bf16.mxu0 0
    %1357 = vmatpush2.bf16.msra.mxu0 0
    %1358 = vmatprep.subr.bf16.mxu0 0
    %1359 = vmatpush2.bf16.msra.mxu0 0
    %1360 = vmatprep.subr.bf16.mxu0 0
    %1361 = vmatpush2.bf16.msra.mxu0 0
    %1362 = vmatprep.subr.bf16.mxu0 0
    %1363 = vmatpush2.bf16.msra.mxu0 0
    %1364 = vmatprep.subr.bf16.mxu0 0
    %1365 = vmatpush2.bf16.msra.mxu0 0
    %1366 = vmatprep.mubr.bf16.mxu0 0
    %1367 = vmatmul.mubr.bf16.gmra.mxu0 %v1311
    %v1368 = vpop.f32.mrf.mxu0
    %v1369 = vadd.f32 0.0, %v1368
    %v1370 = vpop.f32.mrf.mxu0
    %v1371 = vpop.f32.mrf.mxu0
    %v1372 = vadd.f32 0.0, %v1371
    %v1373 = vpop.f32.mrf.mxu0
    %1374 = vmatprep.mubr.bf16.mxu0 0
    %1375 = vmatmul.mubr.bf16.gmra.mxu0 %v1314
    %v1376 = vpop.f32.mrf.mxu0
    %v1377 = vadd.f32 0.0, %v1376
    %v1378 = vpop.f32.mrf.mxu0
    %v1379 = vpop.f32.mrf.mxu0
    %v1380 = vadd.f32 0.0, %v1379
    %v1381 = vpop.f32.mrf.mxu0
    %1382 = vmatprep.mubr.bf16.mxu0 0
    %1383 = vmatmul.mubr.bf16.gmra.mxu0 %v1317
    %v1384 = vpop.f32.mrf.mxu0
    %v1385 = vadd.f32 0.0, %v1384
    %v1386 = vpop.f32.mrf.mxu0
    %v1387 = vpop.f32.mrf.mxu0
    %v1388 = vadd.f32 0.0, %v1387
    %v1389 = vpop.f32.mrf.mxu0
    %1390 = vmatprep.mubr.bf16.mxu0 0
    %1391 = vmatmul.mubr.bf16.gmra.mxu0 %v1320
    %v1392 = vpop.f32.mrf.mxu0
    %v1393 = vadd.f32 0.0, %v1392
    %v1394 = vpop.f32.mrf.mxu0
    %v1395 = vpop.f32.mrf.mxu0
    %v1396 = vadd.f32 0.0, %v1395
    %v1397 = vpop.f32.mrf.mxu0
    %1398 = vmatprep.mubr.bf16.mxu0 0
    %1399 = vmatmul.mubr.bf16.gmra.mxu0 %v1323
    %v1400 = vpop.f32.mrf.mxu0
    %v1401 = vadd.f32 0.0, %v1400
    %v1402 = vpop.f32.mrf.mxu0
    %v1403 = vpop.f32.mrf.mxu0
    %v1404 = vadd.f32 0.0, %v1403
    %v1405 = vpop.f32.mrf.mxu0
    %1406 = vmatprep.mubr.bf16.mxu0 0
    %1407 = vmatmul.mubr.bf16.gmra.mxu0 %v1326
    %v1408 = vpop.f32.mrf.mxu0
    %v1409 = vadd.f32 0.0, %v1408
    %v1410 = vpop.f32.mrf.mxu0
    %v1411 = vpop.f32.mrf.mxu0
    %v1412 = vadd.f32 0.0, %v1411
    %v1413 = vpop.f32.mrf.mxu0
    %1414 = vmatprep.mubr.bf16.mxu0 0
    %1415 = vmatmul.mubr.bf16.gmra.mxu0 %v1329
    %v1416 = vpop.f32.mrf.mxu0
    %v1417 = vadd.f32 0.0, %v1416
    %v1418 = vpop.f32.mrf.mxu0
    %v1419 = vpop.f32.mrf.mxu0
    %v1420 = vadd.f32 0.0, %v1419
    %v1421 = vpop.f32.mrf.mxu0
    %1422 = vmatprep.mubr.bf16.mxu0 0
    %1423 = vmatmul.mubr.bf16.gmra.mxu0 %v1332
    %v1424 = vpop.f32.mrf.mxu0
    %v1425 = vadd.f32 0.0, %v1424
    %v1426 = vpop.f32.mrf.mxu0
    %v1427 = vpop.f32.mrf.mxu0
    %v1428 = vadd.f32 0.0, %v1427
    %v1429 = vpop.f32.mrf.mxu0
    %1430 = vdwg.mxu0
    %v1431 = vadd.f32 %v1216, %v1369
    %v1432 = vadd.f32 %v1220, %v1372
    %v1433 = vadd.f32 %v1226, %v1377
    %v1434 = vadd.f32 %v1230, %v1380
    %v1435 = vadd.f32 %v1236, %v1385
    %v1436 = vadd.f32 %v1240, %v1388
    %v1437 = vadd.f32 %v1246, %v1393
    %v1438 = vadd.f32 %v1250, %v1396
    %v1439 = vadd.f32 %v1256, %v1401
    %v1440 = vadd.f32 %v1260, %v1404
    %v1441 = vadd.f32 %v1266, %v1409
    %v1442 = vadd.f32 %v1270, %v1412
    %v1443 = vadd.f32 %v1276, %v1417
    %v1444 = vadd.f32 %v1280, %v1420
    %v1445 = vadd.f32 %v1286, %v1425
    %v1446 = vadd.f32 %v1290, %v1428
    %v1447 = vadd.f32 %v1431, %v1040
    %v1448 = vadd.f32 %v1432, %v1043
    %v1449 = vadd.f32 %v1433, %v1048
    %v1450 = vadd.f32 %v1434, %v1051
    %v1451 = vadd.f32 %v1435, %v1056
    %v1452 = vadd.f32 %v1436, %v1059
    %v1453 = vadd.f32 %v1437, %v1064
    %v1454 = vadd.f32 %v1438, %v1067
    %v1455 = vadd.f32 %v1439, %v1072
    %v1456 = vadd.f32 %v1440, %v1075
    %v1457 = vadd.f32 %v1441, %v1080
    %v1458 = vadd.f32 %v1442, %v1083
    %v1459 = vadd.f32 %v1443, %v1088
    %v1460 = vadd.f32 %v1444, %v1091
    %v1461 = vadd.f32 %v1445, %v1096
    %v1462 = vadd.f32 %v1446, %v1099
    %v1463 = vsub.f32 0.0, %v1447
    %v1464 = vsub.f32 0.0, %v1448
    %v1465 = vsub.f32 0.0, %v1449
    %v1466 = vsub.f32 0.0, %v1450
    %v1467 = vsub.f32 0.0, %v1451
    %v1468 = vsub.f32 0.0, %v1452
    %v1469 = vsub.f32 0.0, %v1453
    %v1470 = vsub.f32 0.0, %v1454
    %v1471 = vsub.f32 0.0, %v1455
    %v1472 = vsub.f32 0.0, %v1456
    %v1473 = vsub.f32 0.0, %v1457
    %v1474 = vsub.f32 0.0, %v1458
    %v1475 = vsub.f32 0.0, %v1459
    %v1476 = vsub.f32 0.0, %v1460
    %v1477 = vsub.f32 0.0, %v1461
    %v1478 = vsub.f32 0.0, %v1462
    %v1479 = vmul.f32 %v1463, 1.442695
    %v1480 = vpow.pop %v1479
    %v1481 = vmul.f32 %v1464, 1.442695
    %v1482 = vpow.pop %v1481
    %v1483 = vmul.f32 %v1465, 1.442695
    %v1484 = vpow.pop %v1483
    %v1485 = vmul.f32 %v1466, 1.442695
    %v1486 = vpow.pop %v1485
    %v1487 = vmul.f32 %v1467, 1.442695
    %v1488 = vpow.pop %v1487
    %v1489 = vmul.f32 %v1468, 1.442695
    %v1490 = vpow.pop %v1489
    %v1491 = vmul.f32 %v1469, 1.442695
    %v1492 = vpow.pop %v1491
    %v1493 = vmul.f32 %v1470, 1.442695
    %v1494 = vpow.pop %v1493
    %v1495 = vmul.f32 %v1471, 1.442695
    %v1496 = vpow.pop %v1495
    %v1497 = vmul.f32 %v1472, 1.442695
    %v1498 = vpow.pop %v1497
    %v1499 = vmul.f32 %v1473, 1.442695
    %v1500 = vpow.pop %v1499
    %v1501 = vmul.f32 %v1474, 1.442695
    %v1502 = vpow.pop %v1501
    %v1503 = vmul.f32 %v1475, 1.442695
    %v1504 = vpow.pop %v1503
    %v1505 = vmul.f32 %v1476, 1.442695
    %v1506 = vpow.pop %v1505
    %v1507 = vmul.f32 %v1477, 1.442695
    %v1508 = vpow.pop %v1507
    %v1509 = vmul.f32 %v1478, 1.442695
    %v1510 = vpow.pop %v1509
    %v1511 = vadd.f32 %v1480, 1.0
    %v1512 = vadd.f32 %v1482, 1.0
    %v1513 = vadd.f32 %v1484, 1.0
    %v1514 = vadd.f32 %v1486, 1.0
    %v1515 = vadd.f32 %v1488, 1.0
    %v1516 = vadd.f32 %v1490, 1.0
    %v1517 = vadd.f32 %v1492, 1.0
    %v1518 = vadd.f32 %v1494, 1.0
    %v1519 = vadd.f32 %v1496, 1.0
    %v1520 = vadd.f32 %v1498, 1.0
    %v1521 = vadd.f32 %v1500, 1.0
    %v1522 = vadd.f32 %v1502, 1.0
    %v1523 = vadd.f32 %v1504, 1.0
    %v1524 = vadd.f32 %v1506, 1.0
    %v1525 = vadd.f32 %v1508, 1.0
    %v1526 = vadd.f32 %v1510, 1.0
    %v1527 = vrcp.pop %v1511
    %v1528 = vrcp.pop %v1512
    %v1529 = vrcp.pop %v1513
    %v1530 = vrcp.pop %v1514
    %v1531 = vrcp.pop %v1515
    %v1532 = vrcp.pop %v1516
    %v1533 = vrcp.pop %v1517
    %v1534 = vrcp.pop %v1518
    %v1535 = vrcp.pop %v1519
    %v1536 = vrcp.pop %v1520
    %v1537 = vrcp.pop %v1521
    %v1538 = vrcp.pop %v1522
    %v1539 = vrcp.pop %v1523
    %v1540 = vrcp.pop %v1524
    %v1541 = vrcp.pop %v1525
    %v1542 = vrcp.pop %v1526
    %v1543 = vadd.f32 %v903, %v1447
    %v1544 = vadd.f32 %v904, %v1448
    %v1545 = vadd.f32 %v905, %v1449
    %v1546 = vadd.f32 %v906, %v1450
    %v1547 = vadd.f32 %v907, %v1451
    %v1548 = vadd.f32 %v908, %v1452
    %v1549 = vadd.f32 %v909, %v1453
    %v1550 = vadd.f32 %v910, %v1454
    %v1551 = vadd.f32 %v911, %v1455
    %v1552 = vadd.f32 %v912, %v1456
    %v1553 = vadd.f32 %v913, %v1457
    %v1554 = vadd.f32 %v914, %v1458
    %v1555 = vadd.f32 %v915, %v1459
    %v1556 = vadd.f32 %v916, %v1460
    %v1557 = vadd.f32 %v917, %v1461
    %v1558 = vadd.f32 %v918, %v1462
    %1559 = vst [vmem:[#allocation21] sm:$0xff] %v1543
    %1560 = vst [vmem:[#allocation21 + $0x8] sm:$0xff] %v1544
    %1561 = vst [vmem:[#allocation21 + $0x10] sm:$0xff] %v1545
    %1562 = vst [vmem:[#allocation21 + $0x18] sm:$0xff] %v1546
    %1563 = vst [vmem:[#allocation21 + $0x20] sm:$0xff] %v1547
    %1564 = vst [vmem:[#allocation21 + $0x28] sm:$0xff] %v1548
    %1565 = vst [vmem:[#allocation21 + $0x30] sm:$0xff] %v1549
    %1566 = vst [vmem:[#allocation21 + $0x38] sm:$0xff] %v1550
    %1567 = vst [vmem:[#allocation21 + $0x40] sm:$0xff] %v1551
    %1568 = vst [vmem:[#allocation21 + $0x48] sm:$0xff] %v1552
    %1569 = vst [vmem:[#allocation21 + $0x50] sm:$0xff] %v1553
    %1570 = vst [vmem:[#allocation21 + $0x58] sm:$0xff] %v1554
    %1571 = vst [vmem:[#allocation21 + $0x60] sm:$0xff] %v1555
    %1572 = vst [vmem:[#allocation21 + $0x68] sm:$0xff] %v1556
    %1573 = vst [vmem:[#allocation21 + $0x70] sm:$0xff] %v1557
    %1574 = vst [vmem:[#allocation21 + $0x78] sm:$0xff] %v1558
    %v1575 = vstv 0
    %v1576 = vadd.s32 %v569, %v1575
    %v1577 = vadd.s32 %v570, %v1575
    %v1578 = vadd.s32 %v571, %v1575
    %v1579 = vadd.s32 %v572, %v1575
    %v1580 = vadd.s32 %v573, %v1575
    %v1581 = vadd.s32 %v574, %v1575
    %v1582 = vadd.s32 %v575, %v1575
    %v1583 = vadd.s32 %v576, %v1575
    %v1584 = vadd.s32 %v577, %v1575
    %v1585 = vadd.s32 %v578, %v1575
    %v1586 = vadd.s32 %v579, %v1575
    %v1587 = vadd.s32 %v580, %v1575
    %v1588 = vadd.s32 %v581, %v1575
    %v1589 = vadd.s32 %v582, %v1575
    %v1590 = vadd.s32 %v583, %v1575
    %v1591 = vadd.s32 %v584, %v1575
    %vm1592 = vcmp.lt.s32.totalorder %v1576, 200
    %vm1593 = vcmp.lt.s32.totalorder %v1577, 200
    %vm1594 = vcmp.lt.s32.totalorder %v1578, 200
    %vm1595 = vcmp.lt.s32.totalorder %v1579, 200
    %vm1596 = vcmp.lt.s32.totalorder %v1580, 200
    %vm1597 = vcmp.lt.s32.totalorder %v1581, 200
    %vm1598 = vcmp.lt.s32.totalorder %v1582, 200
    %vm1599 = vcmp.lt.s32.totalorder %v1583, 200
    %vm1600 = vcmp.lt.s32.totalorder %v1584, 200
    %vm1601 = vcmp.lt.s32.totalorder %v1585, 200
    %vm1602 = vcmp.lt.s32.totalorder %v1586, 200
    %vm1603 = vcmp.lt.s32.totalorder %v1587, 200
    %vm1604 = vcmp.lt.s32.totalorder %v1588, 200
    %vm1605 = vcmp.lt.s32.totalorder %v1589, 200
    %vm1606 = vcmp.lt.s32.totalorder %v1590, 200
    %vm1607 = vcmp.lt.s32.totalorder %v1591, 200
    %v1608 = vsel %vm1592, 1, 0
    %v1609 = vsel %vm1593, 1, 0
    %v1610 = vsel %vm1594, 1, 0
    %v1611 = vsel %vm1595, 1, 0
    %v1612 = vsel %vm1596, 1, 0
    %v1613 = vsel %vm1597, 1, 0
    %v1614 = vsel %vm1598, 1, 0
    %v1615 = vsel %vm1599, 1, 0
    %v1616 = vsel %vm1600, 1, 0
    %v1617 = vsel %vm1601, 1, 0
    %v1618 = vsel %vm1602, 1, 0
    %v1619 = vsel %vm1603, 1, 0
    %v1620 = vsel %vm1604, 1, 0
    %v1621 = vsel %vm1605, 1, 0
    %v1622 = vsel %vm1606, 1, 0
    %v1623 = vsel %vm1607, 1, 0
    %v1624 = vcvt.s32.f32 %v1608
    %v1625 = vcvt.s32.f32 %v1609
    %v1626 = vcvt.s32.f32 %v1610
    %v1627 = vcvt.s32.f32 %v1611
    %v1628 = vcvt.s32.f32 %v1612
    %v1629 = vcvt.s32.f32 %v1613
    %v1630 = vcvt.s32.f32 %v1614
    %v1631 = vcvt.s32.f32 %v1615
    %v1632 = vcvt.s32.f32 %v1616
    %v1633 = vcvt.s32.f32 %v1617
    %v1634 = vcvt.s32.f32 %v1618
    %v1635 = vcvt.s32.f32 %v1619
    %v1636 = vcvt.s32.f32 %v1620
    %v1637 = vcvt.s32.f32 %v1621
    %v1638 = vcvt.s32.f32 %v1622
    %v1639 = vcvt.s32.f32 %v1623
    %v1640 = vmul.f32 %v1543, %v1624
    %v1641 = vmul.f32 %v1544, %v1625
    %v1642 = vmul.f32 %v1545, %v1626
    %v1643 = vmul.f32 %v1546, %v1627
    %v1644 = vmul.f32 %v1547, %v1628
    %v1645 = vmul.f32 %v1548, %v1629
    %v1646 = vmul.f32 %v1549, %v1630
    %v1647 = vmul.f32 %v1550, %v1631
    %v1648 = vmul.f32 %v1551, %v1632
    %v1649 = vmul.f32 %v1552, %v1633
    %v1650 = vmul.f32 %v1553, %v1634
    %v1651 = vmul.f32 %v1554, %v1635
    %v1652 = vmul.f32 %v1555, %v1636
    %v1653 = vmul.f32 %v1556, %v1637
    %v1654 = vmul.f32 %v1557, %v1638
    %v1655 = vmul.f32 %v1558, %v1639
    %v1656 = vadd.f32 %v1640, %v1641
    %v1657 = vadd.f32 %v1656, %v1642
    %v1658 = vadd.f32 %v1657, %v1643
    %v1659 = vadd.f32 %v1658, %v1644
    %v1660 = vadd.f32 %v1659, %v1645
    %v1661 = vadd.f32 %v1660, %v1646
    %v1662 = vadd.f32 %v1661, %v1647
    %v1663 = vadd.f32 %v1662, %v1648
    %v1664 = vadd.f32 %v1663, %v1649
    %v1665 = vadd.f32 %v1664, %v1650
    %v1666 = vadd.f32 %v1665, %v1651
    %v1667 = vadd.f32 %v1666, %v1652
    %v1668 = vadd.f32 %v1667, %v1653
    %v1669 = vadd.f32 %v1668, %v1654
    %v1670 = vadd.f32 %v1669, %v1655
    %v1671 = vrot.slane %v1670, 4
    %v1672 = vadd.f32 %v1670, %v1671
    %v1673 = vrot.slane %v1672, 2
    %v1674 = vadd.f32 %v1672, %v1673
    %v1675 = vrot.slane %v1674, 1
    %v1676 = vadd.f32 %v1674, %v1675
    %v1677 = vadd.f32 %v1676, 0.0
    %v1678 = vmul.f32 %v1543, %v1543
    %v1679 = vmul.f32 %v1544, %v1544
    %v1680 = vmul.f32 %v1545, %v1545
    %v1681 = vmul.f32 %v1546, %v1546
    %v1682 = vmul.f32 %v1547, %v1547
    %v1683 = vmul.f32 %v1548, %v1548
    %v1684 = vmul.f32 %v1549, %v1549
    %v1685 = vmul.f32 %v1550, %v1550
    %v1686 = vmul.f32 %v1551, %v1551
    %v1687 = vmul.f32 %v1552, %v1552
    %v1688 = vmul.f32 %v1553, %v1553
    %v1689 = vmul.f32 %v1554, %v1554
    %v1690 = vmul.f32 %v1555, %v1555
    %v1691 = vmul.f32 %v1556, %v1556
    %v1692 = vmul.f32 %v1557, %v1557
    %v1693 = vmul.f32 %v1558, %v1558
    %v1694 = vmul.f32 %v1678, %v1624
    %v1695 = vmul.f32 %v1679, %v1625
    %v1696 = vmul.f32 %v1680, %v1626
    %v1697 = vmul.f32 %v1681, %v1627
    %v1698 = vmul.f32 %v1682, %v1628
    %v1699 = vmul.f32 %v1683, %v1629
    %v1700 = vmul.f32 %v1684, %v1630
    %v1701 = vmul.f32 %v1685, %v1631
    %v1702 = vmul.f32 %v1686, %v1632
    %v1703 = vmul.f32 %v1687, %v1633
    %v1704 = vmul.f32 %v1688, %v1634
    %v1705 = vmul.f32 %v1689, %v1635
    %v1706 = vmul.f32 %v1690, %v1636
    %v1707 = vmul.f32 %v1691, %v1637
    %v1708 = vmul.f32 %v1692, %v1638
    %v1709 = vmul.f32 %v1693, %v1639
    %v1710 = vadd.f32 %v1694, %v1695
    %v1711 = vadd.f32 %v1710, %v1696
    %v1712 = vadd.f32 %v1711, %v1697
    %v1713 = vadd.f32 %v1712, %v1698
    %v1714 = vadd.f32 %v1713, %v1699
    %v1715 = vadd.f32 %v1714, %v1700
    %v1716 = vadd.f32 %v1715, %v1701
    %v1717 = vadd.f32 %v1716, %v1702
    %v1718 = vadd.f32 %v1717, %v1703
    %v1719 = vadd.f32 %v1718, %v1704
    %v1720 = vadd.f32 %v1719, %v1705
    %v1721 = vadd.f32 %v1720, %v1706
    %v1722 = vadd.f32 %v1721, %v1707
    %v1723 = vadd.f32 %v1722, %v1708
    %v1724 = vadd.f32 %v1723, %v1709
    %v1725 = vrot.slane %v1724, 4
    %v1726 = vadd.f32 %v1724, %v1725
    %v1727 = vrot.slane %v1726, 2
    %v1728 = vadd.f32 %v1726, %v1727
    %v1729 = vrot.slane %v1728, 1
    %v1730 = vadd.f32 %v1728, %v1729
    %v1731 = vadd.f32 %v1730, 0.0
    %v1732 = vmul.f32 %v1218, %v1527
    %v1733 = vmul.f32 %v1222, %v1528
    %v1734 = vmul.f32 %v1228, %v1529
    %v1735 = vmul.f32 %v1232, %v1530
    %v1736 = vmul.f32 %v1238, %v1531
    %v1737 = vmul.f32 %v1242, %v1532
    %v1738 = vmul.f32 %v1248, %v1533
    %v1739 = vmul.f32 %v1252, %v1534
    %v1740 = vmul.f32 %v1258, %v1535
    %v1741 = vmul.f32 %v1262, %v1536
    %v1742 = vmul.f32 %v1268, %v1537
    %v1743 = vmul.f32 %v1272, %v1538
    %v1744 = vmul.f32 %v1278, %v1539
    %v1745 = vmul.f32 %v1282, %v1540
    %v1746 = vmul.f32 %v1288, %v1541
    %v1747 = vmul.f32 %v1292, %v1542
    %v1748 = vpack.c.bf16 %v1733, %v1732
    %v1749 = vpack.c.bf16 %v1528, %v1527
    %v1750 = vpack.c.bf16 %v1735, %v1734
    %v1751 = vpack.c.bf16 %v1530, %v1529
    %v1752 = vpack.c.bf16 %v1737, %v1736
    %v1753 = vpack.c.bf16 %v1532, %v1531
    %v1754 = vpack.c.bf16 %v1739, %v1738
    %v1755 = vpack.c.bf16 %v1534, %v1533
    %v1756 = vpack.c.bf16 %v1741, %v1740
    %v1757 = vpack.c.bf16 %v1536, %v1535
    %v1758 = vpack.c.bf16 %v1743, %v1742
    %v1759 = vpack.c.bf16 %v1538, %v1537
    %v1760 = vpack.c.bf16 %v1745, %v1744
    %v1761 = vpack.c.bf16 %v1540, %v1539
    %v1762 = vpack.c.bf16 %v1747, %v1746
    %v1763 = vpack.c.bf16 %v1542, %v1541
    %v1764 = vld [vmem:[#allocation7 + $0x1] sm:$0x1]
    %v1765 = vld [vmem:[#allocation8 + $0x1] sm:$0x1]
    %s1766 = scalar_lea.vmem [#allocation5], 128
    %v1767 = vld [vmem:[%s1766] sm:$0xff]
    %v1768 = vld [vmem:[%s1766 + $0x8] sm:$0xff]
    %v1769 = vld [vmem:[%s1766 + $0x10] sm:$0xff]
    %v1770 = vld [vmem:[%s1766 + $0x18] sm:$0xff]
    %v1771 = vld [vmem:[%s1766 + $0x20] sm:$0xff]
    %v1772 = vld [vmem:[%s1766 + $0x28] sm:$0xff]
    %v1773 = vld [vmem:[%s1766 + $0x30] sm:$0xff]
    %v1774 = vld [vmem:[%s1766 + $0x38] sm:$0xff]
    %v1775 = vld [vmem:[%s1766 + $0x40] sm:$0xff]
    %v1776 = vld [vmem:[%s1766 + $0x48] sm:$0xff]
    %v1777 = vld [vmem:[%s1766 + $0x50] sm:$0xff]
    %v1778 = vld [vmem:[%s1766 + $0x58] sm:$0xff]
    %v1779 = vld [vmem:[%s1766 + $0x60] sm:$0xff]
    %v1780 = vld [vmem:[%s1766 + $0x68] sm:$0xff]
    %v1781 = vld [vmem:[%s1766 + $0x70] sm:$0xff]
    %v1782 = vld [vmem:[%s1766 + $0x78] sm:$0xff]
    %v1783 = vsub.f32 %v1767, %v766
    %v1784 = vsub.f32 %v1768, %v766
    %v1785 = vsub.f32 %v1769, %v766
    %v1786 = vsub.f32 %v1770, %v766
    %v1787 = vsub.f32 %v1771, %v766
    %v1788 = vsub.f32 %v1772, %v766
    %v1789 = vsub.f32 %v1773, %v766
    %v1790 = vsub.f32 %v1774, %v766
    %v1791 = vsub.f32 %v1775, %v766
    %v1792 = vsub.f32 %v1776, %v766
    %v1793 = vsub.f32 %v1777, %v766
    %v1794 = vsub.f32 %v1778, %v766
    %v1795 = vsub.f32 %v1779, %v766
    %v1796 = vsub.f32 %v1780, %v766
    %v1797 = vsub.f32 %v1781, %v766
    %v1798 = vsub.f32 %v1782, %v766
    %v1799 = vmul.f32 %v1783, %v873
    %v1800 = vmul.f32 %v1784, %v873
    %v1801 = vmul.f32 %v1785, %v873
    %v1802 = vmul.f32 %v1786, %v873
    %v1803 = vmul.f32 %v1787, %v873
    %v1804 = vmul.f32 %v1788, %v873
    %v1805 = vmul.f32 %v1789, %v873
    %v1806 = vmul.f32 %v1790, %v873
    %v1807 = vmul.f32 %v1791, %v873
    %v1808 = vmul.f32 %v1792, %v873
    %v1809 = vmul.f32 %v1793, %v873
    %v1810 = vmul.f32 %v1794, %v873
    %v1811 = vmul.f32 %v1795, %v873
    %v1812 = vmul.f32 %v1796, %v873
    %v1813 = vmul.f32 %v1797, %v873
    %v1814 = vmul.f32 %v1798, %v873
    %v1815 = vmul.f32 %v1799, %v954
    %v1816 = vmul.f32 %v1800, %v954
    %v1817 = vmul.f32 %v1801, %v954
    %v1818 = vmul.f32 %v1802, %v954
    %v1819 = vmul.f32 %v1803, %v954
    %v1820 = vmul.f32 %v1804, %v954
    %v1821 = vmul.f32 %v1805, %v954
    %v1822 = vmul.f32 %v1806, %v954
    %v1823 = vmul.f32 %v1807, %v954
    %v1824 = vmul.f32 %v1808, %v954
    %v1825 = vmul.f32 %v1809, %v954
    %v1826 = vmul.f32 %v1810, %v954
    %v1827 = vmul.f32 %v1811, %v954
    %v1828 = vmul.f32 %v1812, %v954
    %v1829 = vmul.f32 %v1813, %v954
    %v1830 = vmul.f32 %v1814, %v954
    %v1831 = vadd.f32 %v1815, %v974
    %v1832 = vadd.f32 %v1816, %v974
    %v1833 = vadd.f32 %v1817, %v974
    %v1834 = vadd.f32 %v1818, %v974
    %v1835 = vadd.f32 %v1819, %v974
    %v1836 = vadd.f32 %v1820, %v974
    %v1837 = vadd.f32 %v1821, %v974
    %v1838 = vadd.f32 %v1822, %v974
    %v1839 = vadd.f32 %v1823, %v974
    %v1840 = vadd.f32 %v1824, %v974
    %v1841 = vadd.f32 %v1825, %v974
    %v1842 = vadd.f32 %v1826, %v974
    %v1843 = vadd.f32 %v1827, %v974
    %v1844 = vadd.f32 %v1828, %v974
    %v1845 = vadd.f32 %v1829, %v974
    %v1846 = vadd.f32 %v1830, %v974
    %v1847 = vpack.c.bf16 %v1832, %v1831
    %v1848 = vpack.c.bf16 %v1834, %v1833
    %v1849 = vpack.c.bf16 %v1836, %v1835
    %v1850 = vpack.c.bf16 %v1838, %v1837
    %v1851 = vpack.c.bf16 %v1840, %v1839
    %v1852 = vpack.c.bf16 %v1842, %v1841
    %v1853 = vpack.c.bf16 %v1844, %v1843
    %v1854 = vpack.c.bf16 %v1846, %v1845
    %1855 = vmatprep.subr.bf16.mxu0 0
    %1856 = vmatpush1.bf16.msra.mxu0 %v899
    %1857 = vmatprep.subr.bf16.mxu0 0
    %1858 = vmatpush1.bf16.msra.mxu0 %v898
    %1859 = vmatprep.subr.bf16.mxu0 0
    %1860 = vmatpush1.bf16.msra.mxu0 %v897
    %1861 = vmatprep.subr.bf16.mxu0 0
    %1862 = vmatpush1.bf16.msra.mxu0 %v896
    %1863 = vmatprep.subr.bf16.mxu0 0
    %1864 = vmatpush1.bf16.msra.mxu0 %v895
    %1865 = vmatprep.subr.bf16.mxu0 0
    %1866 = vmatpush1.bf16.msra.mxu0 %v894
    %1867 = vmatprep.subr.bf16.mxu0 0
    %1868 = vmatpush1.bf16.msra.mxu0 %v893
    %1869 = vmatprep.subr.bf16.mxu0 0
    %1870 = vmatpush1.bf16.msra.mxu0 %v892
    %1871 = vmatprep.subr.bf16.mxu0 0
    %1872 = vmatpush2.bf16.msra.mxu0 0
    %1873 = vmatprep.subr.bf16.mxu0 0
    %1874 = vmatpush2.bf16.msra.mxu0 0
    %1875 = vmatprep.subr.bf16.mxu0 0
    %1876 = vmatpush2.bf16.msra.mxu0 0
    %1877 = vmatprep.subr.bf16.mxu0 0
    %1878 = vmatpush2.bf16.msra.mxu0 0
    %1879 = vmatprep.subr.bf16.mxu0 0
    %1880 = vmatpush2.bf16.msra.mxu0 0
    %1881 = vmatprep.subr.bf16.mxu0 0
    %1882 = vmatpush2.bf16.msra.mxu0 0
    %1883 = vmatprep.subr.bf16.mxu0 0
    %1884 = vmatpush2.bf16.msra.mxu0 0
    %1885 = vmatprep.subr.bf16.mxu0 0
    %1886 = vmatpush2.bf16.msra.mxu0 0
    %1887 = vmatprep.mubr.bf16.mxu0 0
    %1888 = vmatmul.mubr.bf16.gmra.mxu0 %v1847
    %v1889 = vpop.f32.mrf.mxu0
    %v1890 = vadd.f32 %v1003, %v1889
    %v1891 = vpop.f32.mrf.mxu0
    %v1892 = vpop.f32.mrf.mxu0
    %v1893 = vadd.f32 %v1003, %v1892
    %v1894 = vpop.f32.mrf.mxu0
    %1895 = vmatprep.mubr.bf16.mxu0 0
    %1896 = vmatmul.mubr.bf16.gmra.mxu0 %v1848
    %v1897 = vpop.f32.mrf.mxu0
    %v1898 = vadd.f32 %v1003, %v1897
    %v1899 = vpop.f32.mrf.mxu0
    %v1900 = vpop.f32.mrf.mxu0
    %v1901 = vadd.f32 %v1003, %v1900
    %v1902 = vpop.f32.mrf.mxu0
    %1903 = vmatprep.mubr.bf16.mxu0 0
    %1904 = vmatmul.mubr.bf16.gmra.mxu0 %v1849
    %v1905 = vpop.f32.mrf.mxu0
    %v1906 = vadd.f32 %v1003, %v1905
    %v1907 = vpop.f32.mrf.mxu0
    %v1908 = vpop.f32.mrf.mxu0
    %v1909 = vadd.f32 %v1003, %v1908
    %v1910 = vpop.f32.mrf.mxu0
    %1911 = vmatprep.mubr.bf16.mxu0 0
    %1912 = vmatmul.mubr.bf16.gmra.mxu0 %v1850
    %v1913 = vpop.f32.mrf.mxu0
    %v1914 = vadd.f32 %v1003, %v1913
    %v1915 = vpop.f32.mrf.mxu0
    %v1916 = vpop.f32.mrf.mxu0
    %v1917 = vadd.f32 %v1003, %v1916
    %v1918 = vpop.f32.mrf.mxu0
    %1919 = vmatprep.mubr.bf16.mxu0 0
    %1920 = vmatmul.mubr.bf16.gmra.mxu0 %v1851
    %v1921 = vpop.f32.mrf.mxu0
    %v1922 = vadd.f32 %v1003, %v1921
    %v1923 = vpop.f32.mrf.mxu0
    %v1924 = vpop.f32.mrf.mxu0
    %v1925 = vadd.f32 %v1003, %v1924
    %v1926 = vpop.f32.mrf.mxu0
    %1927 = vmatprep.mubr.bf16.mxu0 0
    %1928 = vmatmul.mubr.bf16.gmra.mxu0 %v1852
    %v1929 = vpop.f32.mrf.mxu0
    %v1930 = vadd.f32 %v1003, %v1929
    %v1931 = vpop.f32.mrf.mxu0
    %v1932 = vpop.f32.mrf.mxu0
    %v1933 = vadd.f32 %v1003, %v1932
    %v1934 = vpop.f32.mrf.mxu0
    %1935 = vmatprep.mubr.bf16.mxu0 0
    %1936 = vmatmul.mubr.bf16.gmra.mxu0 %v1853
    %v1937 = vpop.f32.mrf.mxu0
    %v1938 = vadd.f32 %v1003, %v1937
    %v1939 = vpop.f32.mrf.mxu0
    %v1940 = vpop.f32.mrf.mxu0
    %v1941 = vadd.f32 %v1003, %v1940
    %v1942 = vpop.f32.mrf.mxu0
    %1943 = vmatprep.mubr.bf16.mxu0 0
    %1944 = vmatmul.mubr.bf16.gmra.mxu0 %v1854
    %v1945 = vpop.f32.mrf.mxu0
    %v1946 = vadd.f32 %v1003, %v1945
    %v1947 = vpop.f32.mrf.mxu0
    %v1948 = vpop.f32.mrf.mxu0
    %v1949 = vadd.f32 %v1003, %v1948
    %v1950 = vpop.f32.mrf.mxu0
    %1951 = vdwg.mxu0
    %v1952 = vlaneseq
    %v1953 = vshrl.u32 %v1952, 7
    %v1954 = vsub.s32 0, %v1953
    %v1955 = vrot.slane %v1764, %v1954
    %vm1956 = vcmp.eq.s32.totalorder %v569, %v1955
    %vm1957 = vcmp.eq.s32.totalorder %v570, %v1955
    %vm1958 = vcmp.eq.s32.totalorder %v571, %v1955
    %vm1959 = vcmp.eq.s32.totalorder %v572, %v1955
    %vm1960 = vcmp.eq.s32.totalorder %v573, %v1955
    %vm1961 = vcmp.eq.s32.totalorder %v574, %v1955
    %v1962 = vsel %vm1956, 1.0, 0.0
    %v1963 = vsel %vm1957, 1.0, 0.0
    %v1964 = vsel %vm1958, 1.0, 0.0
    %v1965 = vsel %vm1959, 1.0, 0.0
    %v1966 = vsel %vm1960, 1.0, 0.0
    %v1967 = vsel %vm1961, 1.0, 0.0
    %v1968 = vpack.c.bf16 %v1963, %v1962
    %v1969 = vpack.c.bf16 %v1965, %v1964
    %v1970 = vpack.c.bf16 %v1967, %v1966
    %v1971 = vlaneseq
    %v1972 = vshrl.u32 %v1971, 7
    %v1973 = vsub.s32 0, %v1972
    %v1974 = vrot.slane %v1765, %v1973
    %vm1975 = vcmp.eq.s32.totalorder %v569, %v1974
    %vm1976 = vcmp.eq.s32.totalorder %v570, %v1974
    %vm1977 = vcmp.eq.s32.totalorder %v571, %v1974
    %vm1978 = vcmp.eq.s32.totalorder %v572, %v1974
    %vm1979 = vcmp.eq.s32.totalorder %v573, %v1974
    %vm1980 = vcmp.eq.s32.totalorder %v574, %v1974
    %v1981 = vsel %vm1975, 1.0, 0.0
    %v1982 = vsel %vm1976, 1.0, 0.0
    %v1983 = vsel %vm1977, 1.0, 0.0
    %v1984 = vsel %vm1978, 1.0, 0.0
    %v1985 = vsel %vm1979, 1.0, 0.0
    %v1986 = vsel %vm1980, 1.0, 0.0
    %v1987 = vpack.c.bf16 %v1982, %v1981
    %v1988 = vpack.c.bf16 %v1984, %v1983
    %v1989 = vpack.c.bf16 %v1986, %v1985
    %1990 = vxpose.xlu0.c.b16.start [1/8] %v1968, 128
    %1991 = vxpose.xlu0.c.b16.cont [2/8] %v1969, 128
    %1992 = vxpose.xlu0.c.b16.cont [3/8] %v1970, 128
    %1993 = vxpose.xlu0.c.b16.cont [4/8] 0, 128
    %1994 = vxpose.xlu0.c.b16.cont [5/8] 0, 128
    %1995 = vxpose.xlu0.c.b16.cont [6/8] 0, 128
    %1996 = vxpose.xlu0.c.b16.cont [7/8] 0, 128
    %1997 = vxpose.xlu0.c.b16.end [8/8] 0, 128
    %v1998 = vpop.trf.xlu0
    %v1999 = vpop.trf.xlu0
    %v2000 = vpop.trf.xlu0
    %v2001 = vpop.trf.xlu0
    %v2002 = vpop.trf.xlu0
    %v2003 = vpop.trf.xlu0
    %v2004 = vpop.trf.xlu0
    %v2005 = vpop.trf.xlu0
    %v2007 = vsel %vm1156, %v1998, 0
    %v2010 = vsel %vm1156, %v1999, 0
    %v2013 = vsel %vm1156, %v2000, 0
    %v2016 = vsel %vm1156, %v2001, 0
    %v2019 = vsel %vm1156, %v2002, 0
    %v2022 = vsel %vm1156, %v2003, 0
    %v2025 = vsel %vm1156, %v2004, 0
    %v2028 = vsel %vm1156, %v2005, 0
    %2030 = vmatprep.subr.bf16.mxu0 0
    %2031 = vmatpush1.bf16.msra.mxu0 0
    %2032 = vmatprep.subr.bf16.mxu0 0
    %2033 = vmatpush1.bf16.msra.mxu0 0
    %2034 = vmatprep.subr.bf16.mxu0 0
    %2035 = vmatpush1.bf16.msra.mxu0 0
    %2036 = vmatprep.subr.bf16.mxu0 0
    %2037 = vmatpush1.bf16.msra.mxu0 0
    %2038 = vmatprep.subr.bf16.mxu0 0
    %2039 = vmatpush1.bf16.msra.mxu0 0
    %2040 = vmatprep.subr.bf16.mxu0 %v532
    %2041 = vmatpush1.bf16.msra.mxu0 %v531
    %2042 = vmatprep.subr.bf16.mxu0 %v530
    %2043 = vmatpush1.bf16.msra.mxu0 %v529
    %2044 = vmatprep.subr.bf16.mxu0 %v528
    %2045 = vmatpush1.bf16.msra.mxu0 %v527
    %2046 = vmatprep.subr.bf16.mxu0 0
    %2047 = vmatpush2.bf16.msra.mxu0 0
    %2048 = vmatprep.subr.bf16.mxu0 0
    %2049 = vmatpush2.bf16.msra.mxu0 0
    %2050 = vmatprep.subr.bf16.mxu0 0
    %2051 = vmatpush2.bf16.msra.mxu0 0
    %2052 = vmatprep.subr.bf16.mxu0 0
    %2053 = vmatpush2.bf16.msra.mxu0 0
    %2054 = vmatprep.subr.bf16.mxu0 0
    %2055 = vmatpush2.bf16.msra.mxu0 0
    %2056 = vmatprep.subr.bf16.mxu0 0
    %2057 = vmatpush2.bf16.msra.mxu0 0
    %2058 = vmatprep.subr.bf16.mxu0 0
    %2059 = vmatpush2.bf16.msra.mxu0 0
    %2060 = vmatprep.subr.bf16.mxu0 0
    %2061 = vmatpush2.bf16.msra.mxu0 0
    %2062 = vmatprep.mubr.bf16.mxu0 0
    %2063 = vmatmul.mubr.bf16.gmra.mxu0 %v2007
    %v2064 = vpop.f32.mrf.mxu0
    %v2065 = vadd.f32 0.0, %v2064
    %v2066 = vpop.f32.mrf.mxu0
    %v2067 = vadd.f32 0.0, %v2066
    %v2068 = vpop.f32.mrf.mxu0
    %v2069 = vadd.f32 0.0, %v2068
    %v2070 = vpop.f32.mrf.mxu0
    %v2071 = vadd.f32 0.0, %v2070
    %2072 = vmatprep.mubr.bf16.mxu0 0
    %2073 = vmatmul.mubr.bf16.gmra.mxu0 %v2010
    %v2074 = vpop.f32.mrf.mxu0
    %v2075 = vadd.f32 0.0, %v2074
    %v2076 = vpop.f32.mrf.mxu0
    %v2077 = vadd.f32 0.0, %v2076
    %v2078 = vpop.f32.mrf.mxu0
    %v2079 = vadd.f32 0.0, %v2078
    %v2080 = vpop.f32.mrf.mxu0
    %v2081 = vadd.f32 0.0, %v2080
    %2082 = vmatprep.mubr.bf16.mxu0 0
    %2083 = vmatmul.mubr.bf16.gmra.mxu0 %v2013
    %v2084 = vpop.f32.mrf.mxu0
    %v2085 = vadd.f32 0.0, %v2084
    %v2086 = vpop.f32.mrf.mxu0
    %v2087 = vadd.f32 0.0, %v2086
    %v2088 = vpop.f32.mrf.mxu0
    %v2089 = vadd.f32 0.0, %v2088
    %v2090 = vpop.f32.mrf.mxu0
    %v2091 = vadd.f32 0.0, %v2090
    %2092 = vmatprep.mubr.bf16.mxu0 0
    %2093 = vmatmul.mubr.bf16.gmra.mxu0 %v2016
    %v2094 = vpop.f32.mrf.mxu0
    %v2095 = vadd.f32 0.0, %v2094
    %v2096 = vpop.f32.mrf.mxu0
    %v2097 = vadd.f32 0.0, %v2096
    %v2098 = vpop.f32.mrf.mxu0
    %v2099 = vadd.f32 0.0, %v2098
    %v2100 = vpop.f32.mrf.mxu0
    %v2101 = vadd.f32 0.0, %v2100
    %2102 = vmatprep.mubr.bf16.mxu0 0
    %2103 = vmatmul.mubr.bf16.gmra.mxu0 %v2019
    %v2104 = vpop.f32.mrf.mxu0
    %v2105 = vadd.f32 0.0, %v2104
    %v2106 = vpop.f32.mrf.mxu0
    %v2107 = vadd.f32 0.0, %v2106
    %v2108 = vpop.f32.mrf.mxu0
    %v2109 = vadd.f32 0.0, %v2108
    %v2110 = vpop.f32.mrf.mxu0
    %v2111 = vadd.f32 0.0, %v2110
    %2112 = vmatprep.mubr.bf16.mxu0 0
    %2113 = vmatmul.mubr.bf16.gmra.mxu0 %v2022
    %v2114 = vpop.f32.mrf.mxu0
    %v2115 = vadd.f32 0.0, %v2114
    %v2116 = vpop.f32.mrf.mxu0
    %v2117 = vadd.f32 0.0, %v2116
    %v2118 = vpop.f32.mrf.mxu0
    %v2119 = vadd.f32 0.0, %v2118
    %v2120 = vpop.f32.mrf.mxu0
    %v2121 = vadd.f32 0.0, %v2120
    %2122 = vmatprep.mubr.bf16.mxu0 0
    %2123 = vmatmul.mubr.bf16.gmra.mxu0 %v2025
    %v2124 = vpop.f32.mrf.mxu0
    %v2125 = vadd.f32 0.0, %v2124
    %v2126 = vpop.f32.mrf.mxu0
    %v2127 = vadd.f32 0.0, %v2126
    %v2128 = vpop.f32.mrf.mxu0
    %v2129 = vadd.f32 0.0, %v2128
    %v2130 = vpop.f32.mrf.mxu0
    %v2131 = vadd.f32 0.0, %v2130
    %2132 = vmatprep.mubr.bf16.mxu0 0
    %2133 = vmatmul.mubr.bf16.gmra.mxu0 %v2028
    %v2134 = vpop.f32.mrf.mxu0
    %v2135 = vadd.f32 0.0, %v2134
    %v2136 = vpop.f32.mrf.mxu0
    %v2137 = vadd.f32 0.0, %v2136
    %v2138 = vpop.f32.mrf.mxu0
    %v2139 = vadd.f32 0.0, %v2138
    %v2140 = vpop.f32.mrf.mxu0
    %v2141 = vadd.f32 0.0, %v2140
    %2142 = vdwg.mxu0
    %2143 = vxpose.xlu0.c.b16.start [1/8] %v1987, 128
    %2144 = vxpose.xlu0.c.b16.cont [2/8] %v1988, 128
    %2145 = vxpose.xlu0.c.b16.cont [3/8] %v1989, 128
    %2146 = vxpose.xlu0.c.b16.cont [4/8] 0, 128
    %2147 = vxpose.xlu0.c.b16.cont [5/8] 0, 128
    %2148 = vxpose.xlu0.c.b16.cont [6/8] 0, 128
    %2149 = vxpose.xlu0.c.b16.cont [7/8] 0, 128
    %2150 = vxpose.xlu0.c.b16.end [8/8] 0, 128
    %v2151 = vpop.trf.xlu0
    %v2152 = vpop.trf.xlu0
    %v2153 = vpop.trf.xlu0
    %v2154 = vpop.trf.xlu0
    %v2155 = vpop.trf.xlu0
    %v2156 = vpop.trf.xlu0
    %v2157 = vpop.trf.xlu0
    %v2158 = vpop.trf.xlu0
    %v2160 = vsel %vm1156, %v2151, 0
    %v2163 = vsel %vm1156, %v2152, 0
    %v2166 = vsel %vm1156, %v2153, 0
    %v2169 = vsel %vm1156, %v2154, 0
    %v2172 = vsel %vm1156, %v2155, 0
    %v2175 = vsel %vm1156, %v2156, 0
    %v2178 = vsel %vm1156, %v2157, 0
    %v2181 = vsel %vm1156, %v2158, 0
    %2183 = vmatprep.subr.bf16.mxu0 0
    %2184 = vmatpush1.bf16.msra.mxu0 0
    %2185 = vmatprep.subr.bf16.mxu0 0
    %2186 = vmatpush1.bf16.msra.mxu0 0
    %2187 = vmatprep.subr.bf16.mxu0 0
    %2188 = vmatpush1.bf16.msra.mxu0 0
    %2189 = vmatprep.subr.bf16.mxu0 0
    %2190 = vmatpush1.bf16.msra.mxu0 0
    %2191 = vmatprep.subr.bf16.mxu0 0
    %2192 = vmatpush1.bf16.msra.mxu0 0
    %2193 = vmatprep.subr.bf16.mxu0 0
    %2194 = vmatpush1.bf16.msra.mxu0 %v535
    %2195 = vmatprep.subr.bf16.mxu0 0
    %2196 = vmatpush1.bf16.msra.mxu0 %v534
    %2197 = vmatprep.subr.bf16.mxu0 0
    %2198 = vmatpush1.bf16.msra.mxu0 %v533
    %2199 = vmatprep.subr.bf16.mxu0 0
    %2200 = vmatpush2.bf16.msra.mxu0 0
    %2201 = vmatprep.subr.bf16.mxu0 0
    %2202 = vmatpush2.bf16.msra.mxu0 0
    %2203 = vmatprep.subr.bf16.mxu0 0
    %2204 = vmatpush2.bf16.msra.mxu0 0
    %2205 = vmatprep.subr.bf16.mxu0 0
    %2206 = vmatpush2.bf16.msra.mxu0 0
    %2207 = vmatprep.subr.bf16.mxu0 0
    %2208 = vmatpush2.bf16.msra.mxu0 0
    %2209 = vmatprep.subr.bf16.mxu0 0
    %2210 = vmatpush2.bf16.msra.mxu0 0
    %2211 = vmatprep.subr.bf16.mxu0 0
    %2212 = vmatpush2.bf16.msra.mxu0 0
    %2213 = vmatprep.subr.bf16.mxu0 0
    %2214 = vmatpush2.bf16.msra.mxu0 0
    %2215 = vmatprep.mubr.bf16.mxu0 0
    %2216 = vmatmul.mubr.bf16.gmra.mxu0 %v2160
    %v2217 = vpop.f32.mrf.mxu0
    %v2218 = vadd.f32 0.0, %v2217
    %v2219 = vpop.f32.mrf.mxu0
    %v2220 = vpop.f32.mrf.mxu0
    %v2221 = vadd.f32 0.0, %v2220
    %v2222 = vpop.f32.mrf.mxu0
    %2223 = vmatprep.mubr.bf16.mxu0 0
    %2224 = vmatmul.mubr.bf16.gmra.mxu0 %v2163
    %v2225 = vpop.f32.mrf.mxu0
    %v2226 = vadd.f32 0.0, %v2225
    %v2227 = vpop.f32.mrf.mxu0
    %v2228 = vpop.f32.mrf.mxu0
    %v2229 = vadd.f32 0.0, %v2228
    %v2230 = vpop.f32.mrf.mxu0
    %2231 = vmatprep.mubr.bf16.mxu0 0
    %2232 = vmatmul.mubr.bf16.gmra.mxu0 %v2166
    %v2233 = vpop.f32.mrf.mxu0
    %v2234 = vadd.f32 0.0, %v2233
    %v2235 = vpop.f32.mrf.mxu0
    %v2236 = vpop.f32.mrf.mxu0
    %v2237 = vadd.f32 0.0, %v2236
    %v2238 = vpop.f32.mrf.mxu0
    %2239 = vmatprep.mubr.bf16.mxu0 0
    %2240 = vmatmul.mubr.bf16.gmra.mxu0 %v2169
    %v2241 = vpop.f32.mrf.mxu0
    %v2242 = vadd.f32 0.0, %v2241
    %v2243 = vpop.f32.mrf.mxu0
    %v2244 = vpop.f32.mrf.mxu0
    %v2245 = vadd.f32 0.0, %v2244
    %v2246 = vpop.f32.mrf.mxu0
    %2247 = vmatprep.mubr.bf16.mxu0 0
    %2248 = vmatmul.mubr.bf16.gmra.mxu0 %v2172
    %v2249 = vpop.f32.mrf.mxu0
    %v2250 = vadd.f32 0.0, %v2249
    %v2251 = vpop.f32.mrf.mxu0
    %v2252 = vpop.f32.mrf.mxu0
    %v2253 = vadd.f32 0.0, %v2252
    %v2254 = vpop.f32.mrf.mxu0
    %2255 = vmatprep.mubr.bf16.mxu0 0
    %2256 = vmatmul.mubr.bf16.gmra.mxu0 %v2175
    %v2257 = vpop.f32.mrf.mxu0
    %v2258 = vadd.f32 0.0, %v2257
    %v2259 = vpop.f32.mrf.mxu0
    %v2260 = vpop.f32.mrf.mxu0
    %v2261 = vadd.f32 0.0, %v2260
    %v2262 = vpop.f32.mrf.mxu0
    %2263 = vmatprep.mubr.bf16.mxu0 0
    %2264 = vmatmul.mubr.bf16.gmra.mxu0 %v2178
    %v2265 = vpop.f32.mrf.mxu0
    %v2266 = vadd.f32 0.0, %v2265
    %v2267 = vpop.f32.mrf.mxu0
    %v2268 = vpop.f32.mrf.mxu0
    %v2269 = vadd.f32 0.0, %v2268
    %v2270 = vpop.f32.mrf.mxu0
    %2271 = vmatprep.mubr.bf16.mxu0 0
    %2272 = vmatmul.mubr.bf16.gmra.mxu0 %v2181
    %v2273 = vpop.f32.mrf.mxu0
    %v2274 = vadd.f32 0.0, %v2273
    %v2275 = vpop.f32.mrf.mxu0
    %v2276 = vpop.f32.mrf.mxu0
    %v2277 = vadd.f32 0.0, %v2276
    %v2278 = vpop.f32.mrf.mxu0
    %2279 = vdwg.mxu0
    %v2280 = vadd.f32 %v2065, %v2218
    %v2281 = vadd.f32 %v2069, %v2221
    %v2282 = vadd.f32 %v2075, %v2226
    %v2283 = vadd.f32 %v2079, %v2229
    %v2284 = vadd.f32 %v2085, %v2234
    %v2285 = vadd.f32 %v2089, %v2237
    %v2286 = vadd.f32 %v2095, %v2242
    %v2287 = vadd.f32 %v2099, %v2245
    %v2288 = vadd.f32 %v2105, %v2250
    %v2289 = vadd.f32 %v2109, %v2253
    %v2290 = vadd.f32 %v2115, %v2258
    %v2291 = vadd.f32 %v2119, %v2261
    %v2292 = vadd.f32 %v2125, %v2266
    %v2293 = vadd.f32 %v2129, %v2269
    %v2294 = vadd.f32 %v2135, %v2274
    %v2295 = vadd.f32 %v2139, %v2277
    %v2296 = vadd.f32 %v2280, %v1890
    %v2297 = vadd.f32 %v2281, %v1893
    %v2298 = vadd.f32 %v2282, %v1898
    %v2299 = vadd.f32 %v2283, %v1901
    %v2300 = vadd.f32 %v2284, %v1906
    %v2301 = vadd.f32 %v2285, %v1909
    %v2302 = vadd.f32 %v2286, %v1914
    %v2303 = vadd.f32 %v2287, %v1917
    %v2304 = vadd.f32 %v2288, %v1922
    %v2305 = vadd.f32 %v2289, %v1925
    %v2306 = vadd.f32 %v2290, %v1930
    %v2307 = vadd.f32 %v2291, %v1933
    %v2308 = vadd.f32 %v2292, %v1938
    %v2309 = vadd.f32 %v2293, %v1941
    %v2310 = vadd.f32 %v2294, %v1946
    %v2311 = vadd.f32 %v2295, %v1949
    %v2312 = vsub.f32 0.0, %v2296
    %v2313 = vsub.f32 0.0, %v2297
    %v2314 = vsub.f32 0.0, %v2298
    %v2315 = vsub.f32 0.0, %v2299
    %v2316 = vsub.f32 0.0, %v2300
    %v2317 = vsub.f32 0.0, %v2301
    %v2318 = vsub.f32 0.0, %v2302
    %v2319 = vsub.f32 0.0, %v2303
    %v2320 = vsub.f32 0.0, %v2304
    %v2321 = vsub.f32 0.0, %v2305
    %v2322 = vsub.f32 0.0, %v2306
    %v2323 = vsub.f32 0.0, %v2307
    %v2324 = vsub.f32 0.0, %v2308
    %v2325 = vsub.f32 0.0, %v2309
    %v2326 = vsub.f32 0.0, %v2310
    %v2327 = vsub.f32 0.0, %v2311
    %v2328 = vmul.f32 %v2312, 1.442695
    %v2329 = vpow.pop %v2328
    %v2330 = vmul.f32 %v2313, 1.442695
    %v2331 = vpow.pop %v2330
    %v2332 = vmul.f32 %v2314, 1.442695
    %v2333 = vpow.pop %v2332
    %v2334 = vmul.f32 %v2315, 1.442695
    %v2335 = vpow.pop %v2334
    %v2336 = vmul.f32 %v2316, 1.442695
    %v2337 = vpow.pop %v2336
    %v2338 = vmul.f32 %v2317, 1.442695
    %v2339 = vpow.pop %v2338
    %v2340 = vmul.f32 %v2318, 1.442695
    %v2341 = vpow.pop %v2340
    %v2342 = vmul.f32 %v2319, 1.442695
    %v2343 = vpow.pop %v2342
    %v2344 = vmul.f32 %v2320, 1.442695
    %v2345 = vpow.pop %v2344
    %v2346 = vmul.f32 %v2321, 1.442695
    %v2347 = vpow.pop %v2346
    %v2348 = vmul.f32 %v2322, 1.442695
    %v2349 = vpow.pop %v2348
    %v2350 = vmul.f32 %v2323, 1.442695
    %v2351 = vpow.pop %v2350
    %v2352 = vmul.f32 %v2324, 1.442695
    %v2353 = vpow.pop %v2352
    %v2354 = vmul.f32 %v2325, 1.442695
    %v2355 = vpow.pop %v2354
    %v2356 = vmul.f32 %v2326, 1.442695
    %v2357 = vpow.pop %v2356
    %v2358 = vmul.f32 %v2327, 1.442695
    %v2359 = vpow.pop %v2358
    %v2360 = vadd.f32 %v2329, 1.0
    %v2361 = vadd.f32 %v2331, 1.0
    %v2362 = vadd.f32 %v2333, 1.0
    %v2363 = vadd.f32 %v2335, 1.0
    %v2364 = vadd.f32 %v2337, 1.0
    %v2365 = vadd.f32 %v2339, 1.0
    %v2366 = vadd.f32 %v2341, 1.0
    %v2367 = vadd.f32 %v2343, 1.0
    %v2368 = vadd.f32 %v2345, 1.0
    %v2369 = vadd.f32 %v2347, 1.0
    %v2370 = vadd.f32 %v2349, 1.0
    %v2371 = vadd.f32 %v2351, 1.0
    %v2372 = vadd.f32 %v2353, 1.0
    %v2373 = vadd.f32 %v2355, 1.0
    %v2374 = vadd.f32 %v2357, 1.0
    %v2375 = vadd.f32 %v2359, 1.0
    %v2376 = vrcp.pop %v2360
    %v2377 = vrcp.pop %v2361
    %v2378 = vrcp.pop %v2362
    %v2379 = vrcp.pop %v2363
    %v2380 = vrcp.pop %v2364
    %v2381 = vrcp.pop %v2365
    %v2382 = vrcp.pop %v2366
    %v2383 = vrcp.pop %v2367
    %v2384 = vrcp.pop %v2368
    %v2385 = vrcp.pop %v2369
    %v2386 = vrcp.pop %v2370
    %v2387 = vrcp.pop %v2371
    %v2388 = vrcp.pop %v2372
    %v2389 = vrcp.pop %v2373
    %v2390 = vrcp.pop %v2374
    %v2391 = vrcp.pop %v2375
    %v2392 = vadd.f32 %v1767, %v2296
    %v2393 = vadd.f32 %v1768, %v2297
    %v2394 = vadd.f32 %v1769, %v2298
    %v2395 = vadd.f32 %v1770, %v2299
    %v2396 = vadd.f32 %v1771, %v2300
    %v2397 = vadd.f32 %v1772, %v2301
    %v2398 = vadd.f32 %v1773, %v2302
    %v2399 = vadd.f32 %v1774, %v2303
    %v2400 = vadd.f32 %v1775, %v2304
    %v2401 = vadd.f32 %v1776, %v2305
    %v2402 = vadd.f32 %v1777, %v2306
    %v2403 = vadd.f32 %v1778, %v2307
    %v2404 = vadd.f32 %v1779, %v2308
    %v2405 = vadd.f32 %v1780, %v2309
    %v2406 = vadd.f32 %v1781, %v2310
    %v2407 = vadd.f32 %v1782, %v2311
    %s2408 = scalar_lea.vmem [#allocation21], 128
    %2409 = vst [vmem:[%s2408] sm:$0xff] %v2392
    %2410 = vst [vmem:[%s2408 + $0x8] sm:$0xff] %v2393
    %2411 = vst [vmem:[%s2408 + $0x10] sm:$0xff] %v2394
    %2412 = vst [vmem:[%s2408 + $0x18] sm:$0xff] %v2395
    %2413 = vst [vmem:[%s2408 + $0x20] sm:$0xff] %v2396
    %2414 = vst [vmem:[%s2408 + $0x28] sm:$0xff] %v2397
    %2415 = vst [vmem:[%s2408 + $0x30] sm:$0xff] %v2398
    %2416 = vst [vmem:[%s2408 + $0x38] sm:$0xff] %v2399
    %2417 = vst [vmem:[%s2408 + $0x40] sm:$0xff] %v2400
    %2418 = vst [vmem:[%s2408 + $0x48] sm:$0xff] %v2401
    %2419 = vst [vmem:[%s2408 + $0x50] sm:$0xff] %v2402
    %2420 = vst [vmem:[%s2408 + $0x58] sm:$0xff] %v2403
    %2421 = vst [vmem:[%s2408 + $0x60] sm:$0xff] %v2404
    %2422 = vst [vmem:[%s2408 + $0x68] sm:$0xff] %v2405
    %2423 = vst [vmem:[%s2408 + $0x70] sm:$0xff] %v2406
    %2424 = vst [vmem:[%s2408 + $0x78] sm:$0xff] %v2407
    %v2425 = vstv 128
    %v2426 = vadd.s32 %v569, %v2425
    %v2427 = vadd.s32 %v570, %v2425
    %v2428 = vadd.s32 %v571, %v2425
    %v2429 = vadd.s32 %v572, %v2425
    %v2430 = vadd.s32 %v573, %v2425
    %v2431 = vadd.s32 %v574, %v2425
    %v2432 = vadd.s32 %v575, %v2425
    %v2433 = vadd.s32 %v576, %v2425
    %v2434 = vadd.s32 %v577, %v2425
    %v2435 = vadd.s32 %v578, %v2425
    %v2436 = vadd.s32 %v579, %v2425
    %v2437 = vadd.s32 %v580, %v2425
    %v2438 = vadd.s32 %v581, %v2425
    %v2439 = vadd.s32 %v582, %v2425
    %v2440 = vadd.s32 %v583, %v2425
    %v2441 = vadd.s32 %v584, %v2425
    %vm2442 = vcmp.lt.s32.totalorder %v2426, 200
    %vm2443 = vcmp.lt.s32.totalorder %v2427, 200
    %vm2444 = vcmp.lt.s32.totalorder %v2428, 200
    %vm2445 = vcmp.lt.s32.totalorder %v2429, 200
    %vm2446 = vcmp.lt.s32.totalorder %v2430, 200
    %vm2447 = vcmp.lt.s32.totalorder %v2431, 200
    %vm2448 = vcmp.lt.s32.totalorder %v2432, 200
    %vm2449 = vcmp.lt.s32.totalorder %v2433, 200
    %vm2450 = vcmp.lt.s32.totalorder %v2434, 200
    %vm2451 = vcmp.lt.s32.totalorder %v2435, 200
    %vm2452 = vcmp.lt.s32.totalorder %v2436, 200
    %vm2453 = vcmp.lt.s32.totalorder %v2437, 200
    %vm2454 = vcmp.lt.s32.totalorder %v2438, 200
    %vm2455 = vcmp.lt.s32.totalorder %v2439, 200
    %vm2456 = vcmp.lt.s32.totalorder %v2440, 200
    %vm2457 = vcmp.lt.s32.totalorder %v2441, 200
    %v2458 = vsel %vm2442, 1, 0
    %v2459 = vsel %vm2443, 1, 0
    %v2460 = vsel %vm2444, 1, 0
    %v2461 = vsel %vm2445, 1, 0
    %v2462 = vsel %vm2446, 1, 0
    %v2463 = vsel %vm2447, 1, 0
    %v2464 = vsel %vm2448, 1, 0
    %v2465 = vsel %vm2449, 1, 0
    %v2466 = vsel %vm2450, 1, 0
    %v2467 = vsel %vm2451, 1, 0
    %v2468 = vsel %vm2452, 1, 0
    %v2469 = vsel %vm2453, 1, 0
    %v2470 = vsel %vm2454, 1, 0
    %v2471 = vsel %vm2455, 1, 0
    %v2472 = vsel %vm2456, 1, 0
    %v2473 = vsel %vm2457, 1, 0
    %v2474 = vcvt.s32.f32 %v2458
    %v2475 = vcvt.s32.f32 %v2459
    %v2476 = vcvt.s32.f32 %v2460
    %v2477 = vcvt.s32.f32 %v2461
    %v2478 = vcvt.s32.f32 %v2462
    %v2479 = vcvt.s32.f32 %v2463
    %v2480 = vcvt.s32.f32 %v2464
    %v2481 = vcvt.s32.f32 %v2465
    %v2482 = vcvt.s32.f32 %v2466
    %v2483 = vcvt.s32.f32 %v2467
    %v2484 = vcvt.s32.f32 %v2468
    %v2485 = vcvt.s32.f32 %v2469
    %v2486 = vcvt.s32.f32 %v2470
    %v2487 = vcvt.s32.f32 %v2471
    %v2488 = vcvt.s32.f32 %v2472
    %v2489 = vcvt.s32.f32 %v2473
    %v2490 = vmul.f32 %v2392, %v2474
    %v2491 = vmul.f32 %v2393, %v2475
    %v2492 = vmul.f32 %v2394, %v2476
    %v2493 = vmul.f32 %v2395, %v2477
    %v2494 = vmul.f32 %v2396, %v2478
    %v2495 = vmul.f32 %v2397, %v2479
    %v2496 = vmul.f32 %v2398, %v2480
    %v2497 = vmul.f32 %v2399, %v2481
    %v2498 = vmul.f32 %v2400, %v2482
    %v2499 = vmul.f32 %v2401, %v2483
    %v2500 = vmul.f32 %v2402, %v2484
    %v2501 = vmul.f32 %v2403, %v2485
    %v2502 = vmul.f32 %v2404, %v2486
    %v2503 = vmul.f32 %v2405, %v2487
    %v2504 = vmul.f32 %v2406, %v2488
    %v2505 = vmul.f32 %v2407, %v2489
    %v2506 = vadd.f32 %v2490, %v2491
    %v2507 = vadd.f32 %v2506, %v2492
    %v2508 = vadd.f32 %v2507, %v2493
    %v2509 = vadd.f32 %v2508, %v2494
    %v2510 = vadd.f32 %v2509, %v2495
    %v2511 = vadd.f32 %v2510, %v2496
    %v2512 = vadd.f32 %v2511, %v2497
    %v2513 = vadd.f32 %v2512, %v2498
    %v2514 = vadd.f32 %v2513, %v2499
    %v2515 = vadd.f32 %v2514, %v2500
    %v2516 = vadd.f32 %v2515, %v2501
    %v2517 = vadd.f32 %v2516, %v2502
    %v2518 = vadd.f32 %v2517, %v2503
    %v2519 = vadd.f32 %v2518, %v2504
    %v2520 = vadd.f32 %v2519, %v2505
    %v2521 = vrot.slane %v2520, 4
    %v2522 = vadd.f32 %v2520, %v2521
    %v2523 = vrot.slane %v2522, 2
    %v2524 = vadd.f32 %v2522, %v2523
    %v2525 = vrot.slane %v2524, 1
    %v2526 = vadd.f32 %v2524, %v2525
    %v2527 = vadd.f32 %v1677, %v2526
    %v2528 = vmul.f32 %v2392, %v2392
    %v2529 = vmul.f32 %v2393, %v2393
    %v2530 = vmul.f32 %v2394, %v2394
    %v2531 = vmul.f32 %v2395, %v2395
    %v2532 = vmul.f32 %v2396, %v2396
    %v2533 = vmul.f32 %v2397, %v2397
    %v2534 = vmul.f32 %v2398, %v2398
    %v2535 = vmul.f32 %v2399, %v2399
    %v2536 = vmul.f32 %v2400, %v2400
    %v2537 = vmul.f32 %v2401, %v2401
    %v2538 = vmul.f32 %v2402, %v2402
    %v2539 = vmul.f32 %v2403, %v2403
    %v2540 = vmul.f32 %v2404, %v2404
    %v2541 = vmul.f32 %v2405, %v2405
    %v2542 = vmul.f32 %v2406, %v2406
    %v2543 = vmul.f32 %v2407, %v2407
    %v2544 = vmul.f32 %v2528, %v2474
    %v2545 = vmul.f32 %v2529, %v2475
    %v2546 = vmul.f32 %v2530, %v2476
    %v2547 = vmul.f32 %v2531, %v2477
    %v2548 = vmul.f32 %v2532, %v2478
    %v2549 = vmul.f32 %v2533, %v2479
    %v2550 = vmul.f32 %v2534, %v2480
    %v2551 = vmul.f32 %v2535, %v2481
    %v2552 = vmul.f32 %v2536, %v2482
    %v2553 = vmul.f32 %v2537, %v2483
    %v2554 = vmul.f32 %v2538, %v2484
    %v2555 = vmul.f32 %v2539, %v2485
    %v2556 = vmul.f32 %v2540, %v2486
    %v2557 = vmul.f32 %v2541, %v2487
    %v2558 = vmul.f32 %v2542, %v2488
    %v2559 = vmul.f32 %v2543, %v2489
    %v2560 = vadd.f32 %v2544, %v2545
    %v2561 = vadd.f32 %v2560, %v2546
    %v2562 = vadd.f32 %v2561, %v2547
    %v2563 = vadd.f32 %v2562, %v2548
    %v2564 = vadd.f32 %v2563, %v2549
    %v2565 = vadd.f32 %v2564, %v2550
    %v2566 = vadd.f32 %v2565, %v2551
    %v2567 = vadd.f32 %v2566, %v2552
    %v2568 = vadd.f32 %v2567, %v2553
    %v2569 = vadd.f32 %v2568, %v2554
    %v2570 = vadd.f32 %v2569, %v2555
    %v2571 = vadd.f32 %v2570, %v2556
    %v2572 = vadd.f32 %v2571, %v2557
    %v2573 = vadd.f32 %v2572, %v2558
    %v2574 = vadd.f32 %v2573, %v2559
    %v2575 = vrot.slane %v2574, 4
    %v2576 = vadd.f32 %v2574, %v2575
    %v2577 = vrot.slane %v2576, 2
    %v2578 = vadd.f32 %v2576, %v2577
    %v2579 = vrot.slane %v2578, 1
    %v2580 = vadd.f32 %v2578, %v2579
    %v2581 = vadd.f32 %v1731, %v2580
    %v2582 = vmul.f32 %v2067, %v2376
    %v2583 = vmul.f32 %v2071, %v2377
    %v2584 = vmul.f32 %v2077, %v2378
    %v2585 = vmul.f32 %v2081, %v2379
    %v2586 = vmul.f32 %v2087, %v2380
    %v2587 = vmul.f32 %v2091, %v2381
    %v2588 = vmul.f32 %v2097, %v2382
    %v2589 = vmul.f32 %v2101, %v2383
    %v2590 = vmul.f32 %v2107, %v2384
    %v2591 = vmul.f32 %v2111, %v2385
    %v2592 = vmul.f32 %v2117, %v2386
    %v2593 = vmul.f32 %v2121, %v2387
    %v2594 = vmul.f32 %v2127, %v2388
    %v2595 = vmul.f32 %v2131, %v2389
    %v2596 = vmul.f32 %v2137, %v2390
    %v2597 = vmul.f32 %v2141, %v2391
    %v2598 = vpack.c.bf16 %v2583, %v2582
    %v2599 = vpack.c.bf16 %v2377, %v2376
    %v2600 = vpack.c.bf16 %v2585, %v2584
    %v2601 = vpack.c.bf16 %v2379, %v2378
    %v2602 = vpack.c.bf16 %v2587, %v2586
    %v2603 = vpack.c.bf16 %v2381, %v2380
    %v2604 = vpack.c.bf16 %v2589, %v2588
    %v2605 = vpack.c.bf16 %v2383, %v2382
    %v2606 = vpack.c.bf16 %v2591, %v2590
    %v2607 = vpack.c.bf16 %v2385, %v2384
    %v2608 = vpack.c.bf16 %v2593, %v2592
    %v2609 = vpack.c.bf16 %v2387, %v2386
    %v2610 = vpack.c.bf16 %v2595, %v2594
    %v2611 = vpack.c.bf16 %v2389, %v2388
    %v2612 = vpack.c.bf16 %v2597, %v2596
    %v2613 = vpack.c.bf16 %v2391, %v2390
    %2614 = vmatprep.subr.bf16.mxu0 %v2613
    %2615 = vmatpush1.bf16.msra.mxu0 %v2612
    %2616 = vmatprep.subr.bf16.mxu0 %v2611
    %2617 = vmatpush1.bf16.msra.mxu0 %v2610
    %2618 = vmatprep.subr.bf16.mxu0 %v2609
    %2619 = vmatpush1.bf16.msra.mxu0 %v2608
    %2620 = vmatprep.subr.bf16.mxu0 %v2607
    %2621 = vmatpush1.bf16.msra.mxu0 %v2606
    %2622 = vmatprep.subr.bf16.mxu0 %v2605
    %2623 = vmatpush1.bf16.msra.mxu0 %v2604
    %2624 = vmatprep.subr.bf16.mxu0 %v2603
    %2625 = vmatpush1.bf16.msra.mxu0 %v2602
    %2626 = vmatprep.subr.bf16.mxu0 %v2601
    %2627 = vmatpush1.bf16.msra.mxu0 %v2600
    %2628 = vmatprep.subr.bf16.mxu0 %v2599
    %2629 = vmatpush1.bf16.msra.mxu0 %v2598
    %2630 = vmatprep.subr.bf16.mxu0 0
    %2631 = vmatpush2.bf16.msra.mxu0 0
    %2632 = vmatprep.subr.bf16.mxu0 0
    %2633 = vmatpush2.bf16.msra.mxu0 0
    %2634 = vmatprep.subr.bf16.mxu0 0
    %2635 = vmatpush2.bf16.msra.mxu0 0
    %2636 = vmatprep.subr.bf16.mxu0 0
    %2637 = vmatpush2.bf16.msra.mxu0 0
    %2638 = vmatprep.subr.bf16.mxu0 0
    %2639 = vmatpush2.bf16.msra.mxu0 0
    %2640 = vmatprep.subr.bf16.mxu0 0
    %2641 = vmatpush2.bf16.msra.mxu0 0
    %2642 = vmatprep.subr.bf16.mxu0 0
    %2643 = vmatpush2.bf16.msra.mxu0 0
    %2644 = vmatprep.subr.bf16.mxu0 0
    %2645 = vmatpush2.bf16.msra.mxu0 0
    %2646 = vmatprep.mubr.bf16.mxu0 0
    %2647 = vmatmul.mubr.bf16.gmra.mxu0 %v1987
    %v2648 = vpop.f32.mrf.mxu0
    %v2649 = vadd.f32 0.0, %v2648
    %v2650 = vpop.f32.mrf.mxu0
    %v2651 = vadd.f32 0.0, %v2650
    %v2652 = vpop.f32.mrf.mxu0
    %v2653 = vadd.f32 0.0, %v2652
    %v2654 = vpop.f32.mrf.mxu0
    %v2655 = vadd.f32 0.0, %v2654
    %2656 = vmatprep.mubr.bf16.mxu0 0
    %2657 = vmatmul.mubr.bf16.gmra.mxu0 %v1988
    %v2658 = vpop.f32.mrf.mxu0
    %v2659 = vadd.f32 0.0, %v2658
    %v2660 = vpop.f32.mrf.mxu0
    %v2661 = vadd.f32 0.0, %v2660
    %v2662 = vpop.f32.mrf.mxu0
    %v2663 = vadd.f32 0.0, %v2662
    %v2664 = vpop.f32.mrf.mxu0
    %v2665 = vadd.f32 0.0, %v2664
    %2666 = vmatprep.mubr.bf16.mxu0 0
    %2667 = vmatmul.mubr.bf16.gmra.mxu0 %v1989
    %v2668 = vpop.f32.mrf.mxu0
    %v2669 = vadd.f32 0.0, %v2668
    %v2670 = vpop.f32.mrf.mxu0
    %v2671 = vadd.f32 0.0, %v2670
    %v2672 = vpop.f32.mrf.mxu0
    %v2673 = vadd.f32 0.0, %v2672
    %v2674 = vpop.f32.mrf.mxu0
    %v2675 = vadd.f32 0.0, %v2674
    %2676 = vdwg.mxu0
    %2677 = vmatprep.subr.bf16.mxu0 %v1763
    %2678 = vmatpush1.bf16.msra.mxu0 %v1762
    %2679 = vmatprep.subr.bf16.mxu0 %v1761
    %2680 = vmatpush1.bf16.msra.mxu0 %v1760
    %2681 = vmatprep.subr.bf16.mxu0 %v1759
    %2682 = vmatpush1.bf16.msra.mxu0 %v1758
    %2683 = vmatprep.subr.bf16.mxu0 %v1757
    %2684 = vmatpush1.bf16.msra.mxu0 %v1756
    %2685 = vmatprep.subr.bf16.mxu0 %v1755
    %2686 = vmatpush1.bf16.msra.mxu0 %v1754
    %2687 = vmatprep.subr.bf16.mxu0 %v1753
    %2688 = vmatpush1.bf16.msra.mxu0 %v1752
    %2689 = vmatprep.subr.bf16.mxu0 %v1751
    %2690 = vmatpush1.bf16.msra.mxu0 %v1750
    %2691 = vmatprep.subr.bf16.mxu0 %v1749
    %2692 = vmatpush1.bf16.msra.mxu0 %v1748
    %2693 = vmatprep.subr.bf16.mxu0 0
    %2694 = vmatpush2.bf16.msra.mxu0 0
    %2695 = vmatprep.subr.bf16.mxu0 0
    %2696 = vmatpush2.bf16.msra.mxu0 0
    %2697 = vmatprep.subr.bf16.mxu0 0
    %2698 = vmatpush2.bf16.msra.mxu0 0
    %2699 = vmatprep.subr.bf16.mxu0 0
    %2700 = vmatpush2.bf16.msra.mxu0 0
    %2701 = vmatprep.subr.bf16.mxu0 0
    %2702 = vmatpush2.bf16.msra.mxu0 0
    %2703 = vmatprep.subr.bf16.mxu0 0
    %2704 = vmatpush2.bf16.msra.mxu0 0
    %2705 = vmatprep.subr.bf16.mxu0 0
    %2706 = vmatpush2.bf16.msra.mxu0 0
    %2707 = vmatprep.subr.bf16.mxu0 0
    %2708 = vmatpush2.bf16.msra.mxu0 0
    %2709 = vmatprep.mubr.bf16.mxu0 0
    %2710 = vmatmul.mubr.bf16.gmra.mxu0 %v1137
    %v2711 = vpop.f32.mrf.mxu0
    %v2712 = vadd.f32 %v2649, %v2711
    %v2713 = vpop.f32.mrf.mxu0
    %v2714 = vadd.f32 %v2651, %v2713
    %v2715 = vpop.f32.mrf.mxu0
    %v2716 = vadd.f32 %v2653, %v2715
    %v2717 = vpop.f32.mrf.mxu0
    %v2718 = vadd.f32 %v2655, %v2717
    %2719 = vmatprep.mubr.bf16.mxu0 0
    %2720 = vmatmul.mubr.bf16.gmra.mxu0 %v1138
    %v2721 = vpop.f32.mrf.mxu0
    %v2722 = vadd.f32 %v2659, %v2721
    %v2723 = vpop.f32.mrf.mxu0
    %v2724 = vadd.f32 %v2661, %v2723
    %v2725 = vpop.f32.mrf.mxu0
    %v2726 = vadd.f32 %v2663, %v2725
    %v2727 = vpop.f32.mrf.mxu0
    %v2728 = vadd.f32 %v2665, %v2727
    %2729 = vmatprep.mubr.bf16.mxu0 0
    %2730 = vmatmul.mubr.bf16.gmra.mxu0 %v1139
    %v2731 = vpop.f32.mrf.mxu0
    %v2732 = vadd.f32 %v2669, %v2731
    %v2733 = vpop.f32.mrf.mxu0
    %v2734 = vadd.f32 %v2671, %v2733
    %v2735 = vpop.f32.mrf.mxu0
    %v2736 = vadd.f32 %v2673, %v2735
    %v2737 = vpop.f32.mrf.mxu0
    %v2738 = vadd.f32 %v2675, %v2737
    %2739 = vdwg.mxu0
    %v2740 = vadd.f32 %v2714, 1e-10
    %v2741 = vadd.f32 %v2718, 1e-10
    %v2742 = vadd.f32 %v2724, 1e-10
    %v2743 = vadd.f32 %v2728, 1e-10
    %v2744 = vadd.f32 %v2734, 1e-10
    %v2745 = vadd.f32 %v2738, 1e-10
    %v2746 = vrcp.pop %v2740
    %v2747 = vrcp.pop %v2741
    %v2748 = vrcp.pop %v2742
    %v2749 = vrcp.pop %v2743
    %v2750 = vrcp.pop %v2744
    %v2751 = vrcp.pop %v2745
    %v2752 = vmul.f32 %v2712, %v2746
    %v2753 = vmul.f32 %v2716, %v2747
    %v2754 = vmul.f32 %v2722, %v2748
    %v2755 = vmul.f32 %v2726, %v2749
    %v2756 = vmul.f32 %v2732, %v2750
    %v2757 = vmul.f32 %v2736, %v2751
    %v2758 = vadd.f32 %v436, %v2752
    %v2759 = vadd.f32 %v440, %v2753
    %v2760 = vadd.f32 %v446, %v2754
    %v2761 = vadd.f32 %v450, %v2755
    %v2762 = vadd.f32 %v456, %v2756
    %v2763 = vadd.f32 %v460, %v2757
    %v2764 = vadd.f32 %v207, %v2758
    %v2765 = vadd.f32 %v208, %v2759
    %v2766 = vadd.f32 %v209, %v2760
    %v2767 = vadd.f32 %v210, %v2761
    %v2768 = vadd.f32 %v211, %v2762
    %v2769 = vadd.f32 %v212, %v2763
    %v2770 = vadd.f32 %v2764, %v2765
    %v2771 = vadd.f32 %v2770, %v2766
    %v2772 = vadd.f32 %v2771, %v2767
    %v2773 = vadd.f32 %v2772, %v2768
    %v2774 = vadd.f32 %v2773, %v2769
    %v2775 = vrot.slane %v2774, 4
    %v2776 = vadd.f32 %v2774, %v2775
    %v2777 = vrot.slane %v2776, 2
    %v2778 = vadd.f32 %v2776, %v2777
    %v2779 = vrot.slane %v2778, 1
    %v2780 = vadd.f32 %v2778, %v2779
    %v2781 = vmul.f32 %v2780, %v224
    %v2782 = vsub.f32 %v2764, %v2781
    %v2783 = vsub.f32 %v2765, %v2781
    %v2784 = vsub.f32 %v2766, %v2781
    %v2785 = vsub.f32 %v2767, %v2781
    %v2786 = vsub.f32 %v2768, %v2781
    %v2787 = vsub.f32 %v2769, %v2781
    %v2788 = vmul.f32 %v2782, %v2782
    %v2789 = vmul.f32 %v2783, %v2783
    %v2790 = vmul.f32 %v2784, %v2784
    %v2791 = vmul.f32 %v2785, %v2785
    %v2792 = vmul.f32 %v2786, %v2786
    %v2793 = vmul.f32 %v2787, %v2787
    %v2794 = vadd.f32 %v2788, %v2789
    %v2795 = vadd.f32 %v2794, %v2790
    %v2796 = vadd.f32 %v2795, %v2791
    %v2797 = vadd.f32 %v2796, %v2792
    %v2798 = vadd.f32 %v2797, %v2793
    %v2799 = vrot.slane %v2798, 4
    %v2800 = vadd.f32 %v2798, %v2799
    %v2801 = vrot.slane %v2800, 2
    %v2802 = vadd.f32 %v2800, %v2801
    %v2803 = vrot.slane %v2802, 1
    %v2804 = vadd.f32 %v2802, %v2803
    %v2805 = vmul.f32 %v2804, %v224
    %v2806 = vadd.f32 %v2805, 1e-05
    %v2807 = vrsqrt.pop %v2806
    %v2808 = vmul.f32 %v2782, %v2807
    %v2809 = vmul.f32 %v2783, %v2807
    %v2810 = vmul.f32 %v2784, %v2807
    %v2811 = vmul.f32 %v2785, %v2807
    %v2812 = vmul.f32 %v2786, %v2807
    %v2813 = vmul.f32 %v2787, %v2807
    %v2814 = vld [vmem:[%s16 + $0x2] sm:$0x1]
    %v2815 = vlaneseq
    %v2816 = vshrl.u32 %v2815, 7
    %v2817 = vsub.s32 0, %v2816
    %v2818 = vrot.slane %v2814, %v2817
    %v2819 = vmul.f32 %v2808, %v2818
    %v2820 = vmul.f32 %v2809, %v2818
    %v2821 = vmul.f32 %v2810, %v2818
    %v2822 = vmul.f32 %v2811, %v2818
    %v2823 = vmul.f32 %v2812, %v2818
    %v2824 = vmul.f32 %v2813, %v2818
    %v2825 = vld [vmem:[%s17 + $0x2] sm:$0x1]
    %v2826 = vlaneseq
    %v2827 = vshrl.u32 %v2826, 7
    %v2828 = vsub.s32 0, %v2827
    %v2829 = vrot.slane %v2825, %v2828
    %v2830 = vadd.f32 %v2819, %v2829
    %v2831 = vadd.f32 %v2820, %v2829
    %v2832 = vadd.f32 %v2821, %v2829
    %v2833 = vadd.f32 %v2822, %v2829
    %v2834 = vadd.f32 %v2823, %v2829
    %v2835 = vadd.f32 %v2824, %v2829
    %v2836 = vld [vmem:[#allocation14] sm:$0xff]
    %v2837 = vld [vmem:[#allocation14 + $0x8] sm:$0xff]
    %v2838 = vld [vmem:[#allocation14 + $0x10] sm:$0xff]
    %v2839 = vld [vmem:[#allocation14 + $0x18] sm:$0xff]
    %v2840 = vld [vmem:[#allocation14 + $0x20] sm:$0xff]
    %v2841 = vld [vmem:[#allocation14 + $0x28] sm:$0xff]
    %v2842 = vld [vmem:[#allocation14 + $0x30] sm:$0xff]
    %v2843 = vld [vmem:[#allocation14 + $0x38] sm:$0xff]
    %v2844 = vld [vmem:[#allocation14 + $0x40] sm:$0xff]
    %v2845 = vld [vmem:[#allocation14 + $0x48] sm:$0xff]
    %v2846 = vld [vmem:[#allocation14 + $0x50] sm:$0xff]
    %v2847 = vld [vmem:[#allocation14 + $0x58] sm:$0xff]
    %v2848 = vld [vmem:[#allocation14 + $0x60] sm:$0xff]
    %v2849 = vld [vmem:[#allocation14 + $0x68] sm:$0xff]
    %v2850 = vld [vmem:[#allocation14 + $0x70] sm:$0xff]
    %v2851 = vld [vmem:[#allocation14 + $0x78] sm:$0xff]
    %v2852 = vpack.c.bf16 %v2831, %v2830
    %v2853 = vpack.c.bf16 %v2833, %v2832
    %v2854 = vpack.c.bf16 %v2835, %v2834
    %v2855 = vpack.c.bf16 %v2837, %v2836
    %v2856 = vpack.c.bf16 %v2839, %v2838
    %v2857 = vpack.c.bf16 %v2841, %v2840
    %v2858 = vpack.c.bf16 %v2843, %v2842
    %v2859 = vpack.c.bf16 %v2845, %v2844
    %v2860 = vpack.c.bf16 %v2847, %v2846
    %v2861 = vpack.c.bf16 %v2849, %v2848
    %v2862 = vpack.c.bf16 %v2851, %v2850
    %v2863 = vld [vmem:[%s9] sm:$0x1]
    %v2865 = vlaneseq
    %v2866 = vshrl.u32 %v2865, 7
    %v2867 = vsub.s32 0, %v2866
    %v2868 = vrot.slane %v2863, %v2867
    %2870 = vmatprep.subr.bf16.mxu0 0
    %2871 = vmatpush1.bf16.msra.mxu0 %v2862
    %2872 = vmatprep.subr.bf16.mxu0 0
    %2873 = vmatpush1.bf16.msra.mxu0 %v2861
    %2874 = vmatprep.subr.bf16.mxu0 0
    %2875 = vmatpush1.bf16.msra.mxu0 %v2860
    %2876 = vmatprep.subr.bf16.mxu0 0
    %2877 = vmatpush1.bf16.msra.mxu0 %v2859
    %2878 = vmatprep.subr.bf16.mxu0 0
    %2879 = vmatpush1.bf16.msra.mxu0 %v2858
    %2880 = vmatprep.subr.bf16.mxu0 0
    %2881 = vmatpush1.bf16.msra.mxu0 %v2857
    %2882 = vmatprep.subr.bf16.mxu0 0
    %2883 = vmatpush1.bf16.msra.mxu0 %v2856
    %2884 = vmatprep.subr.bf16.mxu0 0
    %2885 = vmatpush1.bf16.msra.mxu0 %v2855
    %2886 = vmatprep.subr.bf16.mxu0 0
    %2887 = vmatpush2.bf16.msra.mxu0 0
    %2888 = vmatprep.subr.bf16.mxu0 0
    %2889 = vmatpush2.bf16.msra.mxu0 0
    %2890 = vmatprep.subr.bf16.mxu0 0
    %2891 = vmatpush2.bf16.msra.mxu0 0
    %2892 = vmatprep.subr.bf16.mxu0 0
    %2893 = vmatpush2.bf16.msra.mxu0 0
    %2894 = vmatprep.subr.bf16.mxu0 0
    %2895 = vmatpush2.bf16.msra.mxu0 0
    %2896 = vmatprep.subr.bf16.mxu0 0
    %2897 = vmatpush2.bf16.msra.mxu0 0
    %2898 = vmatprep.subr.bf16.mxu0 0
    %2899 = vmatpush2.bf16.msra.mxu0 0
    %2900 = vmatprep.subr.bf16.mxu0 0
    %2901 = vmatpush2.bf16.msra.mxu0 0
    %2902 = vmatprep.mubr.bf16.mxu0 0
    %2903 = vmatmul.mubr.bf16.gmra.mxu0 %v2852
    %v2904 = vpop.f32.mrf.mxu0
    %v2905 = vadd.f32 %v2868, %v2904
    %v2906 = vpop.f32.mrf.mxu0
    %v2907 = vpop.f32.mrf.mxu0
    %v2908 = vadd.f32 %v2868, %v2907
    %v2909 = vpop.f32.mrf.mxu0
    %2910 = vmatprep.mubr.bf16.mxu0 0
    %2911 = vmatmul.mubr.bf16.gmra.mxu0 %v2853
    %v2912 = vpop.f32.mrf.mxu0
    %v2913 = vadd.f32 %v2868, %v2912
    %v2914 = vpop.f32.mrf.mxu0
    %v2915 = vpop.f32.mrf.mxu0
    %v2916 = vadd.f32 %v2868, %v2915
    %v2917 = vpop.f32.mrf.mxu0
    %2918 = vmatprep.mubr.bf16.mxu0 0
    %2919 = vmatmul.mubr.bf16.gmra.mxu0 %v2854
    %v2920 = vpop.f32.mrf.mxu0
    %v2921 = vadd.f32 %v2868, %v2920
    %v2922 = vpop.f32.mrf.mxu0
    %v2923 = vpop.f32.mrf.mxu0
    %v2924 = vadd.f32 %v2868, %v2923
    %v2925 = vpop.f32.mrf.mxu0
    %2926 = vdwg.mxu0
    %v2927 = vmax.f32 %v2905, 0.0
    %v2928 = vmax.f32 %v2908, 0.0
    %v2929 = vmax.f32 %v2913, 0.0
    %v2930 = vmax.f32 %v2916, 0.0
    %v2931 = vmax.f32 %v2921, 0.0
    %v2932 = vmax.f32 %v2924, 0.0
    %v2933 = vld [vmem:[#allocation16] sm:$0xff]
    %v2934 = vld [vmem:[#allocation16 + $0x8] sm:$0xff]
    %v2935 = vld [vmem:[#allocation16 + $0x10] sm:$0xff]
    %v2936 = vld [vmem:[#allocation16 + $0x18] sm:$0xff]
    %v2937 = vld [vmem:[#allocation16 + $0x20] sm:$0xff]
    %v2938 = vld [vmem:[#allocation16 + $0x28] sm:$0xff]
    %v2939 = vld [vmem:[#allocation16 + $0x30] sm:$0xff]
    %v2940 = vld [vmem:[#allocation16 + $0x38] sm:$0xff]
    %v2941 = vld [vmem:[#allocation16 + $0x40] sm:$0xff]
    %v2942 = vld [vmem:[#allocation16 + $0x48] sm:$0xff]
    %v2943 = vld [vmem:[#allocation16 + $0x50] sm:$0xff]
    %v2944 = vld [vmem:[#allocation16 + $0x58] sm:$0xff]
    %v2945 = vld [vmem:[#allocation16 + $0x60] sm:$0xff]
    %v2946 = vld [vmem:[#allocation16 + $0x68] sm:$0xff]
    %v2947 = vld [vmem:[#allocation16 + $0x70] sm:$0xff]
    %v2948 = vld [vmem:[#allocation16 + $0x78] sm:$0xff]
    %v2949 = vpack.c.bf16 %v2928, %v2927
    %v2950 = vpack.c.bf16 %v2930, %v2929
    %v2951 = vpack.c.bf16 %v2932, %v2931
    %v2952 = vpack.c.bf16 %v2934, %v2933
    %v2953 = vpack.c.bf16 %v2936, %v2935
    %v2954 = vpack.c.bf16 %v2938, %v2937
    %v2955 = vpack.c.bf16 %v2940, %v2939
    %v2956 = vpack.c.bf16 %v2942, %v2941
    %v2957 = vpack.c.bf16 %v2944, %v2943
    %v2958 = vpack.c.bf16 %v2946, %v2945
    %v2959 = vpack.c.bf16 %v2948, %v2947
    %v2960 = vld [vmem:[%s11] sm:$0x1]
    %v2962 = vlaneseq
    %v2963 = vshrl.u32 %v2962, 7
    %v2964 = vsub.s32 0, %v2963
    %v2965 = vrot.slane %v2960, %v2964
    %2967 = vmatprep.subr.bf16.mxu0 0
    %2968 = vmatpush1.bf16.msra.mxu0 %v2959
    %2969 = vmatprep.subr.bf16.mxu0 0
    %2970 = vmatpush1.bf16.msra.mxu0 %v2958
    %2971 = vmatprep.subr.bf16.mxu0 0
    %2972 = vmatpush1.bf16.msra.mxu0 %v2957
    %2973 = vmatprep.subr.bf16.mxu0 0
    %2974 = vmatpush1.bf16.msra.mxu0 %v2956
    %2975 = vmatprep.subr.bf16.mxu0 0
    %2976 = vmatpush1.bf16.msra.mxu0 %v2955
    %2977 = vmatprep.subr.bf16.mxu0 0
    %2978 = vmatpush1.bf16.msra.mxu0 %v2954
    %2979 = vmatprep.subr.bf16.mxu0 0
    %2980 = vmatpush1.bf16.msra.mxu0 %v2953
    %2981 = vmatprep.subr.bf16.mxu0 0
    %2982 = vmatpush1.bf16.msra.mxu0 %v2952
    %2983 = vmatprep.subr.bf16.mxu0 0
    %2984 = vmatpush2.bf16.msra.mxu0 0
    %2985 = vmatprep.subr.bf16.mxu0 0
    %2986 = vmatpush2.bf16.msra.mxu0 0
    %2987 = vmatprep.subr.bf16.mxu0 0
    %2988 = vmatpush2.bf16.msra.mxu0 0
    %2989 = vmatprep.subr.bf16.mxu0 0
    %2990 = vmatpush2.bf16.msra.mxu0 0
    %2991 = vmatprep.subr.bf16.mxu0 0
    %2992 = vmatpush2.bf16.msra.mxu0 0
    %2993 = vmatprep.subr.bf16.mxu0 0
    %2994 = vmatpush2.bf16.msra.mxu0 0
    %2995 = vmatprep.subr.bf16.mxu0 0
    %2996 = vmatpush2.bf16.msra.mxu0 0
    %2997 = vmatprep.subr.bf16.mxu0 0
    %2998 = vmatpush2.bf16.msra.mxu0 0
    %2999 = vmatprep.mubr.bf16.mxu0 0
    %3000 = vmatmul.mubr.bf16.gmra.mxu0 %v2949
    %v3001 = vpop.f32.mrf.mxu0
    %v3002 = vadd.f32 %v2965, %v3001
    %v3003 = vpop.f32.mrf.mxu0
    %v3004 = vpop.f32.mrf.mxu0
    %v3005 = vadd.f32 %v2965, %v3004
    %v3006 = vpop.f32.mrf.mxu0
    %3007 = vmatprep.mubr.bf16.mxu0 0
    %3008 = vmatmul.mubr.bf16.gmra.mxu0 %v2950
    %v3009 = vpop.f32.mrf.mxu0
    %v3010 = vadd.f32 %v2965, %v3009
    %v3011 = vpop.f32.mrf.mxu0
    %v3012 = vpop.f32.mrf.mxu0
    %v3013 = vadd.f32 %v2965, %v3012
    %v3014 = vpop.f32.mrf.mxu0
    %3015 = vmatprep.mubr.bf16.mxu0 0
    %3016 = vmatmul.mubr.bf16.gmra.mxu0 %v2951
    %v3017 = vpop.f32.mrf.mxu0
    %v3018 = vadd.f32 %v2965, %v3017
    %v3019 = vpop.f32.mrf.mxu0
    %v3020 = vpop.f32.mrf.mxu0
    %v3021 = vadd.f32 %v2965, %v3020
    %v3022 = vpop.f32.mrf.mxu0
    %3023 = vdwg.mxu0
    %v3024 = vadd.f32 %v2764, %v3002
    %v3025 = vadd.f32 %v2765, %v3005
    %v3026 = vadd.f32 %v2766, %v3010
    %v3027 = vadd.f32 %v2767, %v3013
    %v3028 = vadd.f32 %v2768, %v3018
    %v3029 = vadd.f32 %v2769, %v3021
    %3030 = vst [vmem:[#allocation20] sm:$0xff] %v3024
    %3031 = vst [vmem:[#allocation20 + $0x8] sm:$0xff] %v3025
    %3032 = vst [vmem:[#allocation20 + $0x10] sm:$0xff] %v3026
    %3033 = vst [vmem:[#allocation20 + $0x18] sm:$0xff] %v3027
    %3034 = vst [vmem:[#allocation20 + $0x20] sm:$0xff] %v3028
    %3035 = vst [vmem:[#allocation20 + $0x28] sm:$0xff] %v3029
    %v3036 = vmul.f32 %v2527, 0.005
    %v3037 = vmul.f32 %v2581, 0.005
    %v3038 = vmul.f32 %v3036, %v3036
    %v3039 = vsub.f32 %v3037, %v3038
    %v3040 = vmax.f32 %v3039, 0.0
    %v3041 = vadd.f32 %v3040, 1e-05
    %v3042 = vrsqrt.pop %v3041
    %v3043 = vld [vmem:[%s16 + $0x3] sm:$0x1]
    %v3044 = vld [vmem:[%s17 + $0x3] sm:$0x1]
    %v3045 = vld [vmem:[#allocation17] sm:$0xff]
    %v3046 = vld [vmem:[#allocation17 + $0x8] sm:$0xff]
    %v3047 = vld [vmem:[#allocation17 + $0x10] sm:$0xff]
    %v3048 = vld [vmem:[#allocation17 + $0x18] sm:$0xff]
    %v3049 = vld [vmem:[#allocation17 + $0x20] sm:$0xff]
    %v3050 = vld [vmem:[#allocation17 + $0x28] sm:$0xff]
    %v3051 = vld [vmem:[#allocation17 + $0x30] sm:$0xff]
    %v3052 = vld [vmem:[#allocation17 + $0x38] sm:$0xff]
    %v3053 = vld [vmem:[#allocation17 + $0x40] sm:$0xff]
    %v3054 = vld [vmem:[#allocation17 + $0x48] sm:$0xff]
    %v3055 = vld [vmem:[#allocation17 + $0x50] sm:$0xff]
    %v3056 = vld [vmem:[#allocation17 + $0x58] sm:$0xff]
    %v3057 = vld [vmem:[#allocation17 + $0x60] sm:$0xff]
    %v3058 = vld [vmem:[#allocation17 + $0x68] sm:$0xff]
    %v3059 = vld [vmem:[#allocation17 + $0x70] sm:$0xff]
    %v3060 = vld [vmem:[#allocation17 + $0x78] sm:$0xff]
    %v3061 = vpack.c.bf16 %v3046, %v3045
    %v3062 = vpack.c.bf16 %v3048, %v3047
    %v3063 = vpack.c.bf16 %v3050, %v3049
    %v3064 = vpack.c.bf16 %v3052, %v3051
    %v3065 = vpack.c.bf16 %v3054, %v3053
    %v3066 = vpack.c.bf16 %v3056, %v3055
    %v3067 = vpack.c.bf16 %v3058, %v3057
    %v3068 = vpack.c.bf16 %v3060, %v3059
    %v3069 = vld [vmem:[#allocation19] sm:$0xff]
    %v3070 = vld [vmem:[#allocation19 + $0x8] sm:$0xff]
    %v3071 = vld [vmem:[#allocation19 + $0x10] sm:$0xff]
    %v3072 = vld [vmem:[#allocation19 + $0x18] sm:$0xff]
    %v3073 = vld [vmem:[#allocation19 + $0x20] sm:$0xff]
    %v3074 = vld [vmem:[#allocation19 + $0x28] sm:$0xff]
    %v3075 = vld [vmem:[#allocation19 + $0x30] sm:$0xff]
    %v3076 = vld [vmem:[#allocation19 + $0x38] sm:$0xff]
    %v3077 = vld [vmem:[#allocation19 + $0x40] sm:$0xff]
    %v3078 = vld [vmem:[#allocation19 + $0x48] sm:$0xff]
    %v3079 = vld [vmem:[#allocation19 + $0x50] sm:$0xff]
    %v3080 = vld [vmem:[#allocation19 + $0x58] sm:$0xff]
    %v3081 = vld [vmem:[#allocation19 + $0x60] sm:$0xff]
    %v3082 = vld [vmem:[#allocation19 + $0x68] sm:$0xff]
    %v3083 = vld [vmem:[#allocation19 + $0x70] sm:$0xff]
    %v3084 = vld [vmem:[#allocation19 + $0x78] sm:$0xff]
    %v3085 = vpack.c.bf16 %v3070, %v3069
    %v3086 = vpack.c.bf16 %v3072, %v3071
    %v3087 = vpack.c.bf16 %v3074, %v3073
    %v3088 = vpack.c.bf16 %v3076, %v3075
    %v3089 = vpack.c.bf16 %v3078, %v3077
    %v3090 = vpack.c.bf16 %v3080, %v3079
    %v3091 = vpack.c.bf16 %v3082, %v3081
    %v3092 = vpack.c.bf16 %v3084, %v3083
    %v3093 = vld [vmem:[%s13] sm:$0x1]
    %v3094 = vld [vmem:[%s15] sm:$0x1]
    %v3095 = vld [vmem:[#allocation21] sm:$0xff]
    %v3096 = vld [vmem:[#allocation21 + $0x8] sm:$0xff]
    %v3097 = vld [vmem:[#allocation21 + $0x10] sm:$0xff]
    %v3098 = vld [vmem:[#allocation21 + $0x18] sm:$0xff]
    %v3099 = vld [vmem:[#allocation21 + $0x20] sm:$0xff]
    %v3100 = vld [vmem:[#allocation21 + $0x28] sm:$0xff]
    %v3101 = vld [vmem:[#allocation21 + $0x30] sm:$0xff]
    %v3102 = vld [vmem:[#allocation21 + $0x38] sm:$0xff]
    %v3103 = vld [vmem:[#allocation21 + $0x40] sm:$0xff]
    %v3104 = vld [vmem:[#allocation21 + $0x48] sm:$0xff]
    %v3105 = vld [vmem:[#allocation21 + $0x50] sm:$0xff]
    %v3106 = vld [vmem:[#allocation21 + $0x58] sm:$0xff]
    %v3107 = vld [vmem:[#allocation21 + $0x60] sm:$0xff]
    %v3108 = vld [vmem:[#allocation21 + $0x68] sm:$0xff]
    %v3109 = vld [vmem:[#allocation21 + $0x70] sm:$0xff]
    %v3110 = vld [vmem:[#allocation21 + $0x78] sm:$0xff]
    %v3111 = vsub.f32 %v3095, %v3036
    %v3112 = vsub.f32 %v3096, %v3036
    %v3113 = vsub.f32 %v3097, %v3036
    %v3114 = vsub.f32 %v3098, %v3036
    %v3115 = vsub.f32 %v3099, %v3036
    %v3116 = vsub.f32 %v3100, %v3036
    %v3117 = vsub.f32 %v3101, %v3036
    %v3118 = vsub.f32 %v3102, %v3036
    %v3119 = vsub.f32 %v3103, %v3036
    %v3120 = vsub.f32 %v3104, %v3036
    %v3121 = vsub.f32 %v3105, %v3036
    %v3122 = vsub.f32 %v3106, %v3036
    %v3123 = vsub.f32 %v3107, %v3036
    %v3124 = vsub.f32 %v3108, %v3036
    %v3125 = vsub.f32 %v3109, %v3036
    %v3126 = vsub.f32 %v3110, %v3036
    %v3127 = vmul.f32 %v3111, %v3042
    %v3128 = vmul.f32 %v3112, %v3042
    %v3129 = vmul.f32 %v3113, %v3042
    %v3130 = vmul.f32 %v3114, %v3042
    %v3131 = vmul.f32 %v3115, %v3042
    %v3132 = vmul.f32 %v3116, %v3042
    %v3133 = vmul.f32 %v3117, %v3042
    %v3134 = vmul.f32 %v3118, %v3042
    %v3135 = vmul.f32 %v3119, %v3042
    %v3136 = vmul.f32 %v3120, %v3042
    %v3137 = vmul.f32 %v3121, %v3042
    %v3138 = vmul.f32 %v3122, %v3042
    %v3139 = vmul.f32 %v3123, %v3042
    %v3140 = vmul.f32 %v3124, %v3042
    %v3141 = vmul.f32 %v3125, %v3042
    %v3142 = vmul.f32 %v3126, %v3042
    %v3143 = vlaneseq
    %v3144 = vshrl.u32 %v3143, 7
    %v3145 = vsub.s32 0, %v3144
    %v3146 = vrot.slane %v3043, %v3145
    %v3147 = vmul.f32 %v3127, %v3146
    %v3148 = vmul.f32 %v3128, %v3146
    %v3149 = vmul.f32 %v3129, %v3146
    %v3150 = vmul.f32 %v3130, %v3146
    %v3151 = vmul.f32 %v3131, %v3146
    %v3152 = vmul.f32 %v3132, %v3146
    %v3153 = vmul.f32 %v3133, %v3146
    %v3154 = vmul.f32 %v3134, %v3146
    %v3155 = vmul.f32 %v3135, %v3146
    %v3156 = vmul.f32 %v3136, %v3146
    %v3157 = vmul.f32 %v3137, %v3146
    %v3158 = vmul.f32 %v3138, %v3146
    %v3159 = vmul.f32 %v3139, %v3146
    %v3160 = vmul.f32 %v3140, %v3146
    %v3161 = vmul.f32 %v3141, %v3146
    %v3162 = vmul.f32 %v3142, %v3146
    %v3163 = vlaneseq
    %v3164 = vshrl.u32 %v3163, 7
    %v3165 = vsub.s32 0, %v3164
    %v3166 = vrot.slane %v3044, %v3165
    %v3167 = vadd.f32 %v3147, %v3166
    %v3168 = vadd.f32 %v3148, %v3166
    %v3169 = vadd.f32 %v3149, %v3166
    %v3170 = vadd.f32 %v3150, %v3166
    %v3171 = vadd.f32 %v3151, %v3166
    %v3172 = vadd.f32 %v3152, %v3166
    %v3173 = vadd.f32 %v3153, %v3166
    %v3174 = vadd.f32 %v3154, %v3166
    %v3175 = vadd.f32 %v3155, %v3166
    %v3176 = vadd.f32 %v3156, %v3166
    %v3177 = vadd.f32 %v3157, %v3166
    %v3178 = vadd.f32 %v3158, %v3166
    %v3179 = vadd.f32 %v3159, %v3166
    %v3180 = vadd.f32 %v3160, %v3166
    %v3181 = vadd.f32 %v3161, %v3166
    %v3182 = vadd.f32 %v3162, %v3166
    %v3183 = vpack.c.bf16 %v3168, %v3167
    %v3184 = vpack.c.bf16 %v3170, %v3169
    %v3185 = vpack.c.bf16 %v3172, %v3171
    %v3186 = vpack.c.bf16 %v3174, %v3173
    %v3187 = vpack.c.bf16 %v3176, %v3175
    %v3188 = vpack.c.bf16 %v3178, %v3177
    %v3189 = vpack.c.bf16 %v3180, %v3179
    %v3190 = vpack.c.bf16 %v3182, %v3181
    %v3192 = vlaneseq
    %v3193 = vshrl.u32 %v3192, 7
    %v3194 = vsub.s32 0, %v3193
    %v3195 = vrot.slane %v3093, %v3194
    %3197 = vmatprep.subr.bf16.mxu0 0
    %3198 = vmatpush1.bf16.msra.mxu0 %v3068
    %3199 = vmatprep.subr.bf16.mxu0 0
    %3200 = vmatpush1.bf16.msra.mxu0 %v3067
    %3201 = vmatprep.subr.bf16.mxu0 0
    %3202 = vmatpush1.bf16.msra.mxu0 %v3066
    %3203 = vmatprep.subr.bf16.mxu0 0
    %3204 = vmatpush1.bf16.msra.mxu0 %v3065
    %3205 = vmatprep.subr.bf16.mxu0 0
    %3206 = vmatpush1.bf16.msra.mxu0 %v3064
    %3207 = vmatprep.subr.bf16.mxu0 0
    %3208 = vmatpush1.bf16.msra.mxu0 %v3063
    %3209 = vmatprep.subr.bf16.mxu0 0
    %3210 = vmatpush1.bf16.msra.mxu0 %v3062
    %3211 = vmatprep.subr.bf16.mxu0 0
    %3212 = vmatpush1.bf16.msra.mxu0 %v3061
    %3213 = vmatprep.subr.bf16.mxu0 0
    %3214 = vmatpush2.bf16.msra.mxu0 0
    %3215 = vmatprep.subr.bf16.mxu0 0
    %3216 = vmatpush2.bf16.msra.mxu0 0
    %3217 = vmatprep.subr.bf16.mxu0 0
    %3218 = vmatpush2.bf16.msra.mxu0 0
    %3219 = vmatprep.subr.bf16.mxu0 0
    %3220 = vmatpush2.bf16.msra.mxu0 0
    %3221 = vmatprep.subr.bf16.mxu0 0
    %3222 = vmatpush2.bf16.msra.mxu0 0
    %3223 = vmatprep.subr.bf16.mxu0 0
    %3224 = vmatpush2.bf16.msra.mxu0 0
    %3225 = vmatprep.subr.bf16.mxu0 0
    %3226 = vmatpush2.bf16.msra.mxu0 0
    %3227 = vmatprep.subr.bf16.mxu0 0
    %3228 = vmatpush2.bf16.msra.mxu0 0
    %3229 = vmatprep.mubr.bf16.mxu0 0
    %3230 = vmatmul.mubr.bf16.gmra.mxu0 %v3183
    %v3231 = vpop.f32.mrf.mxu0
    %v3232 = vadd.f32 %v3195, %v3231
    %v3233 = vpop.f32.mrf.mxu0
    %v3234 = vpop.f32.mrf.mxu0
    %v3235 = vadd.f32 %v3195, %v3234
    %v3236 = vpop.f32.mrf.mxu0
    %3237 = vmatprep.mubr.bf16.mxu0 0
    %3238 = vmatmul.mubr.bf16.gmra.mxu0 %v3184
    %v3239 = vpop.f32.mrf.mxu0
    %v3240 = vadd.f32 %v3195, %v3239
    %v3241 = vpop.f32.mrf.mxu0
    %v3242 = vpop.f32.mrf.mxu0
    %v3243 = vadd.f32 %v3195, %v3242
    %v3244 = vpop.f32.mrf.mxu0
    %3245 = vmatprep.mubr.bf16.mxu0 0
    %3246 = vmatmul.mubr.bf16.gmra.mxu0 %v3185
    %v3247 = vpop.f32.mrf.mxu0
    %v3248 = vadd.f32 %v3195, %v3247
    %v3249 = vpop.f32.mrf.mxu0
    %v3250 = vpop.f32.mrf.mxu0
    %v3251 = vadd.f32 %v3195, %v3250
    %v3252 = vpop.f32.mrf.mxu0
    %3253 = vmatprep.mubr.bf16.mxu0 0
    %3254 = vmatmul.mubr.bf16.gmra.mxu0 %v3186
    %v3255 = vpop.f32.mrf.mxu0
    %v3256 = vadd.f32 %v3195, %v3255
    %v3257 = vpop.f32.mrf.mxu0
    %v3258 = vpop.f32.mrf.mxu0
    %v3259 = vadd.f32 %v3195, %v3258
    %v3260 = vpop.f32.mrf.mxu0
    %3261 = vmatprep.mubr.bf16.mxu0 0
    %3262 = vmatmul.mubr.bf16.gmra.mxu0 %v3187
    %v3263 = vpop.f32.mrf.mxu0
    %v3264 = vadd.f32 %v3195, %v3263
    %v3265 = vpop.f32.mrf.mxu0
    %v3266 = vpop.f32.mrf.mxu0
    %v3267 = vadd.f32 %v3195, %v3266
    %v3268 = vpop.f32.mrf.mxu0
    %3269 = vmatprep.mubr.bf16.mxu0 0
    %3270 = vmatmul.mubr.bf16.gmra.mxu0 %v3188
    %v3271 = vpop.f32.mrf.mxu0
    %v3272 = vadd.f32 %v3195, %v3271
    %v3273 = vpop.f32.mrf.mxu0
    %v3274 = vpop.f32.mrf.mxu0
    %v3275 = vadd.f32 %v3195, %v3274
    %v3276 = vpop.f32.mrf.mxu0
    %3277 = vmatprep.mubr.bf16.mxu0 0
    %3278 = vmatmul.mubr.bf16.gmra.mxu0 %v3189
    %v3279 = vpop.f32.mrf.mxu0
    %v3280 = vadd.f32 %v3195, %v3279
    %v3281 = vpop.f32.mrf.mxu0
    %v3282 = vpop.f32.mrf.mxu0
    %v3283 = vadd.f32 %v3195, %v3282
    %v3284 = vpop.f32.mrf.mxu0
    %3285 = vmatprep.mubr.bf16.mxu0 0
    %3286 = vmatmul.mubr.bf16.gmra.mxu0 %v3190
    %v3287 = vpop.f32.mrf.mxu0
    %v3288 = vadd.f32 %v3195, %v3287
    %v3289 = vpop.f32.mrf.mxu0
    %v3290 = vpop.f32.mrf.mxu0
    %v3291 = vadd.f32 %v3195, %v3290
    %v3292 = vpop.f32.mrf.mxu0
    %3293 = vdwg.mxu0
    %v3294 = vmax.f32 %v3232, 0.0
    %v3295 = vmax.f32 %v3235, 0.0
    %v3296 = vmax.f32 %v3240, 0.0
    %v3297 = vmax.f32 %v3243, 0.0
    %v3298 = vmax.f32 %v3248, 0.0
    %v3299 = vmax.f32 %v3251, 0.0
    %v3300 = vmax.f32 %v3256, 0.0
    %v3301 = vmax.f32 %v3259, 0.0
    %v3302 = vmax.f32 %v3264, 0.0
    %v3303 = vmax.f32 %v3267, 0.0
    %v3304 = vmax.f32 %v3272, 0.0
    %v3305 = vmax.f32 %v3275, 0.0
    %v3306 = vmax.f32 %v3280, 0.0
    %v3307 = vmax.f32 %v3283, 0.0
    %v3308 = vmax.f32 %v3288, 0.0
    %v3309 = vmax.f32 %v3291, 0.0
    %v3310 = vpack.c.bf16 %v3295, %v3294
    %v3311 = vpack.c.bf16 %v3297, %v3296
    %v3312 = vpack.c.bf16 %v3299, %v3298
    %v3313 = vpack.c.bf16 %v3301, %v3300
    %v3314 = vpack.c.bf16 %v3303, %v3302
    %v3315 = vpack.c.bf16 %v3305, %v3304
    %v3316 = vpack.c.bf16 %v3307, %v3306
    %v3317 = vpack.c.bf16 %v3309, %v3308
    %v3319 = vlaneseq
    %v3320 = vshrl.u32 %v3319, 7
    %v3321 = vsub.s32 0, %v3320
    %v3322 = vrot.slane %v3094, %v3321
    %3324 = vmatprep.subr.bf16.mxu0 0
    %3325 = vmatpush1.bf16.msra.mxu0 %v3092
    %3326 = vmatprep.subr.bf16.mxu0 0
    %3327 = vmatpush1.bf16.msra.mxu0 %v3091
    %3328 = vmatprep.subr.bf16.mxu0 0
    %3329 = vmatpush1.bf16.msra.mxu0 %v3090
    %3330 = vmatprep.subr.bf16.mxu0 0
    %3331 = vmatpush1.bf16.msra.mxu0 %v3089
    %3332 = vmatprep.subr.bf16.mxu0 0
    %3333 = vmatpush1.bf16.msra.mxu0 %v3088
    %3334 = vmatprep.subr.bf16.mxu0 0
    %3335 = vmatpush1.bf16.msra.mxu0 %v3087
    %3336 = vmatprep.subr.bf16.mxu0 0
    %3337 = vmatpush1.bf16.msra.mxu0 %v3086
    %3338 = vmatprep.subr.bf16.mxu0 0
    %3339 = vmatpush1.bf16.msra.mxu0 %v3085
    %3340 = vmatprep.subr.bf16.mxu0 0
    %3341 = vmatpush2.bf16.msra.mxu0 0
    %3342 = vmatprep.subr.bf16.mxu0 0
    %3343 = vmatpush2.bf16.msra.mxu0 0
    %3344 = vmatprep.subr.bf16.mxu0 0
    %3345 = vmatpush2.bf16.msra.mxu0 0
    %3346 = vmatprep.subr.bf16.mxu0 0
    %3347 = vmatpush2.bf16.msra.mxu0 0
    %3348 = vmatprep.subr.bf16.mxu0 0
    %3349 = vmatpush2.bf16.msra.mxu0 0
    %3350 = vmatprep.subr.bf16.mxu0 0
    %3351 = vmatpush2.bf16.msra.mxu0 0
    %3352 = vmatprep.subr.bf16.mxu0 0
    %3353 = vmatpush2.bf16.msra.mxu0 0
    %3354 = vmatprep.subr.bf16.mxu0 0
    %3355 = vmatpush2.bf16.msra.mxu0 0
    %3356 = vmatprep.mubr.bf16.mxu0 0
    %3357 = vmatmul.mubr.bf16.gmra.mxu0 %v3310
    %v3358 = vpop.f32.mrf.mxu0
    %v3359 = vadd.f32 %v3322, %v3358
    %v3360 = vpop.f32.mrf.mxu0
    %v3361 = vpop.f32.mrf.mxu0
    %v3362 = vadd.f32 %v3322, %v3361
    %v3363 = vpop.f32.mrf.mxu0
    %3364 = vmatprep.mubr.bf16.mxu0 0
    %3365 = vmatmul.mubr.bf16.gmra.mxu0 %v3311
    %v3366 = vpop.f32.mrf.mxu0
    %v3367 = vadd.f32 %v3322, %v3366
    %v3368 = vpop.f32.mrf.mxu0
    %v3369 = vpop.f32.mrf.mxu0
    %v3370 = vadd.f32 %v3322, %v3369
    %v3371 = vpop.f32.mrf.mxu0
    %3372 = vmatprep.mubr.bf16.mxu0 0
    %3373 = vmatmul.mubr.bf16.gmra.mxu0 %v3312
    %v3374 = vpop.f32.mrf.mxu0
    %v3375 = vadd.f32 %v3322, %v3374
    %v3376 = vpop.f32.mrf.mxu0
    %v3377 = vpop.f32.mrf.mxu0
    %v3378 = vadd.f32 %v3322, %v3377
    %v3379 = vpop.f32.mrf.mxu0
    %3380 = vmatprep.mubr.bf16.mxu0 0
    %3381 = vmatmul.mubr.bf16.gmra.mxu0 %v3313
    %v3382 = vpop.f32.mrf.mxu0
    %v3383 = vadd.f32 %v3322, %v3382
    %v3384 = vpop.f32.mrf.mxu0
    %v3385 = vpop.f32.mrf.mxu0
    %v3386 = vadd.f32 %v3322, %v3385
    %v3387 = vpop.f32.mrf.mxu0
    %3388 = vmatprep.mubr.bf16.mxu0 0
    %3389 = vmatmul.mubr.bf16.gmra.mxu0 %v3314
    %v3390 = vpop.f32.mrf.mxu0
    %v3391 = vadd.f32 %v3322, %v3390
    %v3392 = vpop.f32.mrf.mxu0
    %v3393 = vpop.f32.mrf.mxu0
    %v3394 = vadd.f32 %v3322, %v3393
    %v3395 = vpop.f32.mrf.mxu0
    %3396 = vmatprep.mubr.bf16.mxu0 0
    %3397 = vmatmul.mubr.bf16.gmra.mxu0 %v3315
    %v3398 = vpop.f32.mrf.mxu0
    %v3399 = vadd.f32 %v3322, %v3398
    %v3400 = vpop.f32.mrf.mxu0
    %v3401 = vpop.f32.mrf.mxu0
    %v3402 = vadd.f32 %v3322, %v3401
    %v3403 = vpop.f32.mrf.mxu0
    %3404 = vmatprep.mubr.bf16.mxu0 0
    %3405 = vmatmul.mubr.bf16.gmra.mxu0 %v3316
    %v3406 = vpop.f32.mrf.mxu0
    %v3407 = vadd.f32 %v3322, %v3406
    %v3408 = vpop.f32.mrf.mxu0
    %v3409 = vpop.f32.mrf.mxu0
    %v3410 = vadd.f32 %v3322, %v3409
    %v3411 = vpop.f32.mrf.mxu0
    %3412 = vmatprep.mubr.bf16.mxu0 0
    %3413 = vmatmul.mubr.bf16.gmra.mxu0 %v3317
    %v3414 = vpop.f32.mrf.mxu0
    %v3415 = vadd.f32 %v3322, %v3414
    %v3416 = vpop.f32.mrf.mxu0
    %v3417 = vpop.f32.mrf.mxu0
    %v3418 = vadd.f32 %v3322, %v3417
    %v3419 = vpop.f32.mrf.mxu0
    %3420 = vdwg.mxu0
    %v3421 = vadd.f32 %v3095, %v3359
    %v3422 = vadd.f32 %v3096, %v3362
    %v3423 = vadd.f32 %v3097, %v3367
    %v3424 = vadd.f32 %v3098, %v3370
    %v3425 = vadd.f32 %v3099, %v3375
    %v3426 = vadd.f32 %v3100, %v3378
    %v3427 = vadd.f32 %v3101, %v3383
    %v3428 = vadd.f32 %v3102, %v3386
    %v3429 = vadd.f32 %v3103, %v3391
    %v3430 = vadd.f32 %v3104, %v3394
    %v3431 = vadd.f32 %v3105, %v3399
    %v3432 = vadd.f32 %v3106, %v3402
    %v3433 = vadd.f32 %v3107, %v3407
    %v3434 = vadd.f32 %v3108, %v3410
    %v3435 = vadd.f32 %v3109, %v3415
    %v3436 = vadd.f32 %v3110, %v3418
    %3437 = vst [vmem:[#allocation21] sm:$0xff] %v3421
    %3438 = vst [vmem:[#allocation21 + $0x8] sm:$0xff] %v3422
    %3439 = vst [vmem:[#allocation21 + $0x10] sm:$0xff] %v3423
    %3440 = vst [vmem:[#allocation21 + $0x18] sm:$0xff] %v3424
    %3441 = vst [vmem:[#allocation21 + $0x20] sm:$0xff] %v3425
    %3442 = vst [vmem:[#allocation21 + $0x28] sm:$0xff] %v3426
    %3443 = vst [vmem:[#allocation21 + $0x30] sm:$0xff] %v3427
    %3444 = vst [vmem:[#allocation21 + $0x38] sm:$0xff] %v3428
    %3445 = vst [vmem:[#allocation21 + $0x40] sm:$0xff] %v3429
    %3446 = vst [vmem:[#allocation21 + $0x48] sm:$0xff] %v3430
    %3447 = vst [vmem:[#allocation21 + $0x50] sm:$0xff] %v3431
    %3448 = vst [vmem:[#allocation21 + $0x58] sm:$0xff] %v3432
    %3449 = vst [vmem:[#allocation21 + $0x60] sm:$0xff] %v3433
    %3450 = vst [vmem:[#allocation21 + $0x68] sm:$0xff] %v3434
    %3451 = vst [vmem:[#allocation21 + $0x70] sm:$0xff] %v3435
    %3452 = vst [vmem:[#allocation21 + $0x78] sm:$0xff] %v3436
    %v3453 = vld [vmem:[%s2408] sm:$0xff]
    %v3454 = vld [vmem:[%s2408 + $0x8] sm:$0xff]
    %v3455 = vld [vmem:[%s2408 + $0x10] sm:$0xff]
    %v3456 = vld [vmem:[%s2408 + $0x18] sm:$0xff]
    %v3457 = vld [vmem:[%s2408 + $0x20] sm:$0xff]
    %v3458 = vld [vmem:[%s2408 + $0x28] sm:$0xff]
    %v3459 = vld [vmem:[%s2408 + $0x30] sm:$0xff]
    %v3460 = vld [vmem:[%s2408 + $0x38] sm:$0xff]
    %v3461 = vld [vmem:[%s2408 + $0x40] sm:$0xff]
    %v3462 = vld [vmem:[%s2408 + $0x48] sm:$0xff]
    %v3463 = vld [vmem:[%s2408 + $0x50] sm:$0xff]
    %v3464 = vld [vmem:[%s2408 + $0x58] sm:$0xff]
    %v3465 = vld [vmem:[%s2408 + $0x60] sm:$0xff]
    %v3466 = vld [vmem:[%s2408 + $0x68] sm:$0xff]
    %v3467 = vld [vmem:[%s2408 + $0x70] sm:$0xff]
    %v3468 = vld [vmem:[%s2408 + $0x78] sm:$0xff]
    %v3469 = vsub.f32 %v3453, %v3036
    %v3470 = vsub.f32 %v3454, %v3036
    %v3471 = vsub.f32 %v3455, %v3036
    %v3472 = vsub.f32 %v3456, %v3036
    %v3473 = vsub.f32 %v3457, %v3036
    %v3474 = vsub.f32 %v3458, %v3036
    %v3475 = vsub.f32 %v3459, %v3036
    %v3476 = vsub.f32 %v3460, %v3036
    %v3477 = vsub.f32 %v3461, %v3036
    %v3478 = vsub.f32 %v3462, %v3036
    %v3479 = vsub.f32 %v3463, %v3036
    %v3480 = vsub.f32 %v3464, %v3036
    %v3481 = vsub.f32 %v3465, %v3036
    %v3482 = vsub.f32 %v3466, %v3036
    %v3483 = vsub.f32 %v3467, %v3036
    %v3484 = vsub.f32 %v3468, %v3036
    %v3485 = vmul.f32 %v3469, %v3042
    %v3486 = vmul.f32 %v3470, %v3042
    %v3487 = vmul.f32 %v3471, %v3042
    %v3488 = vmul.f32 %v3472, %v3042
    %v3489 = vmul.f32 %v3473, %v3042
    %v3490 = vmul.f32 %v3474, %v3042
    %v3491 = vmul.f32 %v3475, %v3042
    %v3492 = vmul.f32 %v3476, %v3042
    %v3493 = vmul.f32 %v3477, %v3042
    %v3494 = vmul.f32 %v3478, %v3042
    %v3495 = vmul.f32 %v3479, %v3042
    %v3496 = vmul.f32 %v3480, %v3042
    %v3497 = vmul.f32 %v3481, %v3042
    %v3498 = vmul.f32 %v3482, %v3042
    %v3499 = vmul.f32 %v3483, %v3042
    %v3500 = vmul.f32 %v3484, %v3042
    %v3501 = vmul.f32 %v3485, %v3146
    %v3502 = vmul.f32 %v3486, %v3146
    %v3503 = vmul.f32 %v3487, %v3146
    %v3504 = vmul.f32 %v3488, %v3146
    %v3505 = vmul.f32 %v3489, %v3146
    %v3506 = vmul.f32 %v3490, %v3146
    %v3507 = vmul.f32 %v3491, %v3146
    %v3508 = vmul.f32 %v3492, %v3146
    %v3509 = vmul.f32 %v3493, %v3146
    %v3510 = vmul.f32 %v3494, %v3146
    %v3511 = vmul.f32 %v3495, %v3146
    %v3512 = vmul.f32 %v3496, %v3146
    %v3513 = vmul.f32 %v3497, %v3146
    %v3514 = vmul.f32 %v3498, %v3146
    %v3515 = vmul.f32 %v3499, %v3146
    %v3516 = vmul.f32 %v3500, %v3146
    %v3517 = vadd.f32 %v3501, %v3166
    %v3518 = vadd.f32 %v3502, %v3166
    %v3519 = vadd.f32 %v3503, %v3166
    %v3520 = vadd.f32 %v3504, %v3166
    %v3521 = vadd.f32 %v3505, %v3166
    %v3522 = vadd.f32 %v3506, %v3166
    %v3523 = vadd.f32 %v3507, %v3166
    %v3524 = vadd.f32 %v3508, %v3166
    %v3525 = vadd.f32 %v3509, %v3166
    %v3526 = vadd.f32 %v3510, %v3166
    %v3527 = vadd.f32 %v3511, %v3166
    %v3528 = vadd.f32 %v3512, %v3166
    %v3529 = vadd.f32 %v3513, %v3166
    %v3530 = vadd.f32 %v3514, %v3166
    %v3531 = vadd.f32 %v3515, %v3166
    %v3532 = vadd.f32 %v3516, %v3166
    %v3533 = vpack.c.bf16 %v3518, %v3517
    %v3534 = vpack.c.bf16 %v3520, %v3519
    %v3535 = vpack.c.bf16 %v3522, %v3521
    %v3536 = vpack.c.bf16 %v3524, %v3523
    %v3537 = vpack.c.bf16 %v3526, %v3525
    %v3538 = vpack.c.bf16 %v3528, %v3527
    %v3539 = vpack.c.bf16 %v3530, %v3529
    %v3540 = vpack.c.bf16 %v3532, %v3531
    %3541 = vmatprep.subr.bf16.mxu0 0
    %3542 = vmatpush1.bf16.msra.mxu0 %v3068
    %3543 = vmatprep.subr.bf16.mxu0 0
    %3544 = vmatpush1.bf16.msra.mxu0 %v3067
    %3545 = vmatprep.subr.bf16.mxu0 0
    %3546 = vmatpush1.bf16.msra.mxu0 %v3066
    %3547 = vmatprep.subr.bf16.mxu0 0
    %3548 = vmatpush1.bf16.msra.mxu0 %v3065
    %3549 = vmatprep.subr.bf16.mxu0 0
    %3550 = vmatpush1.bf16.msra.mxu0 %v3064
    %3551 = vmatprep.subr.bf16.mxu0 0
    %3552 = vmatpush1.bf16.msra.mxu0 %v3063
    %3553 = vmatprep.subr.bf16.mxu0 0
    %3554 = vmatpush1.bf16.msra.mxu0 %v3062
    %3555 = vmatprep.subr.bf16.mxu0 0
    %3556 = vmatpush1.bf16.msra.mxu0 %v3061
    %3557 = vmatprep.subr.bf16.mxu0 0
    %3558 = vmatpush2.bf16.msra.mxu0 0
    %3559 = vmatprep.subr.bf16.mxu0 0
    %3560 = vmatpush2.bf16.msra.mxu0 0
    %3561 = vmatprep.subr.bf16.mxu0 0
    %3562 = vmatpush2.bf16.msra.mxu0 0
    %3563 = vmatprep.subr.bf16.mxu0 0
    %3564 = vmatpush2.bf16.msra.mxu0 0
    %3565 = vmatprep.subr.bf16.mxu0 0
    %3566 = vmatpush2.bf16.msra.mxu0 0
    %3567 = vmatprep.subr.bf16.mxu0 0
    %3568 = vmatpush2.bf16.msra.mxu0 0
    %3569 = vmatprep.subr.bf16.mxu0 0
    %3570 = vmatpush2.bf16.msra.mxu0 0
    %3571 = vmatprep.subr.bf16.mxu0 0
    %3572 = vmatpush2.bf16.msra.mxu0 0
    %3573 = vmatprep.mubr.bf16.mxu0 0
    %3574 = vmatmul.mubr.bf16.gmra.mxu0 %v3533
    %v3575 = vpop.f32.mrf.mxu0
    %v3576 = vadd.f32 %v3195, %v3575
    %v3577 = vpop.f32.mrf.mxu0
    %v3578 = vpop.f32.mrf.mxu0
    %v3579 = vadd.f32 %v3195, %v3578
    %v3580 = vpop.f32.mrf.mxu0
    %3581 = vmatprep.mubr.bf16.mxu0 0
    %3582 = vmatmul.mubr.bf16.gmra.mxu0 %v3534
    %v3583 = vpop.f32.mrf.mxu0
    %v3584 = vadd.f32 %v3195, %v3583
    %v3585 = vpop.f32.mrf.mxu0
    %v3586 = vpop.f32.mrf.mxu0
    %v3587 = vadd.f32 %v3195, %v3586
    %v3588 = vpop.f32.mrf.mxu0
    %3589 = vmatprep.mubr.bf16.mxu0 0
    %3590 = vmatmul.mubr.bf16.gmra.mxu0 %v3535
    %v3591 = vpop.f32.mrf.mxu0
    %v3592 = vadd.f32 %v3195, %v3591
    %v3593 = vpop.f32.mrf.mxu0
    %v3594 = vpop.f32.mrf.mxu0
    %v3595 = vadd.f32 %v3195, %v3594
    %v3596 = vpop.f32.mrf.mxu0
    %3597 = vmatprep.mubr.bf16.mxu0 0
    %3598 = vmatmul.mubr.bf16.gmra.mxu0 %v3536
    %v3599 = vpop.f32.mrf.mxu0
    %v3600 = vadd.f32 %v3195, %v3599
    %v3601 = vpop.f32.mrf.mxu0
    %v3602 = vpop.f32.mrf.mxu0
    %v3603 = vadd.f32 %v3195, %v3602
    %v3604 = vpop.f32.mrf.mxu0
    %3605 = vmatprep.mubr.bf16.mxu0 0
    %3606 = vmatmul.mubr.bf16.gmra.mxu0 %v3537
    %v3607 = vpop.f32.mrf.mxu0
    %v3608 = vadd.f32 %v3195, %v3607
    %v3609 = vpop.f32.mrf.mxu0
    %v3610 = vpop.f32.mrf.mxu0
    %v3611 = vadd.f32 %v3195, %v3610
    %v3612 = vpop.f32.mrf.mxu0
    %3613 = vmatprep.mubr.bf16.mxu0 0
    %3614 = vmatmul.mubr.bf16.gmra.mxu0 %v3538
    %v3615 = vpop.f32.mrf.mxu0
    %v3616 = vadd.f32 %v3195, %v3615
    %v3617 = vpop.f32.mrf.mxu0
    %v3618 = vpop.f32.mrf.mxu0
    %v3619 = vadd.f32 %v3195, %v3618
    %v3620 = vpop.f32.mrf.mxu0
    %3621 = vmatprep.mubr.bf16.mxu0 0
    %3622 = vmatmul.mubr.bf16.gmra.mxu0 %v3539
    %v3623 = vpop.f32.mrf.mxu0
    %v3624 = vadd.f32 %v3195, %v3623
    %v3625 = vpop.f32.mrf.mxu0
    %v3626 = vpop.f32.mrf.mxu0
    %v3627 = vadd.f32 %v3195, %v3626
    %v3628 = vpop.f32.mrf.mxu0
    %3629 = vmatprep.mubr.bf16.mxu0 0
    %3630 = vmatmul.mubr.bf16.gmra.mxu0 %v3540
    %v3631 = vpop.f32.mrf.mxu0
    %v3632 = vadd.f32 %v3195, %v3631
    %v3633 = vpop.f32.mrf.mxu0
    %v3634 = vpop.f32.mrf.mxu0
    %v3635 = vadd.f32 %v3195, %v3634
    %v3636 = vpop.f32.mrf.mxu0
    %3637 = vdwg.mxu0
    %v3638 = vmax.f32 %v3576, 0.0
    %v3639 = vmax.f32 %v3579, 0.0
    %v3640 = vmax.f32 %v3584, 0.0
    %v3641 = vmax.f32 %v3587, 0.0
    %v3642 = vmax.f32 %v3592, 0.0
    %v3643 = vmax.f32 %v3595, 0.0
    %v3644 = vmax.f32 %v3600, 0.0
    %v3645 = vmax.f32 %v3603, 0.0
    %v3646 = vmax.f32 %v3608, 0.0
    %v3647 = vmax.f32 %v3611, 0.0
    %v3648 = vmax.f32 %v3616, 0.0
    %v3649 = vmax.f32 %v3619, 0.0
    %v3650 = vmax.f32 %v3624, 0.0
    %v3651 = vmax.f32 %v3627, 0.0
    %v3652 = vmax.f32 %v3632, 0.0
    %v3653 = vmax.f32 %v3635, 0.0
    %v3654 = vpack.c.bf16 %v3639, %v3638
    %v3655 = vpack.c.bf16 %v3641, %v3640
    %v3656 = vpack.c.bf16 %v3643, %v3642
    %v3657 = vpack.c.bf16 %v3645, %v3644
    %v3658 = vpack.c.bf16 %v3647, %v3646
    %v3659 = vpack.c.bf16 %v3649, %v3648
    %v3660 = vpack.c.bf16 %v3651, %v3650
    %v3661 = vpack.c.bf16 %v3653, %v3652
    %3662 = vmatprep.subr.bf16.mxu0 0
    %3663 = vmatpush1.bf16.msra.mxu0 %v3092
    %3664 = vmatprep.subr.bf16.mxu0 0
    %3665 = vmatpush1.bf16.msra.mxu0 %v3091
    %3666 = vmatprep.subr.bf16.mxu0 0
    %3667 = vmatpush1.bf16.msra.mxu0 %v3090
    %3668 = vmatprep.subr.bf16.mxu0 0
    %3669 = vmatpush1.bf16.msra.mxu0 %v3089
    %3670 = vmatprep.subr.bf16.mxu0 0
    %3671 = vmatpush1.bf16.msra.mxu0 %v3088
    %3672 = vmatprep.subr.bf16.mxu0 0
    %3673 = vmatpush1.bf16.msra.mxu0 %v3087
    %3674 = vmatprep.subr.bf16.mxu0 0
    %3675 = vmatpush1.bf16.msra.mxu0 %v3086
    %3676 = vmatprep.subr.bf16.mxu0 0
    %3677 = vmatpush1.bf16.msra.mxu0 %v3085
    %3678 = vmatprep.subr.bf16.mxu0 0
    %3679 = vmatpush2.bf16.msra.mxu0 0
    %3680 = vmatprep.subr.bf16.mxu0 0
    %3681 = vmatpush2.bf16.msra.mxu0 0
    %3682 = vmatprep.subr.bf16.mxu0 0
    %3683 = vmatpush2.bf16.msra.mxu0 0
    %3684 = vmatprep.subr.bf16.mxu0 0
    %3685 = vmatpush2.bf16.msra.mxu0 0
    %3686 = vmatprep.subr.bf16.mxu0 0
    %3687 = vmatpush2.bf16.msra.mxu0 0
    %3688 = vmatprep.subr.bf16.mxu0 0
    %3689 = vmatpush2.bf16.msra.mxu0 0
    %3690 = vmatprep.subr.bf16.mxu0 0
    %3691 = vmatpush2.bf16.msra.mxu0 0
    %3692 = vmatprep.subr.bf16.mxu0 0
    %3693 = vmatpush2.bf16.msra.mxu0 0
    %3694 = vmatprep.mubr.bf16.mxu0 0
    %3695 = vmatmul.mubr.bf16.gmra.mxu0 %v3654
    %v3696 = vpop.f32.mrf.mxu0
    %v3697 = vadd.f32 %v3322, %v3696
    %v3698 = vpop.f32.mrf.mxu0
    %v3699 = vpop.f32.mrf.mxu0
    %v3700 = vadd.f32 %v3322, %v3699
    %v3701 = vpop.f32.mrf.mxu0
    %3702 = vmatprep.mubr.bf16.mxu0 0
    %3703 = vmatmul.mubr.bf16.gmra.mxu0 %v3655
    %v3704 = vpop.f32.mrf.mxu0
    %v3705 = vadd.f32 %v3322, %v3704
    %v3706 = vpop.f32.mrf.mxu0
    %v3707 = vpop.f32.mrf.mxu0
    %v3708 = vadd.f32 %v3322, %v3707
    %v3709 = vpop.f32.mrf.mxu0
    %3710 = vmatprep.mubr.bf16.mxu0 0
    %3711 = vmatmul.mubr.bf16.gmra.mxu0 %v3656
    %v3712 = vpop.f32.mrf.mxu0
    %v3713 = vadd.f32 %v3322, %v3712
    %v3714 = vpop.f32.mrf.mxu0
    %v3715 = vpop.f32.mrf.mxu0
    %v3716 = vadd.f32 %v3322, %v3715
    %v3717 = vpop.f32.mrf.mxu0
    %3718 = vmatprep.mubr.bf16.mxu0 0
    %3719 = vmatmul.mubr.bf16.gmra.mxu0 %v3657
    %v3720 = vpop.f32.mrf.mxu0
    %v3721 = vadd.f32 %v3322, %v3720
    %v3722 = vpop.f32.mrf.mxu0
    %v3723 = vpop.f32.mrf.mxu0
    %v3724 = vadd.f32 %v3322, %v3723
    %v3725 = vpop.f32.mrf.mxu0
    %3726 = vmatprep.mubr.bf16.mxu0 0
    %3727 = vmatmul.mubr.bf16.gmra.mxu0 %v3658
    %v3728 = vpop.f32.mrf.mxu0
    %v3729 = vadd.f32 %v3322, %v3728
    %v3730 = vpop.f32.mrf.mxu0
    %v3731 = vpop.f32.mrf.mxu0
    %v3732 = vadd.f32 %v3322, %v3731
    %v3733 = vpop.f32.mrf.mxu0
    %3734 = vmatprep.mubr.bf16.mxu0 0
    %3735 = vmatmul.mubr.bf16.gmra.mxu0 %v3659
    %v3736 = vpop.f32.mrf.mxu0
    %v3737 = vadd.f32 %v3322, %v3736
    %v3738 = vpop.f32.mrf.mxu0
    %v3739 = vpop.f32.mrf.mxu0
    %v3740 = vadd.f32 %v3322, %v3739
    %v3741 = vpop.f32.mrf.mxu0
    %3742 = vmatprep.mubr.bf16.mxu0 0
    %3743 = vmatmul.mubr.bf16.gmra.mxu0 %v3660
    %v3744 = vpop.f32.mrf.mxu0
    %v3745 = vadd.f32 %v3322, %v3744
    %v3746 = vpop.f32.mrf.mxu0
    %v3747 = vpop.f32.mrf.mxu0
    %v3748 = vadd.f32 %v3322, %v3747
    %v3749 = vpop.f32.mrf.mxu0
    %3750 = vmatprep.mubr.bf16.mxu0 0
    %3751 = vmatmul.mubr.bf16.gmra.mxu0 %v3661
    %v3752 = vpop.f32.mrf.mxu0
    %v3753 = vadd.f32 %v3322, %v3752
    %v3754 = vpop.f32.mrf.mxu0
    %v3755 = vpop.f32.mrf.mxu0
    %v3756 = vadd.f32 %v3322, %v3755
    %v3757 = vpop.f32.mrf.mxu0
    %3758 = vdwg.mxu0
    %v3759 = vadd.f32 %v3453, %v3697
    %v3760 = vadd.f32 %v3454, %v3700
    %v3761 = vadd.f32 %v3455, %v3705
    %v3762 = vadd.f32 %v3456, %v3708
    %v3763 = vadd.f32 %v3457, %v3713
    %v3764 = vadd.f32 %v3458, %v3716
    %v3765 = vadd.f32 %v3459, %v3721
    %v3766 = vadd.f32 %v3460, %v3724
    %v3767 = vadd.f32 %v3461, %v3729
    %v3768 = vadd.f32 %v3462, %v3732
    %v3769 = vadd.f32 %v3463, %v3737
    %v3770 = vadd.f32 %v3464, %v3740
    %v3771 = vadd.f32 %v3465, %v3745
    %v3772 = vadd.f32 %v3466, %v3748
    %v3773 = vadd.f32 %v3467, %v3753
    %v3774 = vadd.f32 %v3468, %v3756
    %3775 = vst [vmem:[%s2408] sm:$0xff] %v3759
    %3776 = vst [vmem:[%s2408 + $0x8] sm:$0xff] %v3760
    %3777 = vst [vmem:[%s2408 + $0x10] sm:$0xff] %v3761
    %3778 = vst [vmem:[%s2408 + $0x18] sm:$0xff] %v3762
    %3779 = vst [vmem:[%s2408 + $0x20] sm:$0xff] %v3763
    %3780 = vst [vmem:[%s2408 + $0x28] sm:$0xff] %v3764
    %3781 = vst [vmem:[%s2408 + $0x30] sm:$0xff] %v3765
    %3782 = vst [vmem:[%s2408 + $0x38] sm:$0xff] %v3766
    %3783 = vst [vmem:[%s2408 + $0x40] sm:$0xff] %v3767
    %3784 = vst [vmem:[%s2408 + $0x48] sm:$0xff] %v3768
    %3785 = vst [vmem:[%s2408 + $0x50] sm:$0xff] %v3769
    %3786 = vst [vmem:[%s2408 + $0x58] sm:$0xff] %v3770
    %3787 = vst [vmem:[%s2408 + $0x60] sm:$0xff] %v3771
    %3788 = vst [vmem:[%s2408 + $0x68] sm:$0xff] %v3772
    %3789 = vst [vmem:[%s2408 + $0x70] sm:$0xff] %v3773
    %3790 = vst [vmem:[%s2408 + $0x78] sm:$0xff] %v3774
    // Predicated region
    $region118: #{tpu_custom_call.1} parent=1 // pred_check
      _
    $region119: #{tpu_custom_call.1} parent=1 // pred_check_branch
      %3792 = sbr.rel (0) target = $region121
    $region120: #{tpu_custom_call.1} parent=1 // pred_region
      %s3794 = ssub.s32 768, 768
      %3795 = vsyncadd [#allocation4], %s3794
      %s3796 = sshll.u32 [#allocation20], 4
      %s3797 = int_to_ptr.vmem [resolvable:$true] %s3796
      %3802 = dma.vmem_to_hbm [thread:$0]  %s3797, 768, %s18, [#allocation4], 128, 128, 8
    $region121: #{tpu_custom_call.1} parent=1 // pred_fallthru
      _
    // Predicated region
    $region122: #{tpu_custom_call.1} parent=1 // pred_check
      _
    $region123: #{tpu_custom_call.1} parent=1 // pred_check_branch
      %3804 = sbr.rel (0) target = $region125
    $region124: #{tpu_custom_call.1} parent=1 // pred_region
      %s3806 = ssub.s32 4096, 4096
      %3807 = vsyncadd [#allocation22], %s3806
      %s3808 = sshll.u32 [#allocation21], 4
      %s3809 = int_to_ptr.vmem [resolvable:$true] %s3808
      %3814 = dma.vmem_to_hbm [thread:$0]  %s3809, 4096, %s19, [#allocation22], 128, 128, 8
    $region125: #{tpu_custom_call.1} parent=1 // pred_fallthru
      _
    // Predicated region
    $region126: #{tpu_custom_call.1} parent=1 // pred_check
      _
    $region127: #{tpu_custom_call.1} parent=1 // pred_check_branch
      %3816 = sbr.rel (0) target = $region129
    $region128: #{tpu_custom_call.1} parent=1 // pred_region
      %3817 = dma.done [#allocation4], 768
    $region129: #{tpu_custom_call.1} parent=1 // pred_fallthru
      _
    // Predicated region
    $region130: #{tpu_custom_call.1} parent=1 // pred_check
      _
    $region131: #{tpu_custom_call.1} parent=1 // pred_check_branch
      %3819 = sbr.rel (0) target = $region133
    $region132: #{tpu_custom_call.1} parent=1 // pred_region
      %3820 = dma.done [#allocation22], 4096
    $region133: #{tpu_custom_call.1} parent=1 // pred_fallthru
      _
    %3821 = vsyncpa [#allocation3], 1
    %3822 = vsyncpa [#allocation6], 1
    %3823 = vsyncpa [#allocation9], 1
    %3824 = vsyncpa [#allocation12], 1
    %3825 = vsyncpa [#allocation15], 1
    %3826 = vsyncpa [#allocation18], 1
    %3827 = vsyncpa [#allocation4], 1
    %3828 = vsyncpa [#allocation22], 1

</llo_original>
